<compile_context>
chip_gen: v6e
topology: v6e:2x2x1
jax: 0.10.0
libtpu: 0.0.40
codegen_flags: <defaults>
</compile_context>

<pallas_src>
import math
import numpy as np
import jax
import jax.numpy as jnp
from jax.experimental import pallas as pl
from jax.experimental.pallas import tpu as pltpu

# ------------------------- module-consistent config ----------------------------
NTOKEN = 50
D_MODEL = 32
NHEAD = 4
D_HID = 64
NLAYERS = 2
CONV_KS = 3
NUM_CLASSES = 8
B, S = 2, 16                        # input tokens: (B, S)
L_CONV = S - CONV_KS + 1            # conv "valid" output length (14)
NROWS = B * L_CONV                  # stacked activation rows (28)
HEAD_DIM = D_MODEL // NHEAD
LN_EPS = 1e-5
SQRT_D = math.sqrt(D_MODEL)

# ----------------------------- packed-slab layout -------------------------------
SLAB_LANES = 128                    # lane width of both slabs (zero padded)

# weight slab rows (all offsets multiples of 8)
CW_OFF = 0                                   # im2col conv weight  (3*D, D)
HH_OFF = CW_OFF + CONV_KS * D_MODEL          # per-head selector   (D, D)
WDEC_OFF = HH_OFF + D_MODEL                  # decoder weight      (D, NUM_CLASSES)
WL_OFF = WDEC_OFF + D_MODEL                  # per-layer blocks start
WL_STRIDE = 3 * D_MODEL + D_HID              # w_qkv(32)+w_o(32)+w1(32)+w2(64) rows
NW_ROWS = WL_OFF + NLAYERS * WL_STRIDE       # 480

# vector slab rows
PE_OFF = 0                                   # PE broadcast to (B*S, D)
POOL_OFF = PE_OFF + B * S                    # pooling matrix (B, B*L_CONV)
CB_ROW = POOL_OFF + B                        # conv bias (1, D)
BDEC_ROW = CB_ROW + 1                        # decoder bias (1, NUM_CLASSES)
VL_OFF = BDEC_ROW + 1                        # per-layer vector blocks (8 rows each)
VL_STRIDE = 8
NV_ROWS = VL_OFF + NLAYERS * VL_STRIDE       # 52


# ------------------------------ fused kernel ------------------------------------
def _ln(x, g, b):
    mu = jnp.mean(x, axis=-1, keepdims=True)
    xc = x - mu
    var = jnp.mean(xc * xc, axis=-1, keepdims=True)
    return xc * jax.lax.rsqrt(var + LN_EPS) * g + b


def _fused_forward_kernel(tok_ref, emb_ref, w_ref, v_ref, out_ref, xbuf_ref):
    f32 = jnp.float32
    D = D_MODEL

    # ---- in-kernel embedding gather (table already scaled by sqrt(d_model)) ----
    for i in range(B * S):
        xbuf_ref[i:i + 1, :] = emb_ref[pl.ds(tok_ref[i], 1), :]
    x = xbuf_ref[...] + v_ref[PE_OFF:PE_OFF + B * S, 0:D]            # (B*S, D)

    # ---- Conv1d('valid') as a single im2col matmul ----
    cols = []
    for t in range(B):
        xt = x[t * S:(t + 1) * S, :]                                 # (S, D)
        cols.append(jnp.concatenate(
            [xt[k:k + L_CONV, :] for k in range(CONV_KS)], axis=1))  # (L_CONV, 3D)
    im2col = jnp.concatenate(cols, axis=0)                           # (NROWS, 3D)
    z = jnp.dot(im2col, w_ref[CW_OFF:CW_OFF + CONV_KS * D, 0:D],
                preferred_element_type=f32) + v_ref[CB_ROW:CB_ROW + 1, 0:D]

    # block-diag head selector, pre-scaled by 1/sqrt(HEAD_DIM)
    hh = w_ref[HH_OFF:HH_OFF + D, 0:D]

    # ---- TransformerEncoder layers: attention over t (seq = B), batch = conv pos ----
    for l in range(NLAYERS):
        wb = WL_OFF + l * WL_STRIDE
        vb = VL_OFF + l * VL_STRIDE

        # fused QKV projection on stacked (NROWS, D) activations
        qkv = jnp.dot(z, w_ref[wb:wb + D, 0:3 * D],
                      preferred_element_type=f32) + v_ref[vb:vb + 1, 0:3 * D]
        q = qkv[:, 0:D]
        k = qkv[:, D:2 * D]
        v = qkv[:, 2 * D:3 * D]

        # per-head scores via the block-diag matmul; batched across query steps:
        # s[tk][tq*L+n, d] == <q[tq,n,head(d)], k[tk,n,head(d)]> / sqrt(HEAD_DIM)
        s = []
        for tk in range(B):
            k_rep = jnp.concatenate(
                [k[tk * L_CONV:(tk + 1) * L_CONV, :]] * B, axis=0)   # (NROWS, D)
            s.append(jnp.dot(q * k_rep, hh, preferred_element_type=f32))
        m = s[0]
        for tk in range(1, B):
            m = jnp.maximum(m, s[tk])
        e = [jnp.exp(si - m) for si in s]
        denom = e[0]
        acc = e[0] * jnp.concatenate([v[0:L_CONV, :]] * B, axis=0)
        for tk in range(1, B):
            v_rep = jnp.concatenate(
                [v[tk * L_CONV:(tk + 1) * L_CONV, :]] * B, axis=0)
            denom = denom + e[tk]
            acc = acc + e[tk] * v_rep
        attn = acc * pl.reciprocal(denom, approx=True)               # (NROWS, D)

        # out-proj + LN1 + FFN + LN2, all batched on the stacked activations
        ao = jnp.dot(attn, w_ref[wb + D:wb + 2 * D, 0:D],
                     preferred_element_type=f32) + v_ref[vb + 1:vb + 2, 0:D]
        y = _ln(z + ao, v_ref[vb + 2:vb + 3, 0:D], v_ref[vb + 3:vb + 4, 0:D])
        h = jnp.maximum(
            jnp.dot(y, w_ref[wb + 2 * D:wb + 3 * D, 0:D_HID],
                    preferred_element_type=f32) + v_ref[vb + 4:vb + 5, 0:D_HID], 0.0)
        ff = jnp.dot(h, w_ref[wb + 3 * D:wb + 3 * D + D_HID, 0:D],
                     preferred_element_type=f32) + v_ref[vb + 5:vb + 6, 0:D]
        z = _ln(y + ff, v_ref[vb + 6:vb + 7, 0:D], v_ref[vb + 7:vb + 8, 0:D])

    # ---- mean over conv positions (pool matmul) + decoder, one lane-dense store ----
    pooled = jnp.dot(v_ref[POOL_OFF:POOL_OFF + B, 0:NROWS], z,
                     preferred_element_type=f32)                     # (B, D)
    out_ref[...] = (jnp.dot(pooled, w_ref[WDEC_OFF:WDEC_OFF + D, 0:NUM_CLASSES],
                            preferred_element_type=f32)
                    + v_ref[BDEC_ROW:BDEC_ROW + 1, 0:NUM_CLASSES])


# ------------------------------ kernel wrapper -----------------------------------
_VMEM = pl.BlockSpec(memory_space=pltpu.MemorySpace.VMEM)
_SMEM = pl.BlockSpec(memory_space=pltpu.MemorySpace.SMEM)

_fused_call = pl.pallas_call(
    _fused_forward_kernel,
    out_shape=jax.ShapeDtypeStruct((B, NUM_CLASSES), jnp.float32),
    in_specs=[_SMEM, _VMEM, _VMEM, _VMEM],          # tokens, emb, wslab, vslab
    out_specs=_VMEM,
    scratch_shapes=[pltpu.VMEM((B * S, D_MODEL), jnp.float32)],
)


@jax.jit
def forward_pallas(tokens, kparams):
    tok_flat = tokens.reshape(B * S).astype(jnp.int32)
    return _fused_call(tok_flat, kparams["emb"], kparams["wslab"], kparams["vslab"])


def prepare_kernel_params(params):
    """One-time packing of the PyTorch-style parameters into 3 lane-dense slabs."""
    D = D_MODEL

    def put(slab, row, mat):
        r, c = mat.shape
        return slab.at[row:row + r, 0:c].set(mat)

    # -- weight slab: every matmul RHS, row-stacked, zero lane-padded to 128 --
    wslab = jnp.zeros((NW_ROWS, SLAB_LANES), jnp.float32)
    cw = jnp.transpose(params["conv_w"], (2, 1, 0)).reshape(CONV_KS * D, D)   # (96, 32)
    wslab = put(wslab, CW_OFF, cw)
    head_of = np.arange(D) // HEAD_DIM
    hh = (head_of[:, None] == head_of[None, :]).astype(np.float32) / math.sqrt(HEAD_DIM)
    wslab = put(wslab, HH_OFF, jnp.asarray(hh))
    wslab = put(wslab, WDEC_OFF, params["w_dec"])
    for l, lp in enumerate(params["layers"]):
        base = WL_OFF + l * WL_STRIDE
        wslab = put(wslab, base + 0, lp["w_qkv"])
        wslab = put(wslab, base + D, lp["w_o"])
        wslab = put(wslab, base + 2 * D, lp["w1"])
        wslab = put(wslab, base + 3 * D, lp["w2"])

    # -- vector slab: biases / gains / PE / pooling matrix --
    vslab = jnp.zeros((NV_ROWS, SLAB_LANES), jnp.float32)
    pe = jnp.broadcast_to(params["pe_b"], (B, S, D)).reshape(B * S, D)
    vslab = put(vslab, PE_OFF, pe)
    pool = np.zeros((B, NROWS), np.float32)
    for t in range(B):
        pool[t, t * L_CONV:(t + 1) * L_CONV] = 1.0 / L_CONV
    vslab = put(vslab, POOL_OFF, jnp.asarray(pool))
    vslab = put(vslab, CB_ROW, params["conv_b"].reshape(1, D))
    vslab = put(vslab, BDEC_ROW, params["b_dec"].reshape(1, NUM_CLASSES))
    for l, lp in enumerate(params["layers"]):
        base = VL_OFF + l * VL_STRIDE
        vslab = put(vslab, base + 0, lp["b_qkv"])
        vslab = put(vslab, base + 1, lp["b_o"])
        vslab = put(vslab, base + 2, lp["g1"])
        vslab = put(vslab, base + 3, lp["be1"])
        vslab = put(vslab, base + 4, lp["b1"])
        vslab = put(vslab, base + 5, lp["b2"])
        vslab = put(vslab, base + 6, lp["g2"])
        vslab = put(vslab, base + 7, lp["be2"])

    return {
        "emb": params["embed"] * SQRT_D,     # embedding scale folded into the table
        "wslab": wslab,
        "vslab": vslab,
    }


# ------------------------------ parameter setup ---------------------------------
def init_params(key):
    keys = jax.random.split(key, 8 + NLAYERS)
    sc = 0.05
    params = {
        "embed": jax.random.normal(keys[0], (NTOKEN, D_MODEL), jnp.float32),
        "conv_w": sc * jax.random.normal(keys[1], (D_MODEL, D_MODEL, CONV_KS), jnp.float32),
        "conv_b": sc * jax.random.normal(keys[2], (D_MODEL,), jnp.float32),
        "w_dec": sc * jax.random.normal(keys[3], (D_MODEL, NUM_CLASSES), jnp.float32),
        "b_dec": sc * jax.random.normal(keys[4], (NUM_CLASSES,), jnp.float32),
    }
    # positional-encoding buffer (only the first B rows are used: pe[:x.size(0)])
    pos = jnp.arange(64, dtype=jnp.float32)[:, None]
    div = jnp.exp(jnp.arange(0, D_MODEL, 2, dtype=jnp.float32)
                  * (-math.log(10000.0) / D_MODEL))
    pe = jnp.zeros((64, D_MODEL), jnp.float32)
    pe = pe.at[:, 0::2].set(jnp.sin(pos * div))
    pe = pe.at[:, 1::2].set(jnp.cos(pos * div))
    params["pe_b"] = pe[:B][:, None, :]                             # (B, 1, D)

    layers = []
    for i in range(NLAYERS):
        lk = jax.random.split(keys[5 + i], 8)
        layers.append({
            "w_qkv": sc * jax.random.normal(lk[0], (D_MODEL, 3 * D_MODEL), jnp.float32),
            "b_qkv": sc * jax.random.normal(lk[1], (1, 3 * D_MODEL), jnp.float32),
            "w_o":   sc * jax.random.normal(lk[2], (D_MODEL, D_MODEL), jnp.float32),
            "b_o":   sc * jax.random.normal(lk[3], (1, D_MODEL), jnp.float32),
            "g1":  jnp.ones((1, D_MODEL), jnp.float32),
            "be1": jnp.zeros((1, D_MODEL), jnp.float32),
            "w1":  sc * jax.random.normal(lk[4], (D_MODEL, D_HID), jnp.float32),
            "b1":  sc * jax.random.normal(lk[5], (1, D_HID), jnp.float32),
            "w2":  sc * jax.random.normal(lk[6], (D_HID, D_MODEL), jnp.float32),
            "b2":  sc * jax.random.normal(lk[7], (1, D_MODEL), jnp.float32),
            "g2":  jnp.ones((1, D_MODEL), jnp.float32),
            "be2": jnp.zeros((1, D_MODEL), jnp.float32),
        })
    params["layers"] = layers
    return params


# ------------------------------ pure-JAX reference ------------------------------
def ref_forward(tokens, params):
    emb = params["embed"][tokens] * math.sqrt(D_MODEL)
    x = emb + params["pe_b"]                                        # (B, S, D)
    xin = jnp.transpose(x, (0, 2, 1))                               # (B, D, S)
    conv = jax.lax.conv_general_dilated(
        xin, params["conv_w"], window_strides=(1,), padding="VALID",
        dimension_numbers=("NCH", "OIH", "NCH"))
    conv = conv + params["conv_b"][None, :, None]
    z = jnp.transpose(conv, (0, 2, 1))                              # (T=B, N=L, D)

    def ln(a, g, b):
        mu = a.mean(-1, keepdims=True)
        var = ((a - mu) ** 2).mean(-1, keepdims=True)
        return (a - mu) / jnp.sqrt(var + LN_EPS) * g + b

    for p in params["layers"]:
        T, N, D = z.shape
        qkv = z @ p["w_qkv"] + p["b_qkv"]
        q, k, v = jnp.split(qkv, 3, axis=-1)
        q = q.reshape(T, N, NHEAD, HEAD_DIM)
        k = k.reshape(T, N, NHEAD, HEAD_DIM)
        v = v.reshape(T, N, NHEAD, HEAD_DIM)
        s = jnp.einsum("tnhd,snhd->nhts", q, k) / math.sqrt(HEAD_DIM)
        a = jax.nn.softmax(s, axis=-1)
        o = jnp.einsum("nhts,snhd->tnhd", a, v).reshape(T, N, D)
        attn_out = o @ p["w_o"] + p["b_o"]
        y = ln(z + attn_out, p["g1"], p["be1"])
        f = jax.nn.relu(y @ p["w1"] + p["b1"]) @ p["w2"] + p["b2"]
        z = ln(y + f, p["g2"], p["be2"])

    pooled = z.mean(axis=1)                                         # (B, D)
    return pooled @ params["w_dec"] + params["b_dec"]


# --------------------------------------- main -----------------------------------
if __name__ == "__main__":
    key = jax.random.PRNGKey(0)
    pkey, tkey = jax.random.split(key)
    params = init_params(pkey)
    kparams = prepare_kernel_params(params)        # one-time layout work (hoisted)
    tokens = jax.random.randint(tkey, (B, S), 0, NTOKEN, dtype=jnp.int32)

    out = jax.block_until_ready(forward_pallas(tokens, kparams))
    ref = jax.block_until_ready(ref_forward(tokens, params))

    assert out.shape == (B, NUM_CLASSES)
    np.testing.assert_allclose(np.asarray(out), np.asarray(ref), atol=5e-2, rtol=5e-2)
    print("KERNEL_OK")
</pallas_src>

<mosaic_0001>
module attributes {stable_mosaic.version = 11 : i64} {
  func.func @_fused_forward_kernel(%arg0: memref<32xi32, #tpu.memory_space<smem>>, %arg1: memref<50x32xf32, #tpu.memory_space<vmem>>, %arg2: memref<480x128xf32, #tpu.memory_space<vmem>>, %arg3: memref<52x128xf32, #tpu.memory_space<vmem>>, %arg4: memref<2x8xf32, #tpu.memory_space<vmem>>, %arg5: memref<32x32xf32, #tpu.memory_space<vmem>>) attributes {dimension_semantics = [], scalar_prefetch = 0 : i64, scratch_operands = 1 : i64, tpu.core_type = #tpu.core_type<tc>} {
    %c0 = arith.constant 0 : index
    %0 = memref.load %arg0[%c0] : memref<32xi32, #tpu.memory_space<smem>>
    %1 = arith.index_cast %0 : i32 to index
    %c0_0 = arith.constant 0 : index
    %2 = vector.load %arg1[%1, %c0_0] : memref<50x32xf32, #tpu.memory_space<vmem>>, vector<1x32xf32>
    %c0_1 = arith.constant 0 : index
    %c0_2 = arith.constant 0 : index
    %3 = vector.load %arg5[%c0_1, %c0_2] : memref<32x32xf32, #tpu.memory_space<vmem>>, vector<1x32xf32>
    tpu.vector_store %arg5[%c0_1, %c0_2], %2 {strides = array<i32>} : memref<32x32xf32, #tpu.memory_space<vmem>>, vector<1x32xf32>,
    %c1 = arith.constant 1 : index
    %4 = memref.load %arg0[%c1] : memref<32xi32, #tpu.memory_space<smem>>
    %5 = arith.index_cast %4 : i32 to index
    %c0_3 = arith.constant 0 : index
    %6 = vector.load %arg1[%5, %c0_3] : memref<50x32xf32, #tpu.memory_space<vmem>>, vector<1x32xf32>
    %c1_4 = arith.constant 1 : index
    %c0_5 = arith.constant 0 : index
    %7 = vector.load %arg5[%c1_4, %c0_5] : memref<32x32xf32, #tpu.memory_space<vmem>>, vector<1x32xf32>
    tpu.vector_store %arg5[%c1_4, %c0_5], %6 {strides = array<i32>} : memref<32x32xf32, #tpu.memory_space<vmem>>, vector<1x32xf32>,
    %c2 = arith.constant 2 : index
    %8 = memref.load %arg0[%c2] : memref<32xi32, #tpu.memory_space<smem>>
    %9 = arith.index_cast %8 : i32 to index
    %c0_6 = arith.constant 0 : index
    %10 = vector.load %arg1[%9, %c0_6] : memref<50x32xf32, #tpu.memory_space<vmem>>, vector<1x32xf32>
    %c2_7 = arith.constant 2 : index
    %c0_8 = arith.constant 0 : index
    %11 = vector.load %arg5[%c2_7, %c0_8] : memref<32x32xf32, #tpu.memory_space<vmem>>, vector<1x32xf32>
    tpu.vector_store %arg5[%c2_7, %c0_8], %10 {strides = array<i32>} : memref<32x32xf32, #tpu.memory_space<vmem>>, vector<1x32xf32>,
    %c3 = arith.constant 3 : index
    %12 = memref.load %arg0[%c3] : memref<32xi32, #tpu.memory_space<smem>>
    %13 = arith.index_cast %12 : i32 to index
    %c0_9 = arith.constant 0 : index
    %14 = vector.load %arg1[%13, %c0_9] : memref<50x32xf32, #tpu.memory_space<vmem>>, vector<1x32xf32>
    %c3_10 = arith.constant 3 : index
    %c0_11 = arith.constant 0 : index
    %15 = vector.load %arg5[%c3_10, %c0_11] : memref<32x32xf32, #tpu.memory_space<vmem>>, vector<1x32xf32>
    tpu.vector_store %arg5[%c3_10, %c0_11], %14 {strides = array<i32>} : memref<32x32xf32, #tpu.memory_space<vmem>>, vector<1x32xf32>,
    %c4 = arith.constant 4 : index
    %16 = memref.load %arg0[%c4] : memref<32xi32, #tpu.memory_space<smem>>
    %17 = arith.index_cast %16 : i32 to index
    %c0_12 = arith.constant 0 : index
    %18 = vector.load %arg1[%17, %c0_12] : memref<50x32xf32, #tpu.memory_space<vmem>>, vector<1x32xf32>
    %c4_13 = arith.constant 4 : index
    %c0_14 = arith.constant 0 : index
    %19 = vector.load %arg5[%c4_13, %c0_14] : memref<32x32xf32, #tpu.memory_space<vmem>>, vector<1x32xf32>
    tpu.vector_store %arg5[%c4_13, %c0_14], %18 {strides = array<i32>} : memref<32x32xf32, #tpu.memory_space<vmem>>, vector<1x32xf32>,
    %c5 = arith.constant 5 : index
    %20 = memref.load %arg0[%c5] : memref<32xi32, #tpu.memory_space<smem>>
    %21 = arith.index_cast %20 : i32 to index
    %c0_15 = arith.constant 0 : index
    %22 = vector.load %arg1[%21, %c0_15] : memref<50x32xf32, #tpu.memory_space<vmem>>, vector<1x32xf32>
    %c5_16 = arith.constant 5 : index
    %c0_17 = arith.constant 0 : index
    %23 = vector.load %arg5[%c5_16, %c0_17] : memref<32x32xf32, #tpu.memory_space<vmem>>, vector<1x32xf32>
    tpu.vector_store %arg5[%c5_16, %c0_17], %22 {strides = array<i32>} : memref<32x32xf32, #tpu.memory_space<vmem>>, vector<1x32xf32>,
    %c6 = arith.constant 6 : index
    %24 = memref.load %arg0[%c6] : memref<32xi32, #tpu.memory_space<smem>>
    %25 = arith.index_cast %24 : i32 to index
    %c0_18 = arith.constant 0 : index
    %26 = vector.load %arg1[%25, %c0_18] : memref<50x32xf32, #tpu.memory_space<vmem>>, vector<1x32xf32>
    %c6_19 = arith.constant 6 : index
    %c0_20 = arith.constant 0 : index
    %27 = vector.load %arg5[%c6_19, %c0_20] : memref<32x32xf32, #tpu.memory_space<vmem>>, vector<1x32xf32>
    tpu.vector_store %arg5[%c6_19, %c0_20], %26 {strides = array<i32>} : memref<32x32xf32, #tpu.memory_space<vmem>>, vector<1x32xf32>,
    %c7 = arith.constant 7 : index
    %28 = memref.load %arg0[%c7] : memref<32xi32, #tpu.memory_space<smem>>
    %29 = arith.index_cast %28 : i32 to index
    %c0_21 = arith.constant 0 : index
    %30 = vector.load %arg1[%29, %c0_21] : memref<50x32xf32, #tpu.memory_space<vmem>>, vector<1x32xf32>
    %c7_22 = arith.constant 7 : index
    %c0_23 = arith.constant 0 : index
    %31 = vector.load %arg5[%c7_22, %c0_23] : memref<32x32xf32, #tpu.memory_space<vmem>>, vector<1x32xf32>
    tpu.vector_store %arg5[%c7_22, %c0_23], %30 {strides = array<i32>} : memref<32x32xf32, #tpu.memory_space<vmem>>, vector<1x32xf32>,
    %c8 = arith.constant 8 : index
    %32 = memref.load %arg0[%c8] : memref<32xi32, #tpu.memory_space<smem>>
    %33 = arith.index_cast %32 : i32 to index
    %c0_24 = arith.constant 0 : index
    %34 = vector.load %arg1[%33, %c0_24] : memref<50x32xf32, #tpu.memory_space<vmem>>, vector<1x32xf32>
    %c8_25 = arith.constant 8 : index
    %c0_26 = arith.constant 0 : index
    %35 = vector.load %arg5[%c8_25, %c0_26] : memref<32x32xf32, #tpu.memory_space<vmem>>, vector<1x32xf32>
    tpu.vector_store %arg5[%c8_25, %c0_26], %34 {strides = array<i32>} : memref<32x32xf32, #tpu.memory_space<vmem>>, vector<1x32xf32>,
    %c9 = arith.constant 9 : index
    %36 = memref.load %arg0[%c9] : memref<32xi32, #tpu.memory_space<smem>>
    %37 = arith.index_cast %36 : i32 to index
    %c0_27 = arith.constant 0 : index
    %38 = vector.load %arg1[%37, %c0_27] : memref<50x32xf32, #tpu.memory_space<vmem>>, vector<1x32xf32>
    %c9_28 = arith.constant 9 : index
    %c0_29 = arith.constant 0 : index
    %39 = vector.load %arg5[%c9_28, %c0_29] : memref<32x32xf32, #tpu.memory_space<vmem>>, vector<1x32xf32>
    tpu.vector_store %arg5[%c9_28, %c0_29], %38 {strides = array<i32>} : memref<32x32xf32, #tpu.memory_space<vmem>>, vector<1x32xf32>,
    %c10 = arith.constant 10 : index
    %40 = memref.load %arg0[%c10] : memref<32xi32, #tpu.memory_space<smem>>
    %41 = arith.index_cast %40 : i32 to index
    %c0_30 = arith.constant 0 : index
    %42 = vector.load %arg1[%41, %c0_30] : memref<50x32xf32, #tpu.memory_space<vmem>>, vector<1x32xf32>
    %c10_31 = arith.constant 10 : index
    %c0_32 = arith.constant 0 : index
    %43 = vector.load %arg5[%c10_31, %c0_32] : memref<32x32xf32, #tpu.memory_space<vmem>>, vector<1x32xf32>
    tpu.vector_store %arg5[%c10_31, %c0_32], %42 {strides = array<i32>} : memref<32x32xf32, #tpu.memory_space<vmem>>, vector<1x32xf32>,
    %c11 = arith.constant 11 : index
    %44 = memref.load %arg0[%c11] : memref<32xi32, #tpu.memory_space<smem>>
    %45 = arith.index_cast %44 : i32 to index
    %c0_33 = arith.constant 0 : index
    %46 = vector.load %arg1[%45, %c0_33] : memref<50x32xf32, #tpu.memory_space<vmem>>, vector<1x32xf32>
    %c11_34 = arith.constant 11 : index
    %c0_35 = arith.constant 0 : index
    %47 = vector.load %arg5[%c11_34, %c0_35] : memref<32x32xf32, #tpu.memory_space<vmem>>, vector<1x32xf32>
    tpu.vector_store %arg5[%c11_34, %c0_35], %46 {strides = array<i32>} : memref<32x32xf32, #tpu.memory_space<vmem>>, vector<1x32xf32>,
    %c12 = arith.constant 12 : index
    %48 = memref.load %arg0[%c12] : memref<32xi32, #tpu.memory_space<smem>>
    %49 = arith.index_cast %48 : i32 to index
    %c0_36 = arith.constant 0 : index
    %50 = vector.load %arg1[%49, %c0_36] : memref<50x32xf32, #tpu.memory_space<vmem>>, vector<1x32xf32>
    %c12_37 = arith.constant 12 : index
    %c0_38 = arith.constant 0 : index
    %51 = vector.load %arg5[%c12_37, %c0_38] : memref<32x32xf32, #tpu.memory_space<vmem>>, vector<1x32xf32>
    tpu.vector_store %arg5[%c12_37, %c0_38], %50 {strides = array<i32>} : memref<32x32xf32, #tpu.memory_space<vmem>>, vector<1x32xf32>,
    %c13 = arith.constant 13 : index
    %52 = memref.load %arg0[%c13] : memref<32xi32, #tpu.memory_space<smem>>
    %53 = arith.index_cast %52 : i32 to index
    %c0_39 = arith.constant 0 : index
    %54 = vector.load %arg1[%53, %c0_39] : memref<50x32xf32, #tpu.memory_space<vmem>>, vector<1x32xf32>
    %c13_40 = arith.constant 13 : index
    %c0_41 = arith.constant 0 : index
    %55 = vector.load %arg5[%c13_40, %c0_41] : memref<32x32xf32, #tpu.memory_space<vmem>>, vector<1x32xf32>
    tpu.vector_store %arg5[%c13_40, %c0_41], %54 {strides = array<i32>} : memref<32x32xf32, #tpu.memory_space<vmem>>, vector<1x32xf32>,
    %c14 = arith.constant 14 : index
    %56 = memref.load %arg0[%c14] : memref<32xi32, #tpu.memory_space<smem>>
    %57 = arith.index_cast %56 : i32 to index
    %c0_42 = arith.constant 0 : index
    %58 = vector.load %arg1[%57, %c0_42] : memref<50x32xf32, #tpu.memory_space<vmem>>, vector<1x32xf32>
    %c14_43 = arith.constant 14 : index
    %c0_44 = arith.constant 0 : index
    %59 = vector.load %arg5[%c14_43, %c0_44] : memref<32x32xf32, #tpu.memory_space<vmem>>, vector<1x32xf32>
    tpu.vector_store %arg5[%c14_43, %c0_44], %58 {strides = array<i32>} : memref<32x32xf32, #tpu.memory_space<vmem>>, vector<1x32xf32>,
    %c15 = arith.constant 15 : index
    %60 = memref.load %arg0[%c15] : memref<32xi32, #tpu.memory_space<smem>>
    %61 = arith.index_cast %60 : i32 to index
    %c0_45 = arith.constant 0 : index
    %62 = vector.load %arg1[%61, %c0_45] : memref<50x32xf32, #tpu.memory_space<vmem>>, vector<1x32xf32>
    %c15_46 = arith.constant 15 : index
    %c0_47 = arith.constant 0 : index
    %63 = vector.load %arg5[%c15_46, %c0_47] : memref<32x32xf32, #tpu.memory_space<vmem>>, vector<1x32xf32>
    tpu.vector_store %arg5[%c15_46, %c0_47], %62 {strides = array<i32>} : memref<32x32xf32, #tpu.memory_space<vmem>>, vector<1x32xf32>,
    %c16 = arith.constant 16 : index
    %64 = memref.load %arg0[%c16] : memref<32xi32, #tpu.memory_space<smem>>
    %65 = arith.index_cast %64 : i32 to index
    %c0_48 = arith.constant 0 : index
    %66 = vector.load %arg1[%65, %c0_48] : memref<50x32xf32, #tpu.memory_space<vmem>>, vector<1x32xf32>
    %c16_49 = arith.constant 16 : index
    %c0_50 = arith.constant 0 : index
    %67 = vector.load %arg5[%c16_49, %c0_50] : memref<32x32xf32, #tpu.memory_space<vmem>>, vector<1x32xf32>
    tpu.vector_store %arg5[%c16_49, %c0_50], %66 {strides = array<i32>} : memref<32x32xf32, #tpu.memory_space<vmem>>, vector<1x32xf32>,
    %c17 = arith.constant 17 : index
    %68 = memref.load %arg0[%c17] : memref<32xi32, #tpu.memory_space<smem>>
    %69 = arith.index_cast %68 : i32 to index
    %c0_51 = arith.constant 0 : index
    %70 = vector.load %arg1[%69, %c0_51] : memref<50x32xf32, #tpu.memory_space<vmem>>, vector<1x32xf32>
    %c17_52 = arith.constant 17 : index
    %c0_53 = arith.constant 0 : index
    %71 = vector.load %arg5[%c17_52, %c0_53] : memref<32x32xf32, #tpu.memory_space<vmem>>, vector<1x32xf32>
    tpu.vector_store %arg5[%c17_52, %c0_53], %70 {strides = array<i32>} : memref<32x32xf32, #tpu.memory_space<vmem>>, vector<1x32xf32>,
    %c18 = arith.constant 18 : index
    %72 = memref.load %arg0[%c18] : memref<32xi32, #tpu.memory_space<smem>>
    %73 = arith.index_cast %72 : i32 to index
    %c0_54 = arith.constant 0 : index
    %74 = vector.load %arg1[%73, %c0_54] : memref<50x32xf32, #tpu.memory_space<vmem>>, vector<1x32xf32>
    %c18_55 = arith.constant 18 : index
    %c0_56 = arith.constant 0 : index
    %75 = vector.load %arg5[%c18_55, %c0_56] : memref<32x32xf32, #tpu.memory_space<vmem>>, vector<1x32xf32>
    tpu.vector_store %arg5[%c18_55, %c0_56], %74 {strides = array<i32>} : memref<32x32xf32, #tpu.memory_space<vmem>>, vector<1x32xf32>,
    %c19 = arith.constant 19 : index
    %76 = memref.load %arg0[%c19] : memref<32xi32, #tpu.memory_space<smem>>
    %77 = arith.index_cast %76 : i32 to index
    %c0_57 = arith.constant 0 : index
    %78 = vector.load %arg1[%77, %c0_57] : memref<50x32xf32, #tpu.memory_space<vmem>>, vector<1x32xf32>
    %c19_58 = arith.constant 19 : index
    %c0_59 = arith.constant 0 : index
    %79 = vector.load %arg5[%c19_58, %c0_59] : memref<32x32xf32, #tpu.memory_space<vmem>>, vector<1x32xf32>
    tpu.vector_store %arg5[%c19_58, %c0_59], %78 {strides = array<i32>} : memref<32x32xf32, #tpu.memory_space<vmem>>, vector<1x32xf32>,
    %c20 = arith.constant 20 : index
    %80 = memref.load %arg0[%c20] : memref<32xi32, #tpu.memory_space<smem>>
    %81 = arith.index_cast %80 : i32 to index
    %c0_60 = arith.constant 0 : index
    %82 = vector.load %arg1[%81, %c0_60] : memref<50x32xf32, #tpu.memory_space<vmem>>, vector<1x32xf32>
    %c20_61 = arith.constant 20 : index
    %c0_62 = arith.constant 0 : index
    %83 = vector.load %arg5[%c20_61, %c0_62] : memref<32x32xf32, #tpu.memory_space<vmem>>, vector<1x32xf32>
    tpu.vector_store %arg5[%c20_61, %c0_62], %82 {strides = array<i32>} : memref<32x32xf32, #tpu.memory_space<vmem>>, vector<1x32xf32>,
    %c21 = arith.constant 21 : index
    %84 = memref.load %arg0[%c21] : memref<32xi32, #tpu.memory_space<smem>>
    %85 = arith.index_cast %84 : i32 to index
    %c0_63 = arith.constant 0 : index
    %86 = vector.load %arg1[%85, %c0_63] : memref<50x32xf32, #tpu.memory_space<vmem>>, vector<1x32xf32>
    %c21_64 = arith.constant 21 : index
    %c0_65 = arith.constant 0 : index
    %87 = vector.load %arg5[%c21_64, %c0_65] : memref<32x32xf32, #tpu.memory_space<vmem>>, vector<1x32xf32>
    tpu.vector_store %arg5[%c21_64, %c0_65], %86 {strides = array<i32>} : memref<32x32xf32, #tpu.memory_space<vmem>>, vector<1x32xf32>,
    %c22 = arith.constant 22 : index
    %88 = memref.load %arg0[%c22] : memref<32xi32, #tpu.memory_space<smem>>
    %89 = arith.index_cast %88 : i32 to index
    %c0_66 = arith.constant 0 : index
    %90 = vector.load %arg1[%89, %c0_66] : memref<50x32xf32, #tpu.memory_space<vmem>>, vector<1x32xf32>
    %c22_67 = arith.constant 22 : index
    %c0_68 = arith.constant 0 : index
    %91 = vector.load %arg5[%c22_67, %c0_68] : memref<32x32xf32, #tpu.memory_space<vmem>>, vector<1x32xf32>
    tpu.vector_store %arg5[%c22_67, %c0_68], %90 {strides = array<i32>} : memref<32x32xf32, #tpu.memory_space<vmem>>, vector<1x32xf32>,
    %c23 = arith.constant 23 : index
    %92 = memref.load %arg0[%c23] : memref<32xi32, #tpu.memory_space<smem>>
    %93 = arith.index_cast %92 : i32 to index
    %c0_69 = arith.constant 0 : index
    %94 = vector.load %arg1[%93, %c0_69] : memref<50x32xf32, #tpu.memory_space<vmem>>, vector<1x32xf32>
    %c23_70 = arith.constant 23 : index
    %c0_71 = arith.constant 0 : index
    %95 = vector.load %arg5[%c23_70, %c0_71] : memref<32x32xf32, #tpu.memory_space<vmem>>, vector<1x32xf32>
    tpu.vector_store %arg5[%c23_70, %c0_71], %94 {strides = array<i32>} : memref<32x32xf32, #tpu.memory_space<vmem>>, vector<1x32xf32>,
    %c24 = arith.constant 24 : index
    %96 = memref.load %arg0[%c24] : memref<32xi32, #tpu.memory_space<smem>>
    %97 = arith.index_cast %96 : i32 to index
    %c0_72 = arith.constant 0 : index
    %98 = vector.load %arg1[%97, %c0_72] : memref<50x32xf32, #tpu.memory_space<vmem>>, vector<1x32xf32>
    %c24_73 = arith.constant 24 : index
    %c0_74 = arith.constant 0 : index
    %99 = vector.load %arg5[%c24_73, %c0_74] : memref<32x32xf32, #tpu.memory_space<vmem>>, vector<1x32xf32>
    tpu.vector_store %arg5[%c24_73, %c0_74], %98 {strides = array<i32>} : memref<32x32xf32, #tpu.memory_space<vmem>>, vector<1x32xf32>,
    %c25 = arith.constant 25 : index
    %100 = memref.load %arg0[%c25] : memref<32xi32, #tpu.memory_space<smem>>
    %101 = arith.index_cast %100 : i32 to index
    %c0_75 = arith.constant 0 : index
    %102 = vector.load %arg1[%101, %c0_75] : memref<50x32xf32, #tpu.memory_space<vmem>>, vector<1x32xf32>
    %c25_76 = arith.constant 25 : index
    %c0_77 = arith.constant 0 : index
    %103 = vector.load %arg5[%c25_76, %c0_77] : memref<32x32xf32, #tpu.memory_space<vmem>>, vector<1x32xf32>
    tpu.vector_store %arg5[%c25_76, %c0_77], %102 {strides = array<i32>} : memref<32x32xf32, #tpu.memory_space<vmem>>, vector<1x32xf32>,
    %c26 = arith.constant 26 : index
    %104 = memref.load %arg0[%c26] : memref<32xi32, #tpu.memory_space<smem>>
    %105 = arith.index_cast %104 : i32 to index
    %c0_78 = arith.constant 0 : index
    %106 = vector.load %arg1[%105, %c0_78] : memref<50x32xf32, #tpu.memory_space<vmem>>, vector<1x32xf32>
    %c26_79 = arith.constant 26 : index
    %c0_80 = arith.constant 0 : index
    %107 = vector.load %arg5[%c26_79, %c0_80] : memref<32x32xf32, #tpu.memory_space<vmem>>, vector<1x32xf32>
    tpu.vector_store %arg5[%c26_79, %c0_80], %106 {strides = array<i32>} : memref<32x32xf32, #tpu.memory_space<vmem>>, vector<1x32xf32>,
    %c27 = arith.constant 27 : index
    %108 = memref.load %arg0[%c27] : memref<32xi32, #tpu.memory_space<smem>>
    %109 = arith.index_cast %108 : i32 to index
    %c0_81 = arith.constant 0 : index
    %110 = vector.load %arg1[%109, %c0_81] : memref<50x32xf32, #tpu.memory_space<vmem>>, vector<1x32xf32>
    %c27_82 = arith.constant 27 : index
    %c0_83 = arith.constant 0 : index
    %111 = vector.load %arg5[%c27_82, %c0_83] : memref<32x32xf32, #tpu.memory_space<vmem>>, vector<1x32xf32>
    tpu.vector_store %arg5[%c27_82, %c0_83], %110 {strides = array<i32>} : memref<32x32xf32, #tpu.memory_space<vmem>>, vector<1x32xf32>,
    %c28 = arith.constant 28 : index
    %112 = memref.load %arg0[%c28] : memref<32xi32, #tpu.memory_space<smem>>
    %113 = arith.index_cast %112 : i32 to index
    %c0_84 = arith.constant 0 : index
    %114 = vector.load %arg1[%113, %c0_84] : memref<50x32xf32, #tpu.memory_space<vmem>>, vector<1x32xf32>
    %c28_85 = arith.constant 28 : index
    %c0_86 = arith.constant 0 : index
    %115 = vector.load %arg5[%c28_85, %c0_86] : memref<32x32xf32, #tpu.memory_space<vmem>>, vector<1x32xf32>
    tpu.vector_store %arg5[%c28_85, %c0_86], %114 {strides = array<i32>} : memref<32x32xf32, #tpu.memory_space<vmem>>, vector<1x32xf32>,
    %c29 = arith.constant 29 : index
    %116 = memref.load %arg0[%c29] : memref<32xi32, #tpu.memory_space<smem>>
    %117 = arith.index_cast %116 : i32 to index
    %c0_87 = arith.constant 0 : index
    %118 = vector.load %arg1[%117, %c0_87] : memref<50x32xf32, #tpu.memory_space<vmem>>, vector<1x32xf32>
    %c29_88 = arith.constant 29 : index
    %c0_89 = arith.constant 0 : index
    %119 = vector.load %arg5[%c29_88, %c0_89] : memref<32x32xf32, #tpu.memory_space<vmem>>, vector<1x32xf32>
    tpu.vector_store %arg5[%c29_88, %c0_89], %118 {strides = array<i32>} : memref<32x32xf32, #tpu.memory_space<vmem>>, vector<1x32xf32>,
    %c30 = arith.constant 30 : index
    %120 = memref.load %arg0[%c30] : memref<32xi32, #tpu.memory_space<smem>>
    %121 = arith.index_cast %120 : i32 to index
    %c0_90 = arith.constant 0 : index
    %122 = vector.load %arg1[%121, %c0_90] : memref<50x32xf32, #tpu.memory_space<vmem>>, vector<1x32xf32>
    %c30_91 = arith.constant 30 : index
    %c0_92 = arith.constant 0 : index
    %123 = vector.load %arg5[%c30_91, %c0_92] : memref<32x32xf32, #tpu.memory_space<vmem>>, vector<1x32xf32>
    tpu.vector_store %arg5[%c30_91, %c0_92], %122 {strides = array<i32>} : memref<32x32xf32, #tpu.memory_space<vmem>>, vector<1x32xf32>,
    %c31 = arith.constant 31 : index
    %124 = memref.load %arg0[%c31] : memref<32xi32, #tpu.memory_space<smem>>
    %125 = arith.index_cast %124 : i32 to index
    %c0_93 = arith.constant 0 : index
    %126 = vector.load %arg1[%125, %c0_93] : memref<50x32xf32, #tpu.memory_space<vmem>>, vector<1x32xf32>
    %c31_94 = arith.constant 31 : index
    %c0_95 = arith.constant 0 : index
    %127 = vector.load %arg5[%c31_94, %c0_95] : memref<32x32xf32, #tpu.memory_space<vmem>>, vector<1x32xf32>
    tpu.vector_store %arg5[%c31_94, %c0_95], %126 {strides = array<i32>} : memref<32x32xf32, #tpu.memory_space<vmem>>, vector<1x32xf32>,
    %c0_96 = arith.constant 0 : index
    %c0_97 = arith.constant 0 : index
    %128 = vector.load %arg5[%c0_96, %c0_97] : memref<32x32xf32, #tpu.memory_space<vmem>>, vector<32x32xf32>
    %c0_98 = arith.constant 0 : index
    %c0_99 = arith.constant 0 : index
    %129 = vector.load %arg3[%c0_98, %c0_99] : memref<52x128xf32, #tpu.memory_space<vmem>>, vector<32x32xf32>
    %130 = arith.addf %128, %129 : vector<32x32xf32>
    %131 = vector.extract_strided_slice %130 {offsets = [0, 0], sizes = [16, 32], strides = [1, 1]} : vector<32x32xf32> to vector<16x32xf32>
    %132 = vector.extract_strided_slice %131 {offsets = [0, 0], sizes = [14, 32], strides = [1, 1]} : vector<16x32xf32> to vector<14x32xf32>
    %133 = vector.extract_strided_slice %131 {offsets = [1, 0], sizes = [14, 32], strides = [1, 1]} : vector<16x32xf32> to vector<14x32xf32>
    %134 = vector.extract_strided_slice %131 {offsets = [2, 0], sizes = [14, 32], strides = [1, 1]} : vector<16x32xf32> to vector<14x32xf32>
    %135 = tpu.concatenate %132, %133, %134 in 1 : vector<14x32xf32>, vector<14x32xf32>, vector<14x32xf32> -> vector<14x96xf32>
    %136 = vector.extract_strided_slice %130 {offsets = [16, 0], sizes = [16, 32], strides = [1, 1]} : vector<32x32xf32> to vector<16x32xf32>
    %137 = vector.extract_strided_slice %136 {offsets = [0, 0], sizes = [14, 32], strides = [1, 1]} : vector<16x32xf32> to vector<14x32xf32>
    %138 = vector.extract_strided_slice %136 {offsets = [1, 0], sizes = [14, 32], strides = [1, 1]} : vector<16x32xf32> to vector<14x32xf32>
    %139 = vector.extract_strided_slice %136 {offsets = [2, 0], sizes = [14, 32], strides = [1, 1]} : vector<16x32xf32> to vector<14x32xf32>
    %140 = tpu.concatenate %137, %138, %139 in 1 : vector<14x32xf32>, vector<14x32xf32>, vector<14x32xf32> -> vector<14x96xf32>
    %141 = tpu.concatenate %135, %140 in 0 : vector<14x96xf32>, vector<14x96xf32> -> vector<28x96xf32>
    %c0_100 = arith.constant 0 : index
    %c0_101 = arith.constant 0 : index
    %142 = vector.load %arg2[%c0_100, %c0_101] : memref<480x128xf32, #tpu.memory_space<vmem>>, vector<96x32xf32>
    %cst = arith.constant dense<0.000000e+00> : vector<28x32xf32>
    %143 = tpu.matmul %141, %142, %cst {dimension_numbers = #tpu.dot_dimension_numbers<[1], [0], [0], [1], [0, 0, 1, 1], [], []>} : vector<28x96xf32>, vector<96x32xf32>, vector<28x32xf32> -> vector<28x32xf32>
    %c34 = arith.constant 34 : index
    %c0_102 = arith.constant 0 : index
    %144 = vector.load %arg3[%c34, %c0_102] : memref<52x128xf32, #tpu.memory_space<vmem>>, vector<1x32xf32>
    %145 = vector.broadcast %144 : vector<1x32xf32> to vector<28x32xf32>
    %146 = arith.addf %143, %145 : vector<28x32xf32>
    %c96 = arith.constant 96 : index
    %c0_103 = arith.constant 0 : index
    %147 = vector.load %arg2[%c96, %c0_103] : memref<480x128xf32, #tpu.memory_space<vmem>>, vector<32x32xf32>
    %c160 = arith.constant 160 : index
    %c0_104 = arith.constant 0 : index
    %148 = vector.load %arg2[%c160, %c0_104] : memref<480x128xf32, #tpu.memory_space<vmem>>, vector<32x96xf32>
    %cst_105 = arith.constant dense<0.000000e+00> : vector<28x96xf32>
    %149 = tpu.matmul %146, %148, %cst_105 {dimension_numbers = #tpu.dot_dimension_numbers<[1], [0], [0], [1], [0, 0, 1, 1], [], []>} : vector<28x32xf32>, vector<32x96xf32>, vector<28x96xf32> -> vector<28x96xf32>
    %c36 = arith.constant 36 : index
    %c0_106 = arith.constant 0 : index
    %150 = vector.load %arg3[%c36, %c0_106] : memref<52x128xf32, #tpu.memory_space<vmem>>, vector<1x96xf32>
    %151 = vector.broadcast %150 : vector<1x96xf32> to vector<28x96xf32>
    %152 = arith.addf %149, %151 : vector<28x96xf32>
    %153 = vector.extract_strided_slice %152 {offsets = [0, 0], sizes = [28, 32], strides = [1, 1]} : vector<28x96xf32> to vector<28x32xf32>
    %154 = vector.extract_strided_slice %152 {offsets = [0, 32], sizes = [28, 32], strides = [1, 1]} : vector<28x96xf32> to vector<28x32xf32>
    %155 = vector.extract_strided_slice %152 {offsets = [0, 64], sizes = [28, 32], strides = [1, 1]} : vector<28x96xf32> to vector<28x32xf32>
    %156 = vector.extract_strided_slice %154 {offsets = [0, 0], sizes = [14, 32], strides = [1, 1]} : vector<28x32xf32> to vector<14x32xf32>
    %157 = tpu.concatenate %156, %156 in 0 : vector<14x32xf32>, vector<14x32xf32> -> vector<28x32xf32>
    %158 = arith.mulf %153, %157 : vector<28x32xf32>
    %cst_107 = arith.constant dense<0.000000e+00> : vector<28x32xf32>
    %159 = tpu.matmul %158, %147, %cst_107 {dimension_numbers = #tpu.dot_dimension_numbers<[1], [0], [0], [1], [0, 0, 1, 1], [], []>} : vector<28x32xf32>, vector<32x32xf32>, vector<28x32xf32> -> vector<28x32xf32>
    %160 = vector.extract_strided_slice %154 {offsets = [14, 0], sizes = [14, 32], strides = [1, 1]} : vector<28x32xf32> to vector<14x32xf32>
    %161 = tpu.concatenate %160, %160 in 0 : vector<14x32xf32>, vector<14x32xf32> -> vector<28x32xf32>
    %162 = arith.mulf %153, %161 : vector<28x32xf32>
    %cst_108 = arith.constant dense<0.000000e+00> : vector<28x32xf32>
    %163 = tpu.matmul %162, %147, %cst_108 {dimension_numbers = #tpu.dot_dimension_numbers<[1], [0], [0], [1], [0, 0, 1, 1], [], []>} : vector<28x32xf32>, vector<32x32xf32>, vector<28x32xf32> -> vector<28x32xf32>
    %164 = arith.maximumf %159, %163 : vector<28x32xf32>
    %165 = arith.subf %159, %164 : vector<28x32xf32>
    %166 = math.exp %165 : vector<28x32xf32>
    %167 = arith.subf %163, %164 : vector<28x32xf32>
    %168 = math.exp %167 : vector<28x32xf32>
    %169 = vector.extract_strided_slice %155 {offsets = [0, 0], sizes = [14, 32], strides = [1, 1]} : vector<28x32xf32> to vector<14x32xf32>
    %170 = tpu.concatenate %169, %169 in 0 : vector<14x32xf32>, vector<14x32xf32> -> vector<28x32xf32>
    %171 = arith.mulf %166, %170 : vector<28x32xf32>
    %172 = vector.extract_strided_slice %155 {offsets = [14, 0], sizes = [14, 32], strides = [1, 1]} : vector<28x32xf32> to vector<14x32xf32>
    %173 = tpu.concatenate %172, %172 in 0 : vector<14x32xf32>, vector<14x32xf32> -> vector<28x32xf32>
    %174 = arith.addf %166, %168 : vector<28x32xf32>
    %175 = arith.mulf %168, %173 : vector<28x32xf32>
    %176 = arith.addf %171, %175 : vector<28x32xf32>
    %177 = tpu.reciprocal %174 {approx = true} : vector<28x32xf32> -> vector<28x32xf32>
    %178 = arith.mulf %176, %177 : vector<28x32xf32>
    %c192 = arith.constant 192 : index
    %c0_109 = arith.constant 0 : index
    %179 = vector.load %arg2[%c192, %c0_109] : memref<480x128xf32, #tpu.memory_space<vmem>>, vector<32x32xf32>
    %cst_110 = arith.constant dense<0.000000e+00> : vector<28x32xf32>
    %180 = tpu.matmul %178, %179, %cst_110 {dimension_numbers = #tpu.dot_dimension_numbers<[1], [0], [0], [1], [0, 0, 1, 1], [], []>} : vector<28x32xf32>, vector<32x32xf32>, vector<28x32xf32> -> vector<28x32xf32>
    %c37 = arith.constant 37 : index
    %c0_111 = arith.constant 0 : index
    %181 = vector.load %arg3[%c37, %c0_111] : memref<52x128xf32, #tpu.memory_space<vmem>>, vector<1x32xf32>
    %182 = vector.broadcast %181 : vector<1x32xf32> to vector<28x32xf32>
    %183 = arith.addf %180, %182 : vector<28x32xf32>
    %184 = arith.addf %146, %183 : vector<28x32xf32>
    %c38 = arith.constant 38 : index
    %c0_112 = arith.constant 0 : index
    %185 = vector.load %arg3[%c38, %c0_112] : memref<52x128xf32, #tpu.memory_space<vmem>>, vector<1x32xf32>
    %c39 = arith.constant 39 : index
    %c0_113 = arith.constant 0 : index
    %186 = vector.load %arg3[%c39, %c0_113] : memref<52x128xf32, #tpu.memory_space<vmem>>, vector<1x32xf32>
    %cst_114 = arith.constant dense<0.000000e+00> : vector<28xf32>
    %187 = vector.multi_reduction <add>, %184, %cst_114 [1] : vector<28x32xf32> to vector<28xf32>
    %188 = vector.shape_cast %187 : vector<28xf32> to vector<28x1xf32>
    %cst_115 = arith.constant 3.200000e+01 : f32
    %189 = vector.broadcast %cst_115 : f32 to vector<28x1xf32>
    %190 = arith.divf %188, %189 : vector<28x1xf32>
    %191 = vector.broadcast %190 : vector<28x1xf32> to vector<28x32xf32>
    %192 = arith.subf %184, %191 : vector<28x32xf32>
    %193 = arith.mulf %192, %192 : vector<28x32xf32>
    %cst_116 = arith.constant dense<0.000000e+00> : vector<28xf32>
    %194 = vector.multi_reduction <add>, %193, %cst_116 [1] : vector<28x32xf32> to vector<28xf32>
    %195 = vector.shape_cast %194 : vector<28xf32> to vector<28x1xf32>
    %cst_117 = arith.constant 3.200000e+01 : f32
    %196 = vector.broadcast %cst_117 : f32 to vector<28x1xf32>
    %197 = arith.divf %195, %196 : vector<28x1xf32>
    %cst_118 = arith.constant 9.99999974E-6 : f32
    %198 = vector.broadcast %cst_118 : f32 to vector<28x1xf32>
    %199 = arith.addf %197, %198 : vector<28x1xf32>
    %200 = math.rsqrt %199 : vector<28x1xf32>
    %201 = vector.broadcast %200 : vector<28x1xf32> to vector<28x32xf32>
    %202 = arith.mulf %192, %201 : vector<28x32xf32>
    %203 = vector.broadcast %185 : vector<1x32xf32> to vector<28x32xf32>
    %204 = arith.mulf %202, %203 : vector<28x32xf32>
    %205 = vector.broadcast %186 : vector<1x32xf32> to vector<28x32xf32>
    %206 = arith.addf %204, %205 : vector<28x32xf32>
    %c224 = arith.constant 224 : index
    %c0_119 = arith.constant 0 : index
    %207 = vector.load %arg2[%c224, %c0_119] : memref<480x128xf32, #tpu.memory_space<vmem>>, vector<32x64xf32>
    %cst_120 = arith.constant dense<0.000000e+00> : vector<28x64xf32>
    %208 = tpu.matmul %206, %207, %cst_120 {dimension_numbers = #tpu.dot_dimension_numbers<[1], [0], [0], [1], [0, 0, 1, 1], [], []>} : vector<28x32xf32>, vector<32x64xf32>, vector<28x64xf32> -> vector<28x64xf32>
    %c40 = arith.constant 40 : index
    %c0_121 = arith.constant 0 : index
    %209 = vector.load %arg3[%c40, %c0_121] : memref<52x128xf32, #tpu.memory_space<vmem>>, vector<1x64xf32>
    %210 = vector.broadcast %209 : vector<1x64xf32> to vector<28x64xf32>
    %211 = arith.addf %208, %210 : vector<28x64xf32>
    %cst_122 = arith.constant 0.000000e+00 : f32
    %212 = vector.broadcast %cst_122 : f32 to vector<28x64xf32>
    %213 = arith.maximumf %211, %212 : vector<28x64xf32>
    %c256 = arith.constant 256 : index
    %c0_123 = arith.constant 0 : index
    %214 = vector.load %arg2[%c256, %c0_123] : memref<480x128xf32, #tpu.memory_space<vmem>>, vector<64x32xf32>
    %cst_124 = arith.constant dense<0.000000e+00> : vector<28x32xf32>
    %215 = tpu.matmul %213, %214, %cst_124 {dimension_numbers = #tpu.dot_dimension_numbers<[1], [0], [0], [1], [0, 0, 1, 1], [], []>} : vector<28x64xf32>, vector<64x32xf32>, vector<28x32xf32> -> vector<28x32xf32>
    %c41 = arith.constant 41 : index
    %c0_125 = arith.constant 0 : index
    %216 = vector.load %arg3[%c41, %c0_125] : memref<52x128xf32, #tpu.memory_space<vmem>>, vector<1x32xf32>
    %217 = vector.broadcast %216 : vector<1x32xf32> to vector<28x32xf32>
    %218 = arith.addf %215, %217 : vector<28x32xf32>
    %219 = arith.addf %206, %218 : vector<28x32xf32>
    %c42 = arith.constant 42 : index
    %c0_126 = arith.constant 0 : index
    %220 = vector.load %arg3[%c42, %c0_126] : memref<52x128xf32, #tpu.memory_space<vmem>>, vector<1x32xf32>
    %c43 = arith.constant 43 : index
    %c0_127 = arith.constant 0 : index
    %221 = vector.load %arg3[%c43, %c0_127] : memref<52x128xf32, #tpu.memory_space<vmem>>, vector<1x32xf32>
    %cst_128 = arith.constant dense<0.000000e+00> : vector<28xf32>
    %222 = vector.multi_reduction <add>, %219, %cst_128 [1] : vector<28x32xf32> to vector<28xf32>
    %223 = vector.shape_cast %222 : vector<28xf32> to vector<28x1xf32>
    %cst_129 = arith.constant 3.200000e+01 : f32
    %224 = vector.broadcast %cst_129 : f32 to vector<28x1xf32>
    %225 = arith.divf %223, %224 : vector<28x1xf32>
    %226 = vector.broadcast %225 : vector<28x1xf32> to vector<28x32xf32>
    %227 = arith.subf %219, %226 : vector<28x32xf32>
    %228 = arith.mulf %227, %227 : vector<28x32xf32>
    %cst_130 = arith.constant dense<0.000000e+00> : vector<28xf32>
    %229 = vector.multi_reduction <add>, %228, %cst_130 [1] : vector<28x32xf32> to vector<28xf32>
    %230 = vector.shape_cast %229 : vector<28xf32> to vector<28x1xf32>
    %cst_131 = arith.constant 3.200000e+01 : f32
    %231 = vector.broadcast %cst_131 : f32 to vector<28x1xf32>
    %232 = arith.divf %230, %231 : vector<28x1xf32>
    %cst_132 = arith.constant 9.99999974E-6 : f32
    %233 = vector.broadcast %cst_132 : f32 to vector<28x1xf32>
    %234 = arith.addf %232, %233 : vector<28x1xf32>
    %235 = math.rsqrt %234 : vector<28x1xf32>
    %236 = vector.broadcast %235 : vector<28x1xf32> to vector<28x32xf32>
    %237 = arith.mulf %227, %236 : vector<28x32xf32>
    %238 = vector.broadcast %220 : vector<1x32xf32> to vector<28x32xf32>
    %239 = arith.mulf %237, %238 : vector<28x32xf32>
    %240 = vector.broadcast %221 : vector<1x32xf32> to vector<28x32xf32>
    %241 = arith.addf %239, %240 : vector<28x32xf32>
    %c320 = arith.constant 320 : index
    %c0_133 = arith.constant 0 : index
    %242 = vector.load %arg2[%c320, %c0_133] : memref<480x128xf32, #tpu.memory_space<vmem>>, vector<32x96xf32>
    %cst_134 = arith.constant dense<0.000000e+00> : vector<28x96xf32>
    %243 = tpu.matmul %241, %242, %cst_134 {dimension_numbers = #tpu.dot_dimension_numbers<[1], [0], [0], [1], [0, 0, 1, 1], [], []>} : vector<28x32xf32>, vector<32x96xf32>, vector<28x96xf32> -> vector<28x96xf32>
    %c44 = arith.constant 44 : index
    %c0_135 = arith.constant 0 : index
    %244 = vector.load %arg3[%c44, %c0_135] : memref<52x128xf32, #tpu.memory_space<vmem>>, vector<1x96xf32>
    %245 = vector.broadcast %244 : vector<1x96xf32> to vector<28x96xf32>
    %246 = arith.addf %243, %245 : vector<28x96xf32>
    %247 = vector.extract_strided_slice %246 {offsets = [0, 0], sizes = [28, 32], strides = [1, 1]} : vector<28x96xf32> to vector<28x32xf32>
    %248 = vector.extract_strided_slice %246 {offsets = [0, 32], sizes = [28, 32], strides = [1, 1]} : vector<28x96xf32> to vector<28x32xf32>
    %249 = vector.extract_strided_slice %246 {offsets = [0, 64], sizes = [28, 32], strides = [1, 1]} : vector<28x96xf32> to vector<28x32xf32>
    %250 = vector.extract_strided_slice %248 {offsets = [0, 0], sizes = [14, 32], strides = [1, 1]} : vector<28x32xf32> to vector<14x32xf32>
    %251 = tpu.concatenate %250, %250 in 0 : vector<14x32xf32>, vector<14x32xf32> -> vector<28x32xf32>
    %252 = arith.mulf %247, %251 : vector<28x32xf32>
    %cst_136 = arith.constant dense<0.000000e+00> : vector<28x32xf32>
    %253 = tpu.matmul %252, %147, %cst_136 {dimension_numbers = #tpu.dot_dimension_numbers<[1], [0], [0], [1], [0, 0, 1, 1], [], []>} : vector<28x32xf32>, vector<32x32xf32>, vector<28x32xf32> -> vector<28x32xf32>
    %254 = vector.extract_strided_slice %248 {offsets = [14, 0], sizes = [14, 32], strides = [1, 1]} : vector<28x32xf32> to vector<14x32xf32>
    %255 = tpu.concatenate %254, %254 in 0 : vector<14x32xf32>, vector<14x32xf32> -> vector<28x32xf32>
    %256 = arith.mulf %247, %255 : vector<28x32xf32>
    %cst_137 = arith.constant dense<0.000000e+00> : vector<28x32xf32>
    %257 = tpu.matmul %256, %147, %cst_137 {dimension_numbers = #tpu.dot_dimension_numbers<[1], [0], [0], [1], [0, 0, 1, 1], [], []>} : vector<28x32xf32>, vector<32x32xf32>, vector<28x32xf32> -> vector<28x32xf32>
    %258 = arith.maximumf %253, %257 : vector<28x32xf32>
    %259 = arith.subf %253, %258 : vector<28x32xf32>
    %260 = math.exp %259 : vector<28x32xf32>
    %261 = arith.subf %257, %258 : vector<28x32xf32>
    %262 = math.exp %261 : vector<28x32xf32>
    %263 = vector.extract_strided_slice %249 {offsets = [0, 0], sizes = [14, 32], strides = [1, 1]} : vector<28x32xf32> to vector<14x32xf32>
    %264 = tpu.concatenate %263, %263 in 0 : vector<14x32xf32>, vector<14x32xf32> -> vector<28x32xf32>
    %265 = arith.mulf %260, %264 : vector<28x32xf32>
    %266 = vector.extract_strided_slice %249 {offsets = [14, 0], sizes = [14, 32], strides = [1, 1]} : vector<28x32xf32> to vector<14x32xf32>
    %267 = tpu.concatenate %266, %266 in 0 : vector<14x32xf32>, vector<14x32xf32> -> vector<28x32xf32>
    %268 = arith.addf %260, %262 : vector<28x32xf32>
    %269 = arith.mulf %262, %267 : vector<28x32xf32>
    %270 = arith.addf %265, %269 : vector<28x32xf32>
    %271 = tpu.reciprocal %268 {approx = true} : vector<28x32xf32> -> vector<28x32xf32>
    %272 = arith.mulf %270, %271 : vector<28x32xf32>
    %c352 = arith.constant 352 : index
    %c0_138 = arith.constant 0 : index
    %273 = vector.load %arg2[%c352, %c0_138] : memref<480x128xf32, #tpu.memory_space<vmem>>, vector<32x32xf32>
    %cst_139 = arith.constant dense<0.000000e+00> : vector<28x32xf32>
    %274 = tpu.matmul %272, %273, %cst_139 {dimension_numbers = #tpu.dot_dimension_numbers<[1], [0], [0], [1], [0, 0, 1, 1], [], []>} : vector<28x32xf32>, vector<32x32xf32>, vector<28x32xf32> -> vector<28x32xf32>
    %c45 = arith.constant 45 : index
    %c0_140 = arith.constant 0 : index
    %275 = vector.load %arg3[%c45, %c0_140] : memref<52x128xf32, #tpu.memory_space<vmem>>, vector<1x32xf32>
    %276 = vector.broadcast %275 : vector<1x32xf32> to vector<28x32xf32>
    %277 = arith.addf %274, %276 : vector<28x32xf32>
    %278 = arith.addf %241, %277 : vector<28x32xf32>
    %c46 = arith.constant 46 : index
    %c0_141 = arith.constant 0 : index
    %279 = vector.load %arg3[%c46, %c0_141] : memref<52x128xf32, #tpu.memory_space<vmem>>, vector<1x32xf32>
    %c47 = arith.constant 47 : index
    %c0_142 = arith.constant 0 : index
    %280 = vector.load %arg3[%c47, %c0_142] : memref<52x128xf32, #tpu.memory_space<vmem>>, vector<1x32xf32>
    %cst_143 = arith.constant dense<0.000000e+00> : vector<28xf32>
    %281 = vector.multi_reduction <add>, %278, %cst_143 [1] : vector<28x32xf32> to vector<28xf32>
    %282 = vector.shape_cast %281 : vector<28xf32> to vector<28x1xf32>
    %cst_144 = arith.constant 3.200000e+01 : f32
    %283 = vector.broadcast %cst_144 : f32 to vector<28x1xf32>
    %284 = arith.divf %282, %283 : vector<28x1xf32>
    %285 = vector.broadcast %284 : vector<28x1xf32> to vector<28x32xf32>
    %286 = arith.subf %278, %285 : vector<28x32xf32>
    %287 = arith.mulf %286, %286 : vector<28x32xf32>
    %cst_145 = arith.constant dense<0.000000e+00> : vector<28xf32>
    %288 = vector.multi_reduction <add>, %287, %cst_145 [1] : vector<28x32xf32> to vector<28xf32>
    %289 = vector.shape_cast %288 : vector<28xf32> to vector<28x1xf32>
    %cst_146 = arith.constant 3.200000e+01 : f32
    %290 = vector.broadcast %cst_146 : f32 to vector<28x1xf32>
    %291 = arith.divf %289, %290 : vector<28x1xf32>
    %cst_147 = arith.constant 9.99999974E-6 : f32
    %292 = vector.broadcast %cst_147 : f32 to vector<28x1xf32>
    %293 = arith.addf %291, %292 : vector<28x1xf32>
    %294 = math.rsqrt %293 : vector<28x1xf32>
    %295 = vector.broadcast %294 : vector<28x1xf32> to vector<28x32xf32>
    %296 = arith.mulf %286, %295 : vector<28x32xf32>
    %297 = vector.broadcast %279 : vector<1x32xf32> to vector<28x32xf32>
    %298 = arith.mulf %296, %297 : vector<28x32xf32>
    %299 = vector.broadcast %280 : vector<1x32xf32> to vector<28x32xf32>
    %300 = arith.addf %298, %299 : vector<28x32xf32>
    %c384 = arith.constant 384 : index
    %c0_148 = arith.constant 0 : index
    %301 = vector.load %arg2[%c384, %c0_148] : memref<480x128xf32, #tpu.memory_space<vmem>>, vector<32x64xf32>
    %cst_149 = arith.constant dense<0.000000e+00> : vector<28x64xf32>
    %302 = tpu.matmul %300, %301, %cst_149 {dimension_numbers = #tpu.dot_dimension_numbers<[1], [0], [0], [1], [0, 0, 1, 1], [], []>} : vector<28x32xf32>, vector<32x64xf32>, vector<28x64xf32> -> vector<28x64xf32>
    %c48 = arith.constant 48 : index
    %c0_150 = arith.constant 0 : index
    %303 = vector.load %arg3[%c48, %c0_150] : memref<52x128xf32, #tpu.memory_space<vmem>>, vector<1x64xf32>
    %304 = vector.broadcast %303 : vector<1x64xf32> to vector<28x64xf32>
    %305 = arith.addf %302, %304 : vector<28x64xf32>
    %cst_151 = arith.constant 0.000000e+00 : f32
    %306 = vector.broadcast %cst_151 : f32 to vector<28x64xf32>
    %307 = arith.maximumf %305, %306 : vector<28x64xf32>
    %c416 = arith.constant 416 : index
    %c0_152 = arith.constant 0 : index
    %308 = vector.load %arg2[%c416, %c0_152] : memref<480x128xf32, #tpu.memory_space<vmem>>, vector<64x32xf32>
    %cst_153 = arith.constant dense<0.000000e+00> : vector<28x32xf32>
    %309 = tpu.matmul %307, %308, %cst_153 {dimension_numbers = #tpu.dot_dimension_numbers<[1], [0], [0], [1], [0, 0, 1, 1], [], []>} : vector<28x64xf32>, vector<64x32xf32>, vector<28x32xf32> -> vector<28x32xf32>
    %c49 = arith.constant 49 : index
    %c0_154 = arith.constant 0 : index
    %310 = vector.load %arg3[%c49, %c0_154] : memref<52x128xf32, #tpu.memory_space<vmem>>, vector<1x32xf32>
    %311 = vector.broadcast %310 : vector<1x32xf32> to vector<28x32xf32>
    %312 = arith.addf %309, %311 : vector<28x32xf32>
    %313 = arith.addf %300, %312 : vector<28x32xf32>
    %c50 = arith.constant 50 : index
    %c0_155 = arith.constant 0 : index
    %314 = vector.load %arg3[%c50, %c0_155] : memref<52x128xf32, #tpu.memory_space<vmem>>, vector<1x32xf32>
    %c51 = arith.constant 51 : index
    %c0_156 = arith.constant 0 : index
    %315 = vector.load %arg3[%c51, %c0_156] : memref<52x128xf32, #tpu.memory_space<vmem>>, vector<1x32xf32>
    %cst_157 = arith.constant dense<0.000000e+00> : vector<28xf32>
    %316 = vector.multi_reduction <add>, %313, %cst_157 [1] : vector<28x32xf32> to vector<28xf32>
    %317 = vector.shape_cast %316 : vector<28xf32> to vector<28x1xf32>
    %cst_158 = arith.constant 3.200000e+01 : f32
    %318 = vector.broadcast %cst_158 : f32 to vector<28x1xf32>
    %319 = arith.divf %317, %318 : vector<28x1xf32>
    %320 = vector.broadcast %319 : vector<28x1xf32> to vector<28x32xf32>
    %321 = arith.subf %313, %320 : vector<28x32xf32>
    %322 = arith.mulf %321, %321 : vector<28x32xf32>
    %cst_159 = arith.constant dense<0.000000e+00> : vector<28xf32>
    %323 = vector.multi_reduction <add>, %322, %cst_159 [1] : vector<28x32xf32> to vector<28xf32>
    %324 = vector.shape_cast %323 : vector<28xf32> to vector<28x1xf32>
    %cst_160 = arith.constant 3.200000e+01 : f32
    %325 = vector.broadcast %cst_160 : f32 to vector<28x1xf32>
    %326 = arith.divf %324, %325 : vector<28x1xf32>
    %cst_161 = arith.constant 9.99999974E-6 : f32
    %327 = vector.broadcast %cst_161 : f32 to vector<28x1xf32>
    %328 = arith.addf %326, %327 : vector<28x1xf32>
    %329 = math.rsqrt %328 : vector<28x1xf32>
    %330 = vector.broadcast %329 : vector<28x1xf32> to vector<28x32xf32>
    %331 = arith.mulf %321, %330 : vector<28x32xf32>
    %332 = vector.broadcast %314 : vector<1x32xf32> to vector<28x32xf32>
    %333 = arith.mulf %331, %332 : vector<28x32xf32>
    %334 = vector.broadcast %315 : vector<1x32xf32> to vector<28x32xf32>
    %335 = arith.addf %333, %334 : vector<28x32xf32>
    %c32 = arith.constant 32 : index
    %c0_162 = arith.constant 0 : index
    %336 = vector.load %arg3[%c32, %c0_162] : memref<52x128xf32, #tpu.memory_space<vmem>>, vector<2x28xf32>
    %cst_163 = arith.constant dense<0.000000e+00> : vector<2x32xf32>
    %337 = tpu.matmul %336, %335, %cst_163 {dimension_numbers = #tpu.dot_dimension_numbers<[1], [0], [0], [1], [0, 0, 1, 1], [], []>} : vector<2x28xf32>, vector<28x32xf32>, vector<2x32xf32> -> vector<2x32xf32>
    %c128 = arith.constant 128 : index
    %c0_164 = arith.constant 0 : index
    %338 = vector.load %arg2[%c128, %c0_164] : memref<480x128xf32, #tpu.memory_space<vmem>>, vector<32x8xf32>
    %cst_165 = arith.constant dense<0.000000e+00> : vector<2x8xf32>
    %339 = tpu.matmul %337, %338, %cst_165 {dimension_numbers = #tpu.dot_dimension_numbers<[1], [0], [0], [1], [0, 0, 1, 1], [], []>} : vector<2x32xf32>, vector<32x8xf32>, vector<2x8xf32> -> vector<2x8xf32>
    %c35 = arith.constant 35 : index
    %c0_166 = arith.constant 0 : index
    %340 = vector.load %arg3[%c35, %c0_166] : memref<52x128xf32, #tpu.memory_space<vmem>>, vector<1x8xf32>
    %341 = vector.broadcast %340 : vector<1x8xf32> to vector<2x8xf32>
    %342 = arith.addf %339, %341 : vector<2x8xf32>
    %c0_167 = arith.constant 0 : index
    %c0_168 = arith.constant 0 : index
    %343 = vector.load %arg4[%c0_167, %c0_168] : memref<2x8xf32, #tpu.memory_space<vmem>>, vector<2x8xf32>
    tpu.vector_store %arg4[%c0_167, %c0_168], %342 {strides = array<i32>} : memref<2x8xf32, #tpu.memory_space<vmem>>, vector<2x8xf32>,
    return
  }
}

</mosaic_0001>

<llo_original>
// kernel: forward_pallas.1
$region0: #{forward_pallas.1}
  #allocation0 [shape = 'u32[]', space=smem, size = 0x4, offset = 0x4, fixed_abs, tag = 'smem constant byte address 0x4 - core index']
  #allocation1 [shape = 'u32[144,128]{1,0:T(1,128)}', space=vmem, size = 0x12000, scoped, tag = 'internal scratch']
  #allocation2 [shape = 'f32[32,32]{1,0:T(8,128)}', space=vmem, size = 0x4000, scoped, tag = 'scratch operand']
  %s0 = inlined_call_operand.vmem [shape: s32[32], index: 0, kind: input, shape index: {}]
  %s1 = inlined_call_operand.vmem [shape: f32[50,32], index: 1, kind: input, shape index: {}]
  %s2 = inlined_call_operand.hbm [shape: f32[480,128], index: 2, kind: input, shape index: {}]
  %s3 = inlined_call_operand.vmem [shape: f32[52,128], index: 3, kind: input, shape index: {}]
  %s4 = inlined_call_operand.hbm [shape: f32[2,8], index: 4, kind: output, shape index: {}]
  %s5 = sld [smem:[#allocation0]]
  $region34: #{forward_pallas.1} parent=0
    _
  %s7 = ssub.s32 1, %s5
  %s8 = scalar_select 0, %s7, %s5
  $region1: #{forward_pallas.1} parent=0
    #allocation3 [shape = 'u8[512]{0}', space=smem, size = 0x200, scoped, tag = 'input window, operand 0, single buffered']
    #allocation4 [shape = 's32[1]{0}', space=sflag, size = 0x4, scoped, tag = 'scoped memory for forward_pallas.1']
    #allocation5 [shape = 's32[1]{0}', space=sflag, size = 0x4, scoped, tag = 'scoped memory for forward_pallas.1']
    #allocation6 [shape = 's32[1]{0}', space=sflag, size = 0x4, scoped, tag = 'scoped memory for forward_pallas.1']
    #allocation7 [shape = 'u8[245760]{0}', space=vmem, size = 0x3c000, scoped, tag = 'input window, operand 2, single buffered']
    #allocation8 [shape = 'u8[1024]{0}', space=vmem, size = 0x400, scoped, tag = 'output window, operand 0, single buffered']
    %9 = vsyncpa [#allocation6], 0
    %10 = vsyncpa [#allocation4], 0
    %11 = vsyncpa [#allocation5], 0
    // Predicated region
    $region2: #{forward_pallas.1} parent=1 // pred_check
      _
    $region3: #{forward_pallas.1} parent=1 // pred_check_branch
      %13 = sbr.rel (0) target = $region5
    $region4: #{forward_pallas.1} parent=1 // pred_region
      %s15 = ssub.s32 16, 16
      %16 = vsyncadd [#allocation6], %s15
      %s18 = sshll.u32 %s0, 4
      %s19 = int_to_ptr.vmem [resolvable:$true] %s18
      %21 = dma.vmem_to_smem %s19, 16, [#allocation3], [#allocation6]
    $region5: #{forward_pallas.1} parent=1 // pred_fallthru
      _
    // Predicated region
    $region6: #{forward_pallas.1} parent=1 // pred_check
      _
    $region7: #{forward_pallas.1} parent=1 // pred_check_branch
      %23 = sbr.rel (0) target = $region9
    $region8: #{forward_pallas.1} parent=1 // pred_region
      _
    $region9: #{forward_pallas.1} parent=1 // pred_fallthru
      _
    // Predicated region
    $region10: #{forward_pallas.1} parent=1 // pred_check
      _
    $region11: #{forward_pallas.1} parent=1 // pred_check_branch
      %25 = sbr.rel (0) target = $region13
    $region12: #{forward_pallas.1} parent=1 // pred_region
      %s27 = ssub.s32 7680, 7680
      %28 = vsyncadd [#allocation4], %s27
      %s29 = sshll.u32 [#allocation7], 4
      %s30 = int_to_ptr.vmem [resolvable:$true] %s29
      %35 = dma.hbm_to_vmem [thread:$0]  %s2, 7680, %s30, [#allocation4], 128, 128, 8
    $region13: #{forward_pallas.1} parent=1 // pred_fallthru
      _
    // Predicated region
    $region14: #{forward_pallas.1} parent=1 // pred_check
      _
    $region15: #{forward_pallas.1} parent=1 // pred_check_branch
      %37 = sbr.rel (0) target = $region17
    $region16: #{forward_pallas.1} parent=1 // pred_region
      _
    $region17: #{forward_pallas.1} parent=1 // pred_fallthru
      _
    // Predicated region
    $region18: #{forward_pallas.1} parent=1 // pred_check
      _
    $region19: #{forward_pallas.1} parent=1 // pred_check_branch
      %39 = sbr.rel (0) target = $region21
    $region20: #{forward_pallas.1} parent=1 // pred_region
      %40 = dma.done [#allocation6], 16
    $region21: #{forward_pallas.1} parent=1 // pred_fallthru
      _
    // Predicated region
    $region22: #{forward_pallas.1} parent=1 // pred_check
      _
    $region23: #{forward_pallas.1} parent=1 // pred_check_branch
      %42 = sbr.rel (0) target = $region25
    $region24: #{forward_pallas.1} parent=1 // pred_region
      %43 = dma.done [#allocation4], 7680
    $region25: #{forward_pallas.1} parent=1 // pred_fallthru
      _
    %44 = sfence
    %s45 = sld [smem:[#allocation3]]
    %s46 = scalar_lea.vmem %s1, %s45
    %v47 = vld [vmem:[%s46] sm:$0x1]
    %vm48 = vcmask 253952
    %49 = vst.msk [vmem:[#allocation2] sm:$0x1] %vm48, %v47
    %s50 = sld [smem:[#allocation3 + $0x1]]
    %s51 = scalar_lea.vmem %s1, %s50
    %v52 = vld [vmem:[%s51] sm:$0x1]
    %53 = vst.msk [vmem:[#allocation2 + $0x1] sm:$0x1] %vm48, %v52
    %s54 = sld [smem:[#allocation3 + $0x2]]
    %s55 = scalar_lea.vmem %s1, %s54
    %v56 = vld [vmem:[%s55] sm:$0x1]
    %57 = vst.msk [vmem:[#allocation2 + $0x2] sm:$0x1] %vm48, %v56
    %s58 = sld [smem:[#allocation3 + $0x3]]
    %s59 = scalar_lea.vmem %s1, %s58
    %v60 = vld [vmem:[%s59] sm:$0x1]
    %61 = vst.msk [vmem:[#allocation2 + $0x3] sm:$0x1] %vm48, %v60
    %s62 = sld [smem:[#allocation3 + $0x4]]
    %s63 = scalar_lea.vmem %s1, %s62
    %v64 = vld [vmem:[%s63] sm:$0x1]
    %65 = vst.msk [vmem:[#allocation2 + $0x4] sm:$0x1] %vm48, %v64
    %s66 = sld [smem:[#allocation3 + $0x5]]
    %s67 = scalar_lea.vmem %s1, %s66
    %v68 = vld [vmem:[%s67] sm:$0x1]
    %69 = vst.msk [vmem:[#allocation2 + $0x5] sm:$0x1] %vm48, %v68
    %s70 = sld [smem:[#allocation3 + $0x6]]
    %s71 = scalar_lea.vmem %s1, %s70
    %v72 = vld [vmem:[%s71] sm:$0x1]
    %73 = vst.msk [vmem:[#allocation2 + $0x6] sm:$0x1] %vm48, %v72
    %s74 = sld [smem:[#allocation3 + $0x7]]
    %s75 = scalar_lea.vmem %s1, %s74
    %v76 = vld [vmem:[%s75] sm:$0x1]
    %77 = vst.msk [vmem:[#allocation2 + $0x7] sm:$0x1] %vm48, %v76
    %s78 = sld [smem:[#allocation3 + $0x8]]
    %s79 = scalar_lea.vmem %s1, %s78
    %v80 = vld [vmem:[%s79] sm:$0x1]
    %81 = vst.msk [vmem:[#allocation2 + $0x8] sm:$0x1] %vm48, %v80
    %s82 = sld [smem:[#allocation3 + $0x9]]
    %s83 = scalar_lea.vmem %s1, %s82
    %v84 = vld [vmem:[%s83] sm:$0x1]
    %85 = vst.msk [vmem:[#allocation2 + $0x9] sm:$0x1] %vm48, %v84
    %s86 = sld [smem:[#allocation3 + $0xa]]
    %s87 = scalar_lea.vmem %s1, %s86
    %v88 = vld [vmem:[%s87] sm:$0x1]
    %89 = vst.msk [vmem:[#allocation2 + $0xa] sm:$0x1] %vm48, %v88
    %s90 = sld [smem:[#allocation3 + $0xb]]
    %s91 = scalar_lea.vmem %s1, %s90
    %v92 = vld [vmem:[%s91] sm:$0x1]
    %93 = vst.msk [vmem:[#allocation2 + $0xb] sm:$0x1] %vm48, %v92
    %s94 = sld [smem:[#allocation3 + $0xc]]
    %s95 = scalar_lea.vmem %s1, %s94
    %v96 = vld [vmem:[%s95] sm:$0x1]
    %97 = vst.msk [vmem:[#allocation2 + $0xc] sm:$0x1] %vm48, %v96
    %s98 = sld [smem:[#allocation3 + $0xd]]
    %s99 = scalar_lea.vmem %s1, %s98
    %v100 = vld [vmem:[%s99] sm:$0x1]
    %101 = vst.msk [vmem:[#allocation2 + $0xd] sm:$0x1] %vm48, %v100
    %s102 = sld [smem:[#allocation3 + $0xe]]
    %s103 = scalar_lea.vmem %s1, %s102
    %v104 = vld [vmem:[%s103] sm:$0x1]
    %105 = vst.msk [vmem:[#allocation2 + $0xe] sm:$0x1] %vm48, %v104
    %s106 = sld [smem:[#allocation3 + $0xf]]
    %s107 = scalar_lea.vmem %s1, %s106
    %v108 = vld [vmem:[%s107] sm:$0x1]
    %109 = vst.msk [vmem:[#allocation2 + $0xf] sm:$0x1] %vm48, %v108
    %s110 = sld [smem:[#allocation3 + $0x10]]
    %s111 = scalar_lea.vmem %s1, %s110
    %v112 = vld [vmem:[%s111] sm:$0x1]
    %113 = vst.msk [vmem:[#allocation2 + $0x10] sm:$0x1] %vm48, %v112
    %s114 = sld [smem:[#allocation3 + $0x11]]
    %s115 = scalar_lea.vmem %s1, %s114
    %v116 = vld [vmem:[%s115] sm:$0x1]
    %117 = vst.msk [vmem:[#allocation2 + $0x11] sm:$0x1] %vm48, %v116
    %s118 = sld [smem:[#allocation3 + $0x12]]
    %s119 = scalar_lea.vmem %s1, %s118
    %v120 = vld [vmem:[%s119] sm:$0x1]
    %121 = vst.msk [vmem:[#allocation2 + $0x12] sm:$0x1] %vm48, %v120
    %s122 = sld [smem:[#allocation3 + $0x13]]
    %s123 = scalar_lea.vmem %s1, %s122
    %v124 = vld [vmem:[%s123] sm:$0x1]
    %125 = vst.msk [vmem:[#allocation2 + $0x13] sm:$0x1] %vm48, %v124
    %s126 = sld [smem:[#allocation3 + $0x14]]
    %s127 = scalar_lea.vmem %s1, %s126
    %v128 = vld [vmem:[%s127] sm:$0x1]
    %129 = vst.msk [vmem:[#allocation2 + $0x14] sm:$0x1] %vm48, %v128
    %s130 = sld [smem:[#allocation3 + $0x15]]
    %s131 = scalar_lea.vmem %s1, %s130
    %v132 = vld [vmem:[%s131] sm:$0x1]
    %133 = vst.msk [vmem:[#allocation2 + $0x15] sm:$0x1] %vm48, %v132
    %s134 = sld [smem:[#allocation3 + $0x16]]
    %s135 = scalar_lea.vmem %s1, %s134
    %v136 = vld [vmem:[%s135] sm:$0x1]
    %137 = vst.msk [vmem:[#allocation2 + $0x16] sm:$0x1] %vm48, %v136
    %s138 = sld [smem:[#allocation3 + $0x17]]
    %s139 = scalar_lea.vmem %s1, %s138
    %v140 = vld [vmem:[%s139] sm:$0x1]
    %141 = vst.msk [vmem:[#allocation2 + $0x17] sm:$0x1] %vm48, %v140
    %s142 = sld [smem:[#allocation3 + $0x18]]
    %s143 = scalar_lea.vmem %s1, %s142
    %v144 = vld [vmem:[%s143] sm:$0x1]
    %145 = vst.msk [vmem:[#allocation2 + $0x18] sm:$0x1] %vm48, %v144
    %s146 = sld [smem:[#allocation3 + $0x19]]
    %s147 = scalar_lea.vmem %s1, %s146
    %v148 = vld [vmem:[%s147] sm:$0x1]
    %149 = vst.msk [vmem:[#allocation2 + $0x19] sm:$0x1] %vm48, %v148
    %s150 = sld [smem:[#allocation3 + $0x1a]]
    %s151 = scalar_lea.vmem %s1, %s150
    %v152 = vld [vmem:[%s151] sm:$0x1]
    %153 = vst.msk [vmem:[#allocation2 + $0x1a] sm:$0x1] %vm48, %v152
    %s154 = sld [smem:[#allocation3 + $0x1b]]
    %s155 = scalar_lea.vmem %s1, %s154
    %v156 = vld [vmem:[%s155] sm:$0x1]
    %157 = vst.msk [vmem:[#allocation2 + $0x1b] sm:$0x1] %vm48, %v156
    %s158 = sld [smem:[#allocation3 + $0x1c]]
    %s159 = scalar_lea.vmem %s1, %s158
    %v160 = vld [vmem:[%s159] sm:$0x1]
    %161 = vst.msk [vmem:[#allocation2 + $0x1c] sm:$0x1] %vm48, %v160
    %s162 = sld [smem:[#allocation3 + $0x1d]]
    %s163 = scalar_lea.vmem %s1, %s162
    %v164 = vld [vmem:[%s163] sm:$0x1]
    %165 = vst.msk [vmem:[#allocation2 + $0x1d] sm:$0x1] %vm48, %v164
    %s166 = sld [smem:[#allocation3 + $0x1e]]
    %s167 = scalar_lea.vmem %s1, %s166
    %v168 = vld [vmem:[%s167] sm:$0x1]
    %169 = vst.msk [vmem:[#allocation2 + $0x1e] sm:$0x1] %vm48, %v168
    %s170 = sld [smem:[#allocation3 + $0x1f]]
    %s171 = scalar_lea.vmem %s1, %s170
    %v172 = vld [vmem:[%s171] sm:$0x1]
    %173 = vst.msk [vmem:[#allocation2 + $0x1f] sm:$0x1] %vm48, %v172
    %v174 = vld [vmem:[#allocation2] sm:$0xff]
    %v175 = vld [vmem:[#allocation2 + $0x8] sm:$0xff]
    %v176 = vld [vmem:[#allocation2 + $0x10] sm:$0xff]
    %v177 = vld [vmem:[#allocation2 + $0x18] sm:$0xff]
    %v178 = vld [vmem:[%s3] sm:$0xff]
    %v179 = vld [vmem:[%s3 + $0x8] sm:$0xff]
    %v180 = vld [vmem:[%s3 + $0x10] sm:$0xff]
    %v181 = vld [vmem:[%s3 + $0x18] sm:$0xff]
    %v182 = vadd.f32 %v174, %v178
    %v183 = vadd.f32 %v175, %v179
    %v184 = vadd.f32 %v176, %v180
    %v185 = vadd.f32 %v177, %v181
    %vm188 = vcmask 1046528
    %v189 = vrot.slane %v182, 1
    %v190 = vrot.slane %v183, 1
    %v191 = vsel %vm188, %v189, %v190
    %192 = vrot.lane.b32.xlu0 %v191, 32
    %v193 = vpop.permute.xlu0 %192
    %194 = vrot.lane.b32.xlu0 %v190, 32
    %v195 = vpop.permute.xlu0 %194
    %vm198 = vcmask 1045504
    %v199 = vrot.slane %v182, 2
    %v200 = vrot.slane %v183, 2
    %v201 = vsel %vm198, %v199, %v200
    %202 = vrot.lane.b32.xlu0 %v201, 64
    %v203 = vpop.permute.xlu0 %202
    %204 = vrot.lane.b32.xlu0 %v200, 64
    %v205 = vpop.permute.xlu0 %204
    %vm208 = vcmask 261120
    %v209 = vsel %vm208, %v182, %v193
    %v210 = vsel %vm208, %v183, %v195
    %vm211 = vcmask 523264
    %v212 = vsel %vm211, %v209, %v203
    %v213 = vsel %vm211, %v210, %v205
    %v216 = vrot.slane %v184, 1
    %v217 = vrot.slane %v185, 1
    %v218 = vsel %vm188, %v216, %v217
    %219 = vrot.lane.b32.xlu0 %v218, 32
    %v220 = vpop.permute.xlu0 %219
    %221 = vrot.lane.b32.xlu0 %v217, 32
    %v222 = vpop.permute.xlu0 %221
    %v225 = vrot.slane %v184, 2
    %v226 = vrot.slane %v185, 2
    %v227 = vsel %vm198, %v225, %v226
    %228 = vrot.lane.b32.xlu0 %v227, 64
    %v229 = vpop.permute.xlu0 %228
    %230 = vrot.lane.b32.xlu0 %v226, 64
    %v231 = vpop.permute.xlu0 %230
    %v234 = vsel %vm208, %v184, %v220
    %v235 = vsel %vm208, %v185, %v222
    %v236 = vsel %vm211, %v234, %v229
    %v237 = vsel %vm211, %v235, %v231
    %v240 = vrot.slane %v236, 2
    %v241 = vrot.slane %v237, 2
    %v242 = vsel %vm198, %v240, %v241
    %v244 = vsel %vm198, %v213, %v240
    %v245 = vld [vmem:[#allocation7] sm:$0xff]
    %v246 = vld [vmem:[#allocation7 + $0x8] sm:$0xff]
    %v247 = vld [vmem:[#allocation7 + $0x10] sm:$0xff]
    %v248 = vld [vmem:[#allocation7 + $0x18] sm:$0xff]
    %v249 = vld [vmem:[#allocation7 + $0x20] sm:$0xff]
    %v250 = vld [vmem:[#allocation7 + $0x28] sm:$0xff]
    %v251 = vld [vmem:[#allocation7 + $0x30] sm:$0xff]
    %v252 = vld [vmem:[#allocation7 + $0x38] sm:$0xff]
    %v253 = vld [vmem:[#allocation7 + $0x40] sm:$0xff]
    %v254 = vld [vmem:[#allocation7 + $0x48] sm:$0xff]
    %v255 = vld [vmem:[#allocation7 + $0x50] sm:$0xff]
    %v256 = vld [vmem:[#allocation7 + $0x58] sm:$0xff]
    %v257 = vld [vmem:[%s3 + $0x22] sm:$0x1]
    %v258 = vlaneseq
    %v259 = vshrl.u32 %v258, 7
    %v260 = vsub.s32 0, %v259
    %v261 = vrot.slane %v257, %v260
    %vm262 = vcmask 785408
    %v264 = vsel %vm262, %v212, 0
    %v267 = vsel %vm262, %v244, 0
    %v269 = vsel %vm262, %v242, 0
    %v271 = vsel %vm262, %v241, 0
    %273 = vmatprep.subr.mxu0 0.0
    %274 = vmatpush1.msra.mxu0 0.0
    %275 = vmatprep.subr.mxu0 0.0
    %276 = vmatpush1.msra.mxu0 0.0
    %277 = vmatprep.subr.mxu0 0.0
    %278 = vmatpush1.msra.mxu0 0.0
    %279 = vmatprep.subr.mxu0 0.0
    %280 = vmatpush1.msra.mxu0 0.0
    %281 = vmatprep.subr.mxu0 0.0
    %282 = vmatpush1.msra.mxu0 %v256
    %283 = vmatprep.subr.mxu0 0.0
    %284 = vmatpush1.msra.mxu0 %v255
    %285 = vmatprep.subr.mxu0 0.0
    %286 = vmatpush1.msra.mxu0 %v254
    %287 = vmatprep.subr.mxu0 0.0
    %288 = vmatpush1.msra.mxu0 %v253
    %289 = vmatprep.subr.mxu0 0.0
    %290 = vmatpush1.msra.mxu0 %v252
    %291 = vmatprep.subr.mxu0 0.0
    %292 = vmatpush1.msra.mxu0 %v251
    %293 = vmatprep.subr.mxu0 0.0
    %294 = vmatpush1.msra.mxu0 %v250
    %295 = vmatprep.subr.mxu0 0.0
    %296 = vmatpush1.msra.mxu0 %v249
    %297 = vmatprep.subr.mxu0 0.0
    %298 = vmatpush1.msra.mxu0 %v248
    %299 = vmatprep.subr.mxu0 0.0
    %300 = vmatpush1.msra.mxu0 %v247
    %301 = vmatprep.subr.mxu0 0.0
    %302 = vmatpush1.msra.mxu0 %v246
    %303 = vmatprep.subr.mxu0 0.0
    %304 = vmatpush1.msra.mxu0 %v245
    %305 = vmatprep.subr.mxu0 0.0
    %306 = vmatpush2.msra.mxu0 0.0
    %307 = vmatprep.subr.mxu0 0.0
    %308 = vmatpush2.msra.mxu0 0.0
    %309 = vmatprep.subr.mxu0 0.0
    %310 = vmatpush2.msra.mxu0 0.0
    %311 = vmatprep.subr.mxu0 0.0
    %312 = vmatpush2.msra.mxu0 0.0
    %313 = vmatprep.subr.mxu0 0.0
    %314 = vmatpush2.msra.mxu0 0.0
    %315 = vmatprep.subr.mxu0 0.0
    %316 = vmatpush2.msra.mxu0 0.0
    %317 = vmatprep.subr.mxu0 0.0
    %318 = vmatpush2.msra.mxu0 0.0
    %319 = vmatprep.subr.mxu0 0.0
    %320 = vmatpush2.msra.mxu0 0.0
    %321 = vmatprep.subr.mxu0 0.0
    %322 = vmatpush2.msra.mxu0 0.0
    %323 = vmatprep.subr.mxu0 0.0
    %324 = vmatpush2.msra.mxu0 0.0
    %325 = vmatprep.subr.mxu0 0.0
    %326 = vmatpush2.msra.mxu0 0.0
    %327 = vmatprep.subr.mxu0 0.0
    %328 = vmatpush2.msra.mxu0 0.0
    %329 = vmatprep.subr.mxu0 0.0
    %330 = vmatpush2.msra.mxu0 0.0
    %331 = vmatprep.subr.mxu0 0.0
    %332 = vmatpush2.msra.mxu0 0.0
    %333 = vmatprep.subr.mxu0 0.0
    %334 = vmatpush2.msra.mxu0 0.0
    %335 = vmatprep.subr.mxu0 0.0
    %336 = vmatpush2.msra.mxu0 0.0
    %337 = vmatprep.mubr.f32.mxu0 0.0
    %338 = vmatmul.mubr.f32.gmra.mxu0 %v264
    %v339 = vpop.f32.mrf.mxu0
    %v340 = vadd.f32 %v261, %v339
    %v341 = vpop.f32.mrf.mxu0
    %342 = vmatprep.mubr.f32.mxu0 0.0
    %343 = vmatmul.mubr.f32.gmra.mxu0 %v267
    %v344 = vpop.f32.mrf.mxu0
    %v345 = vadd.f32 %v261, %v344
    %v346 = vpop.f32.mrf.mxu0
    %347 = vmatprep.mubr.f32.mxu0 0.0
    %348 = vmatmul.mubr.f32.gmra.mxu0 %v269
    %v349 = vpop.f32.mrf.mxu0
    %v350 = vadd.f32 %v261, %v349
    %v351 = vpop.f32.mrf.mxu0
    %352 = vmatprep.mubr.f32.mxu0 0.0
    %353 = vmatmul.mubr.f32.gmra.mxu0 %v271
    %v354 = vpop.f32.mrf.mxu0
    %v355 = vadd.f32 %v261, %v354
    %v356 = vpop.f32.mrf.mxu0
    %357 = vdwg.mxu0
    %v358 = vld [vmem:[#allocation7 + $0x60] sm:$0xff]
    %v359 = vld [vmem:[#allocation7 + $0x68] sm:$0xff]
    %v360 = vld [vmem:[#allocation7 + $0x70] sm:$0xff]
    %v361 = vld [vmem:[#allocation7 + $0x78] sm:$0xff]
    %v362 = vld [vmem:[#allocation7 + $0xa0] sm:$0xff]
    %v363 = vld [vmem:[#allocation7 + $0xa8] sm:$0xff]
    %v364 = vld [vmem:[#allocation7 + $0xb0] sm:$0xff]
    %v365 = vld [vmem:[#allocation7 + $0xb8] sm:$0xff]
    %v366 = vld [vmem:[%s3 + $0x24] sm:$0x1]
    %v367 = vlaneseq
    %v368 = vshrl.u32 %v367, 7
    %v369 = vsub.s32 0, %v368
    %v370 = vrot.slane %v366, %v369
    %v372 = vsel %vm208, %v340, 0
    %v375 = vsel %vm208, %v345, 0
    %v378 = vsel %vm208, %v350, 0
    %v381 = vsel %vm208, %v355, 0
    %383 = vmatprep.subr.mxu0 0.0
    %384 = vmatpush1.msra.mxu0 0.0
    %385 = vmatprep.subr.mxu0 0.0
    %386 = vmatpush1.msra.mxu0 0.0
    %387 = vmatprep.subr.mxu0 0.0
    %388 = vmatpush1.msra.mxu0 0.0
    %389 = vmatprep.subr.mxu0 0.0
    %390 = vmatpush1.msra.mxu0 0.0
    %391 = vmatprep.subr.mxu0 0.0
    %392 = vmatpush1.msra.mxu0 0.0
    %393 = vmatprep.subr.mxu0 0.0
    %394 = vmatpush1.msra.mxu0 0.0
    %395 = vmatprep.subr.mxu0 0.0
    %396 = vmatpush1.msra.mxu0 0.0
    %397 = vmatprep.subr.mxu0 0.0
    %398 = vmatpush1.msra.mxu0 0.0
    %399 = vmatprep.subr.mxu0 0.0
    %400 = vmatpush1.msra.mxu0 0.0
    %401 = vmatprep.subr.mxu0 0.0
    %402 = vmatpush1.msra.mxu0 0.0
    %403 = vmatprep.subr.mxu0 0.0
    %404 = vmatpush1.msra.mxu0 0.0
    %405 = vmatprep.subr.mxu0 0.0
    %406 = vmatpush1.msra.mxu0 0.0
    %407 = vmatprep.subr.mxu0 0.0
    %408 = vmatpush1.msra.mxu0 %v365
    %409 = vmatprep.subr.mxu0 0.0
    %410 = vmatpush1.msra.mxu0 %v364
    %411 = vmatprep.subr.mxu0 0.0
    %412 = vmatpush1.msra.mxu0 %v363
    %413 = vmatprep.subr.mxu0 0.0
    %414 = vmatpush1.msra.mxu0 %v362
    %415 = vmatprep.subr.mxu0 0.0
    %416 = vmatpush2.msra.mxu0 0.0
    %417 = vmatprep.subr.mxu0 0.0
    %418 = vmatpush2.msra.mxu0 0.0
    %419 = vmatprep.subr.mxu0 0.0
    %420 = vmatpush2.msra.mxu0 0.0
    %421 = vmatprep.subr.mxu0 0.0
    %422 = vmatpush2.msra.mxu0 0.0
    %423 = vmatprep.subr.mxu0 0.0
    %424 = vmatpush2.msra.mxu0 0.0
    %425 = vmatprep.subr.mxu0 0.0
    %426 = vmatpush2.msra.mxu0 0.0
    %427 = vmatprep.subr.mxu0 0.0
    %428 = vmatpush2.msra.mxu0 0.0
    %429 = vmatprep.subr.mxu0 0.0
    %430 = vmatpush2.msra.mxu0 0.0
    %431 = vmatprep.subr.mxu0 0.0
    %432 = vmatpush2.msra.mxu0 0.0
    %433 = vmatprep.subr.mxu0 0.0
    %434 = vmatpush2.msra.mxu0 0.0
    %435 = vmatprep.subr.mxu0 0.0
    %436 = vmatpush2.msra.mxu0 0.0
    %437 = vmatprep.subr.mxu0 0.0
    %438 = vmatpush2.msra.mxu0 0.0
    %439 = vmatprep.subr.mxu0 0.0
    %440 = vmatpush2.msra.mxu0 0.0
    %441 = vmatprep.subr.mxu0 0.0
    %442 = vmatpush2.msra.mxu0 0.0
    %443 = vmatprep.subr.mxu0 0.0
    %444 = vmatpush2.msra.mxu0 0.0
    %445 = vmatprep.subr.mxu0 0.0
    %446 = vmatpush2.msra.mxu0 0.0
    %447 = vmatprep.mubr.f32.mxu0 0.0
    %448 = vmatmul.mubr.f32.gmra.mxu0 %v372
    %v449 = vpop.f32.mrf.mxu0
    %v450 = vadd.f32 %v370, %v449
    %v451 = vpop.f32.mrf.mxu0
    %452 = vmatprep.mubr.f32.mxu0 0.0
    %453 = vmatmul.mubr.f32.gmra.mxu0 %v375
    %v454 = vpop.f32.mrf.mxu0
    %v455 = vadd.f32 %v370, %v454
    %v456 = vpop.f32.mrf.mxu0
    %457 = vmatprep.mubr.f32.mxu0 0.0
    %458 = vmatmul.mubr.f32.gmra.mxu0 %v378
    %v459 = vpop.f32.mrf.mxu0
    %v460 = vadd.f32 %v370, %v459
    %v461 = vpop.f32.mrf.mxu0
    %462 = vmatprep.mubr.f32.mxu0 0.0
    %463 = vmatmul.mubr.f32.gmra.mxu0 %v381
    %v464 = vpop.f32.mrf.mxu0
    %v465 = vadd.f32 %v370, %v464
    %v466 = vpop.f32.mrf.mxu0
    %467 = vdwg.mxu0
    %v470 = vrot.slane %v450, 2
    %v471 = vrot.slane %v455, 2
    %v472 = vsel %vm198, %v470, %v471
    %v474 = vsel %vm198, %v455, %v470
    %476 = vrot.lane.b32.xlu0 %v450, 96
    %v477 = vpop.permute.xlu0 %476
    %478 = vrot.lane.b32.xlu0 %v474, 96
    %v479 = vpop.permute.xlu0 %478
    %480 = vrot.lane.b32.xlu0 %v472, 96
    %v481 = vpop.permute.xlu0 %480
    %482 = vrot.lane.b32.xlu0 %v471, 96
    %v483 = vpop.permute.xlu0 %482
    %v488 = vmul.f32 %v450, %v477
    %v489 = vmul.f32 %v455, %v479
    %v490 = vmul.f32 %v460, %v481
    %v491 = vmul.f32 %v465, %v483
    %v493 = vsel %vm208, %v488, 0
    %v496 = vsel %vm208, %v489, 0
    %v499 = vsel %vm208, %v490, 0
    %v502 = vsel %vm208, %v491, 0
    %504 = vmatprep.subr.mxu0 0.0
    %505 = vmatpush1.msra.mxu0 0.0
    %506 = vmatprep.subr.mxu0 0.0
    %507 = vmatpush1.msra.mxu0 0.0
    %508 = vmatprep.subr.mxu0 0.0
    %509 = vmatpush1.msra.mxu0 0.0
    %510 = vmatprep.subr.mxu0 0.0
    %511 = vmatpush1.msra.mxu0 0.0
    %512 = vmatprep.subr.mxu0 0.0
    %513 = vmatpush1.msra.mxu0 0.0
    %514 = vmatprep.subr.mxu0 0.0
    %515 = vmatpush1.msra.mxu0 0.0
    %516 = vmatprep.subr.mxu0 0.0
    %517 = vmatpush1.msra.mxu0 0.0
    %518 = vmatprep.subr.mxu0 0.0
    %519 = vmatpush1.msra.mxu0 0.0
    %520 = vmatprep.subr.mxu0 0.0
    %521 = vmatpush1.msra.mxu0 0.0
    %522 = vmatprep.subr.mxu0 0.0
    %523 = vmatpush1.msra.mxu0 0.0
    %524 = vmatprep.subr.mxu0 0.0
    %525 = vmatpush1.msra.mxu0 0.0
    %526 = vmatprep.subr.mxu0 0.0
    %527 = vmatpush1.msra.mxu0 0.0
    %528 = vmatprep.subr.mxu0 0.0
    %529 = vmatpush1.msra.mxu0 %v361
    %530 = vmatprep.subr.mxu0 0.0
    %531 = vmatpush1.msra.mxu0 %v360
    %532 = vmatprep.subr.mxu0 0.0
    %533 = vmatpush1.msra.mxu0 %v359
    %534 = vmatprep.subr.mxu0 0.0
    %535 = vmatpush1.msra.mxu0 %v358
    %536 = vmatprep.subr.mxu0 0.0
    %537 = vmatpush2.msra.mxu0 0.0
    %538 = vmatprep.subr.mxu0 0.0
    %539 = vmatpush2.msra.mxu0 0.0
    %540 = vmatprep.subr.mxu0 0.0
    %541 = vmatpush2.msra.mxu0 0.0
    %542 = vmatprep.subr.mxu0 0.0
    %543 = vmatpush2.msra.mxu0 0.0
    %544 = vmatprep.subr.mxu0 0.0
    %545 = vmatpush2.msra.mxu0 0.0
    %546 = vmatprep.subr.mxu0 0.0
    %547 = vmatpush2.msra.mxu0 0.0
    %548 = vmatprep.subr.mxu0 0.0
    %549 = vmatpush2.msra.mxu0 0.0
    %550 = vmatprep.subr.mxu0 0.0
    %551 = vmatpush2.msra.mxu0 0.0
    %552 = vmatprep.subr.mxu0 0.0
    %553 = vmatpush2.msra.mxu0 0.0
    %554 = vmatprep.subr.mxu0 0.0
    %555 = vmatpush2.msra.mxu0 0.0
    %556 = vmatprep.subr.mxu0 0.0
    %557 = vmatpush2.msra.mxu0 0.0
    %558 = vmatprep.subr.mxu0 0.0
    %559 = vmatpush2.msra.mxu0 0.0
    %560 = vmatprep.subr.mxu0 0.0
    %561 = vmatpush2.msra.mxu0 0.0
    %562 = vmatprep.subr.mxu0 0.0
    %563 = vmatpush2.msra.mxu0 0.0
    %564 = vmatprep.subr.mxu0 0.0
    %565 = vmatpush2.msra.mxu0 0.0
    %566 = vmatprep.subr.mxu0 0.0
    %567 = vmatpush2.msra.mxu0 0.0
    %568 = vmatprep.mubr.f32.mxu0 0.0
    %569 = vmatmul.mubr.f32.gmra.mxu0 %v493
    %v570 = vpop.f32.mrf.mxu0
    %v571 = vadd.f32 0.0, %v570
    %v572 = vpop.f32.mrf.mxu0
    %573 = vmatprep.mubr.f32.mxu0 0.0
    %574 = vmatmul.mubr.f32.gmra.mxu0 %v496
    %v575 = vpop.f32.mrf.mxu0
    %v576 = vadd.f32 0.0, %v575
    %v577 = vpop.f32.mrf.mxu0
    %578 = vmatprep.mubr.f32.mxu0 0.0
    %579 = vmatmul.mubr.f32.gmra.mxu0 %v499
    %v580 = vpop.f32.mrf.mxu0
    %v581 = vadd.f32 0.0, %v580
    %v582 = vpop.f32.mrf.mxu0
    %583 = vmatprep.mubr.f32.mxu0 0.0
    %584 = vmatmul.mubr.f32.gmra.mxu0 %v502
    %v585 = vpop.f32.mrf.mxu0
    %v586 = vadd.f32 0.0, %v585
    %v587 = vpop.f32.mrf.mxu0
    %588 = vdwg.mxu0
    %vm591 = vcmask 1041408
    %v592 = vrot.slane %v455, 6
    %v593 = vrot.slane %v460, 6
    %v594 = vsel %vm591, %v592, %v593
    %v595 = vrot.slane %v465, 6
    %v596 = vsel %vm591, %v593, %v595
    %v598 = vsel %vm198, %v596, %v455
    %600 = vrot.lane.b32.xlu0 %v594, 96
    %v601 = vpop.permute.xlu0 %600
    %602 = vrot.lane.b32.xlu0 %v598, 96
    %v603 = vpop.permute.xlu0 %602
    %604 = vrot.lane.b32.xlu0 %v460, 96
    %v605 = vpop.permute.xlu0 %604
    %606 = vrot.lane.b32.xlu0 %v465, 96
    %v607 = vpop.permute.xlu0 %606
    %v612 = vmul.f32 %v450, %v601
    %v613 = vmul.f32 %v455, %v603
    %v614 = vmul.f32 %v460, %v605
    %v615 = vmul.f32 %v465, %v607
    %v617 = vsel %vm208, %v612, 0
    %v620 = vsel %vm208, %v613, 0
    %v623 = vsel %vm208, %v614, 0
    %v626 = vsel %vm208, %v615, 0
    %628 = vmatprep.subr.mxu0 0.0
    %629 = vmatpush1.msra.mxu0 0.0
    %630 = vmatprep.subr.mxu0 0.0
    %631 = vmatpush1.msra.mxu0 0.0
    %632 = vmatprep.subr.mxu0 0.0
    %633 = vmatpush1.msra.mxu0 0.0
    %634 = vmatprep.subr.mxu0 0.0
    %635 = vmatpush1.msra.mxu0 0.0
    %636 = vmatprep.subr.mxu0 0.0
    %637 = vmatpush1.msra.mxu0 0.0
    %638 = vmatprep.subr.mxu0 0.0
    %639 = vmatpush1.msra.mxu0 0.0
    %640 = vmatprep.subr.mxu0 0.0
    %641 = vmatpush1.msra.mxu0 0.0
    %642 = vmatprep.subr.mxu0 0.0
    %643 = vmatpush1.msra.mxu0 0.0
    %644 = vmatprep.subr.mxu0 0.0
    %645 = vmatpush1.msra.mxu0 0.0
    %646 = vmatprep.subr.mxu0 0.0
    %647 = vmatpush1.msra.mxu0 0.0
    %648 = vmatprep.subr.mxu0 0.0
    %649 = vmatpush1.msra.mxu0 0.0
    %650 = vmatprep.subr.mxu0 0.0
    %651 = vmatpush1.msra.mxu0 0.0
    %652 = vmatprep.subr.mxu0 0.0
    %653 = vmatpush1.msra.mxu0 %v361
    %654 = vmatprep.subr.mxu0 0.0
    %655 = vmatpush1.msra.mxu0 %v360
    %656 = vmatprep.subr.mxu0 0.0
    %657 = vmatpush1.msra.mxu0 %v359
    %658 = vmatprep.subr.mxu0 0.0
    %659 = vmatpush1.msra.mxu0 %v358
    %660 = vmatprep.subr.mxu0 0.0
    %661 = vmatpush2.msra.mxu0 0.0
    %662 = vmatprep.subr.mxu0 0.0
    %663 = vmatpush2.msra.mxu0 0.0
    %664 = vmatprep.subr.mxu0 0.0
    %665 = vmatpush2.msra.mxu0 0.0
    %666 = vmatprep.subr.mxu0 0.0
    %667 = vmatpush2.msra.mxu0 0.0
    %668 = vmatprep.subr.mxu0 0.0
    %669 = vmatpush2.msra.mxu0 0.0
    %670 = vmatprep.subr.mxu0 0.0
    %671 = vmatpush2.msra.mxu0 0.0
    %672 = vmatprep.subr.mxu0 0.0
    %673 = vmatpush2.msra.mxu0 0.0
    %674 = vmatprep.subr.mxu0 0.0
    %675 = vmatpush2.msra.mxu0 0.0
    %676 = vmatprep.subr.mxu0 0.0
    %677 = vmatpush2.msra.mxu0 0.0
    %678 = vmatprep.subr.mxu0 0.0
    %679 = vmatpush2.msra.mxu0 0.0
    %680 = vmatprep.subr.mxu0 0.0
    %681 = vmatpush2.msra.mxu0 0.0
    %682 = vmatprep.subr.mxu0 0.0
    %683 = vmatpush2.msra.mxu0 0.0
    %684 = vmatprep.subr.mxu0 0.0
    %685 = vmatpush2.msra.mxu0 0.0
    %686 = vmatprep.subr.mxu0 0.0
    %687 = vmatpush2.msra.mxu0 0.0
    %688 = vmatprep.subr.mxu0 0.0
    %689 = vmatpush2.msra.mxu0 0.0
    %690 = vmatprep.subr.mxu0 0.0
    %691 = vmatpush2.msra.mxu0 0.0
    %692 = vmatprep.mubr.f32.mxu0 0.0
    %693 = vmatmul.mubr.f32.gmra.mxu0 %v617
    %v694 = vpop.f32.mrf.mxu0
    %v695 = vadd.f32 0.0, %v694
    %v696 = vpop.f32.mrf.mxu0
    %697 = vmatprep.mubr.f32.mxu0 0.0
    %698 = vmatmul.mubr.f32.gmra.mxu0 %v620
    %v699 = vpop.f32.mrf.mxu0
    %v700 = vadd.f32 0.0, %v699
    %v701 = vpop.f32.mrf.mxu0
    %702 = vmatprep.mubr.f32.mxu0 0.0
    %703 = vmatmul.mubr.f32.gmra.mxu0 %v623
    %v704 = vpop.f32.mrf.mxu0
    %v705 = vadd.f32 0.0, %v704
    %v706 = vpop.f32.mrf.mxu0
    %707 = vmatprep.mubr.f32.mxu0 0.0
    %708 = vmatmul.mubr.f32.gmra.mxu0 %v626
    %v709 = vpop.f32.mrf.mxu0
    %v710 = vadd.f32 0.0, %v709
    %v711 = vpop.f32.mrf.mxu0
    %712 = vdwg.mxu0
    %v713 = vmax.f32 %v571, %v695
    %v714 = vmax.f32 %v576, %v700
    %v715 = vmax.f32 %v581, %v705
    %v716 = vmax.f32 %v586, %v710
    %v717 = vsub.f32 %v571, %v713
    %v718 = vsub.f32 %v576, %v714
    %v719 = vsub.f32 %v581, %v715
    %v720 = vsub.f32 %v586, %v716
    %v721 = vmul.f32 %v717, 1.442695
    %v722 = vpow.pop %v721
    %v723 = vmul.f32 %v718, 1.442695
    %v724 = vpow.pop %v723
    %v725 = vmul.f32 %v719, 1.442695
    %v726 = vpow.pop %v725
    %v727 = vmul.f32 %v720, 1.442695
    %v728 = vpow.pop %v727
    %v729 = vsub.f32 %v695, %v713
    %v730 = vsub.f32 %v700, %v714
    %v731 = vsub.f32 %v705, %v715
    %v732 = vsub.f32 %v710, %v716
    %v733 = vmul.f32 %v729, 1.442695
    %v734 = vpow.pop %v733
    %v735 = vmul.f32 %v730, 1.442695
    %v736 = vpow.pop %v735
    %v737 = vmul.f32 %v731, 1.442695
    %v738 = vpow.pop %v737
    %v739 = vmul.f32 %v732, 1.442695
    %v740 = vpow.pop %v739
    %741 = vrot.lane.b32.xlu0 %v450, 64
    %v742 = vpop.permute.xlu0 %741
    %743 = vrot.lane.b32.xlu0 %v474, 64
    %v744 = vpop.permute.xlu0 %743
    %745 = vrot.lane.b32.xlu0 %v472, 64
    %v746 = vpop.permute.xlu0 %745
    %747 = vrot.lane.b32.xlu0 %v471, 64
    %v748 = vpop.permute.xlu0 %747
    %v753 = vmul.f32 %v722, %v742
    %v754 = vmul.f32 %v724, %v744
    %v755 = vmul.f32 %v726, %v746
    %v756 = vmul.f32 %v728, %v748
    %v757 = vadd.f32 %v722, %v734
    %v758 = vadd.f32 %v724, %v736
    %v759 = vadd.f32 %v726, %v738
    %v760 = vadd.f32 %v728, %v740
    %761 = vrot.lane.b32.xlu0 %v594, 64
    %v762 = vpop.permute.xlu0 %761
    %763 = vrot.lane.b32.xlu0 %v598, 64
    %v764 = vpop.permute.xlu0 %763
    %765 = vrot.lane.b32.xlu0 %v460, 64
    %v766 = vpop.permute.xlu0 %765
    %767 = vrot.lane.b32.xlu0 %v465, 64
    %v768 = vpop.permute.xlu0 %767
    %v773 = vmul.f32 %v734, %v762
    %v774 = vmul.f32 %v736, %v764
    %v775 = vmul.f32 %v738, %v766
    %v776 = vmul.f32 %v740, %v768
    %v777 = vadd.f32 %v753, %v773
    %v778 = vadd.f32 %v754, %v774
    %v779 = vadd.f32 %v755, %v775
    %v780 = vadd.f32 %v756, %v776
    %v781 = vrcp.pop %v757
    %v782 = vrcp.pop %v758
    %v783 = vrcp.pop %v759
    %v784 = vrcp.pop %v760
    %v785 = vmul.f32 %v777, %v781
    %v786 = vmul.f32 %v778, %v782
    %v787 = vmul.f32 %v779, %v783
    %v788 = vmul.f32 %v780, %v784
    %v789 = vld [vmem:[#allocation7 + $0xc0] sm:$0xff]
    %v790 = vld [vmem:[#allocation7 + $0xc8] sm:$0xff]
    %v791 = vld [vmem:[#allocation7 + $0xd0] sm:$0xff]
    %v792 = vld [vmem:[#allocation7 + $0xd8] sm:$0xff]
    %v793 = vld [vmem:[%s3 + $0x25] sm:$0x1]
    %v794 = vlaneseq
    %v795 = vshrl.u32 %v794, 7
    %v796 = vsub.s32 0, %v795
    %v797 = vrot.slane %v793, %v796
    %v799 = vsel %vm208, %v785, 0
    %v802 = vsel %vm208, %v786, 0
    %v805 = vsel %vm208, %v787, 0
    %v808 = vsel %vm208, %v788, 0
    %810 = vmatprep.subr.mxu0 0.0
    %811 = vmatpush1.msra.mxu0 0.0
    %812 = vmatprep.subr.mxu0 0.0
    %813 = vmatpush1.msra.mxu0 0.0
    %814 = vmatprep.subr.mxu0 0.0
    %815 = vmatpush1.msra.mxu0 0.0
    %816 = vmatprep.subr.mxu0 0.0
    %817 = vmatpush1.msra.mxu0 0.0
    %818 = vmatprep.subr.mxu0 0.0
    %819 = vmatpush1.msra.mxu0 0.0
    %820 = vmatprep.subr.mxu0 0.0
    %821 = vmatpush1.msra.mxu0 0.0
    %822 = vmatprep.subr.mxu0 0.0
    %823 = vmatpush1.msra.mxu0 0.0
    %824 = vmatprep.subr.mxu0 0.0
    %825 = vmatpush1.msra.mxu0 0.0
    %826 = vmatprep.subr.mxu0 0.0
    %827 = vmatpush1.msra.mxu0 0.0
    %828 = vmatprep.subr.mxu0 0.0
    %829 = vmatpush1.msra.mxu0 0.0
    %830 = vmatprep.subr.mxu0 0.0
    %831 = vmatpush1.msra.mxu0 0.0
    %832 = vmatprep.subr.mxu0 0.0
    %833 = vmatpush1.msra.mxu0 0.0
    %834 = vmatprep.subr.mxu0 0.0
    %835 = vmatpush1.msra.mxu0 %v792
    %836 = vmatprep.subr.mxu0 0.0
    %837 = vmatpush1.msra.mxu0 %v791
    %838 = vmatprep.subr.mxu0 0.0
    %839 = vmatpush1.msra.mxu0 %v790
    %840 = vmatprep.subr.mxu0 0.0
    %841 = vmatpush1.msra.mxu0 %v789
    %842 = vmatprep.subr.mxu0 0.0
    %843 = vmatpush2.msra.mxu0 0.0
    %844 = vmatprep.subr.mxu0 0.0
    %845 = vmatpush2.msra.mxu0 0.0
    %846 = vmatprep.subr.mxu0 0.0
    %847 = vmatpush2.msra.mxu0 0.0
    %848 = vmatprep.subr.mxu0 0.0
    %849 = vmatpush2.msra.mxu0 0.0
    %850 = vmatprep.subr.mxu0 0.0
    %851 = vmatpush2.msra.mxu0 0.0
    %852 = vmatprep.subr.mxu0 0.0
    %853 = vmatpush2.msra.mxu0 0.0
    %854 = vmatprep.subr.mxu0 0.0
    %855 = vmatpush2.msra.mxu0 0.0
    %856 = vmatprep.subr.mxu0 0.0
    %857 = vmatpush2.msra.mxu0 0.0
    %858 = vmatprep.subr.mxu0 0.0
    %859 = vmatpush2.msra.mxu0 0.0
    %860 = vmatprep.subr.mxu0 0.0
    %861 = vmatpush2.msra.mxu0 0.0
    %862 = vmatprep.subr.mxu0 0.0
    %863 = vmatpush2.msra.mxu0 0.0
    %864 = vmatprep.subr.mxu0 0.0
    %865 = vmatpush2.msra.mxu0 0.0
    %866 = vmatprep.subr.mxu0 0.0
    %867 = vmatpush2.msra.mxu0 0.0
    %868 = vmatprep.subr.mxu0 0.0
    %869 = vmatpush2.msra.mxu0 0.0
    %870 = vmatprep.subr.mxu0 0.0
    %871 = vmatpush2.msra.mxu0 0.0
    %872 = vmatprep.subr.mxu0 0.0
    %873 = vmatpush2.msra.mxu0 0.0
    %874 = vmatprep.mubr.f32.mxu0 0.0
    %875 = vmatmul.mubr.f32.gmra.mxu0 %v799
    %v876 = vpop.f32.mrf.mxu0
    %v877 = vadd.f32 %v797, %v876
    %v878 = vpop.f32.mrf.mxu0
    %879 = vmatprep.mubr.f32.mxu0 0.0
    %880 = vmatmul.mubr.f32.gmra.mxu0 %v802
    %v881 = vpop.f32.mrf.mxu0
    %v882 = vadd.f32 %v797, %v881
    %v883 = vpop.f32.mrf.mxu0
    %884 = vmatprep.mubr.f32.mxu0 0.0
    %885 = vmatmul.mubr.f32.gmra.mxu0 %v805
    %v886 = vpop.f32.mrf.mxu0
    %v887 = vadd.f32 %v797, %v886
    %v888 = vpop.f32.mrf.mxu0
    %889 = vmatprep.mubr.f32.mxu0 0.0
    %890 = vmatmul.mubr.f32.gmra.mxu0 %v808
    %v891 = vpop.f32.mrf.mxu0
    %v892 = vadd.f32 %v797, %v891
    %v893 = vpop.f32.mrf.mxu0
    %894 = vdwg.mxu0
    %v895 = vadd.f32 %v340, %v877
    %v896 = vadd.f32 %v345, %v882
    %v897 = vadd.f32 %v350, %v887
    %v898 = vadd.f32 %v355, %v892
    %v899 = vld [vmem:[%s3 + $0x26] sm:$0x1]
    %v900 = vld [vmem:[%s3 + $0x27] sm:$0x1]
    %v901 = vsel %vm208, %v895, 0.0
    %902 = vadd.xlane.f32.xlu0 %v901
    %v903 = vpop.xlane.xlu0 %902
    %v904 = vsel %vm208, %v896, 0.0
    %905 = vadd.xlane.f32.xlu0 %v904
    %v906 = vpop.xlane.xlu0 %905
    %v907 = vsel %vm208, %v897, 0.0
    %908 = vadd.xlane.f32.xlu0 %v907
    %v909 = vpop.xlane.xlu0 %908
    %vm910 = vcmask 257024
    %v911 = vsel %vm910, %v898, 0.0
    %912 = vadd.xlane.f32.xlu0 %v911
    %v913 = vpop.xlane.xlu0 %912
    %v914 = vrcp.pop 32.0
    %v915 = vmul.f32 %v903, %v914
    %v916 = vmul.f32 %v906, %v914
    %v917 = vmul.f32 %v909, %v914
    %v918 = vmul.f32 %v913, %v914
    %v919 = vsub.f32 %v895, %v915
    %v920 = vsub.f32 %v896, %v916
    %v921 = vsub.f32 %v897, %v917
    %v922 = vsub.f32 %v898, %v918
    %v923 = vmul.f32 %v919, %v919
    %v924 = vmul.f32 %v920, %v920
    %v925 = vmul.f32 %v921, %v921
    %v926 = vmul.f32 %v922, %v922
    %v927 = vsel %vm208, %v923, 0.0
    %928 = vadd.xlane.f32.xlu0 %v927
    %v929 = vpop.xlane.xlu0 %928
    %v930 = vsel %vm208, %v924, 0.0
    %931 = vadd.xlane.f32.xlu0 %v930
    %v932 = vpop.xlane.xlu0 %931
    %v933 = vsel %vm208, %v925, 0.0
    %934 = vadd.xlane.f32.xlu0 %v933
    %v935 = vpop.xlane.xlu0 %934
    %v936 = vsel %vm910, %v926, 0.0
    %937 = vadd.xlane.f32.xlu0 %v936
    %v938 = vpop.xlane.xlu0 %937
    %v939 = vmul.f32 %v929, %v914
    %v940 = vmul.f32 %v932, %v914
    %v941 = vmul.f32 %v935, %v914
    %v942 = vmul.f32 %v938, %v914
    %v943 = vadd.f32 %v939, 1e-05
    %v944 = vadd.f32 %v940, 1e-05
    %v945 = vadd.f32 %v941, 1e-05
    %v946 = vadd.f32 %v942, 1e-05
    %v947 = vrsqrt.pop %v943
    %v948 = vrsqrt.pop %v944
    %v949 = vrsqrt.pop %v945
    %v950 = vrsqrt.pop %v946
    %v951 = vmul.f32 %v919, %v947
    %v952 = vmul.f32 %v920, %v948
    %v953 = vmul.f32 %v921, %v949
    %v954 = vmul.f32 %v922, %v950
    %v955 = vlaneseq
    %v956 = vshrl.u32 %v955, 7
    %v957 = vsub.s32 0, %v956
    %v958 = vrot.slane %v899, %v957
    %v959 = vmul.f32 %v951, %v958
    %v960 = vmul.f32 %v952, %v958
    %v961 = vmul.f32 %v953, %v958
    %v962 = vmul.f32 %v954, %v958
    %v963 = vlaneseq
    %v964 = vshrl.u32 %v963, 7
    %v965 = vsub.s32 0, %v964
    %v966 = vrot.slane %v900, %v965
    %v967 = vadd.f32 %v959, %v966
    %v968 = vadd.f32 %v960, %v966
    %v969 = vadd.f32 %v961, %v966
    %v970 = vadd.f32 %v962, %v966
    %v971 = vld [vmem:[#allocation7 + $0xe0] sm:$0xff]
    %v972 = vld [vmem:[#allocation7 + $0xe8] sm:$0xff]
    %v973 = vld [vmem:[#allocation7 + $0xf0] sm:$0xff]
    %v974 = vld [vmem:[#allocation7 + $0xf8] sm:$0xff]
    %v975 = vld [vmem:[%s3 + $0x28] sm:$0x1]
    %v976 = vlaneseq
    %v977 = vshrl.u32 %v976, 7
    %v978 = vsub.s32 0, %v977
    %v979 = vrot.slane %v975, %v978
    %v981 = vsel %vm208, %v967, 0
    %v984 = vsel %vm208, %v968, 0
    %v987 = vsel %vm208, %v969, 0
    %v990 = vsel %vm208, %v970, 0
    %992 = vmatprep.subr.mxu0 0.0
    %993 = vmatpush1.msra.mxu0 0.0
    %994 = vmatprep.subr.mxu0 0.0
    %995 = vmatpush1.msra.mxu0 0.0
    %996 = vmatprep.subr.mxu0 0.0
    %997 = vmatpush1.msra.mxu0 0.0
    %998 = vmatprep.subr.mxu0 0.0
    %999 = vmatpush1.msra.mxu0 0.0
    %1000 = vmatprep.subr.mxu0 0.0
    %1001 = vmatpush1.msra.mxu0 0.0
    %1002 = vmatprep.subr.mxu0 0.0
    %1003 = vmatpush1.msra.mxu0 0.0
    %1004 = vmatprep.subr.mxu0 0.0
    %1005 = vmatpush1.msra.mxu0 0.0
    %1006 = vmatprep.subr.mxu0 0.0
    %1007 = vmatpush1.msra.mxu0 0.0
    %1008 = vmatprep.subr.mxu0 0.0
    %1009 = vmatpush1.msra.mxu0 0.0
    %1010 = vmatprep.subr.mxu0 0.0
    %1011 = vmatpush1.msra.mxu0 0.0
    %1012 = vmatprep.subr.mxu0 0.0
    %1013 = vmatpush1.msra.mxu0 0.0
    %1014 = vmatprep.subr.mxu0 0.0
    %1015 = vmatpush1.msra.mxu0 0.0
    %1016 = vmatprep.subr.mxu0 0.0
    %1017 = vmatpush1.msra.mxu0 %v974
    %1018 = vmatprep.subr.mxu0 0.0
    %1019 = vmatpush1.msra.mxu0 %v973
    %1020 = vmatprep.subr.mxu0 0.0
    %1021 = vmatpush1.msra.mxu0 %v972
    %1022 = vmatprep.subr.mxu0 0.0
    %1023 = vmatpush1.msra.mxu0 %v971
    %1024 = vmatprep.subr.mxu0 0.0
    %1025 = vmatpush2.msra.mxu0 0.0
    %1026 = vmatprep.subr.mxu0 0.0
    %1027 = vmatpush2.msra.mxu0 0.0
    %1028 = vmatprep.subr.mxu0 0.0
    %1029 = vmatpush2.msra.mxu0 0.0
    %1030 = vmatprep.subr.mxu0 0.0
    %1031 = vmatpush2.msra.mxu0 0.0
    %1032 = vmatprep.subr.mxu0 0.0
    %1033 = vmatpush2.msra.mxu0 0.0
    %1034 = vmatprep.subr.mxu0 0.0
    %1035 = vmatpush2.msra.mxu0 0.0
    %1036 = vmatprep.subr.mxu0 0.0
    %1037 = vmatpush2.msra.mxu0 0.0
    %1038 = vmatprep.subr.mxu0 0.0
    %1039 = vmatpush2.msra.mxu0 0.0
    %1040 = vmatprep.subr.mxu0 0.0
    %1041 = vmatpush2.msra.mxu0 0.0
    %1042 = vmatprep.subr.mxu0 0.0
    %1043 = vmatpush2.msra.mxu0 0.0
    %1044 = vmatprep.subr.mxu0 0.0
    %1045 = vmatpush2.msra.mxu0 0.0
    %1046 = vmatprep.subr.mxu0 0.0
    %1047 = vmatpush2.msra.mxu0 0.0
    %1048 = vmatprep.subr.mxu0 0.0
    %1049 = vmatpush2.msra.mxu0 0.0
    %1050 = vmatprep.subr.mxu0 0.0
    %1051 = vmatpush2.msra.mxu0 0.0
    %1052 = vmatprep.subr.mxu0 0.0
    %1053 = vmatpush2.msra.mxu0 0.0
    %1054 = vmatprep.subr.mxu0 0.0
    %1055 = vmatpush2.msra.mxu0 0.0
    %1056 = vmatprep.mubr.f32.mxu0 0.0
    %1057 = vmatmul.mubr.f32.gmra.mxu0 %v981
    %v1058 = vpop.f32.mrf.mxu0
    %v1059 = vadd.f32 %v979, %v1058
    %v1060 = vpop.f32.mrf.mxu0
    %1061 = vmatprep.mubr.f32.mxu0 0.0
    %1062 = vmatmul.mubr.f32.gmra.mxu0 %v984
    %v1063 = vpop.f32.mrf.mxu0
    %v1064 = vadd.f32 %v979, %v1063
    %v1065 = vpop.f32.mrf.mxu0
    %1066 = vmatprep.mubr.f32.mxu0 0.0
    %1067 = vmatmul.mubr.f32.gmra.mxu0 %v987
    %v1068 = vpop.f32.mrf.mxu0
    %v1069 = vadd.f32 %v979, %v1068
    %v1070 = vpop.f32.mrf.mxu0
    %1071 = vmatprep.mubr.f32.mxu0 0.0
    %1072 = vmatmul.mubr.f32.gmra.mxu0 %v990
    %v1073 = vpop.f32.mrf.mxu0
    %v1074 = vadd.f32 %v979, %v1073
    %v1075 = vpop.f32.mrf.mxu0
    %1076 = vdwg.mxu0
    %v1077 = vmax.f32 %v1059, 0.0
    %v1078 = vmax.f32 %v1064, 0.0
    %v1079 = vmax.f32 %v1069, 0.0
    %v1080 = vmax.f32 %v1074, 0.0
    %v1081 = vld [vmem:[#allocation7 + $0x100] sm:$0xff]
    %v1082 = vld [vmem:[#allocation7 + $0x108] sm:$0xff]
    %v1083 = vld [vmem:[#allocation7 + $0x110] sm:$0xff]
    %v1084 = vld [vmem:[#allocation7 + $0x118] sm:$0xff]
    %v1085 = vld [vmem:[#allocation7 + $0x120] sm:$0xff]
    %v1086 = vld [vmem:[#allocation7 + $0x128] sm:$0xff]
    %v1087 = vld [vmem:[#allocation7 + $0x130] sm:$0xff]
    %v1088 = vld [vmem:[#allocation7 + $0x138] sm:$0xff]
    %v1089 = vld [vmem:[%s3 + $0x29] sm:$0x1]
    %v1090 = vlaneseq
    %v1091 = vshrl.u32 %v1090, 7
    %v1092 = vsub.s32 0, %v1091
    %v1093 = vrot.slane %v1089, %v1092
    %v1095 = vsel %vm211, %v1077, 0
    %v1098 = vsel %vm211, %v1078, 0
    %v1101 = vsel %vm211, %v1079, 0
    %v1104 = vsel %vm211, %v1080, 0
    %1106 = vmatprep.subr.mxu0 0.0
    %1107 = vmatpush1.msra.mxu0 0.0
    %1108 = vmatprep.subr.mxu0 0.0
    %1109 = vmatpush1.msra.mxu0 0.0
    %1110 = vmatprep.subr.mxu0 0.0
    %1111 = vmatpush1.msra.mxu0 0.0
    %1112 = vmatprep.subr.mxu0 0.0
    %1113 = vmatpush1.msra.mxu0 0.0
    %1114 = vmatprep.subr.mxu0 0.0
    %1115 = vmatpush1.msra.mxu0 0.0
    %1116 = vmatprep.subr.mxu0 0.0
    %1117 = vmatpush1.msra.mxu0 0.0
    %1118 = vmatprep.subr.mxu0 0.0
    %1119 = vmatpush1.msra.mxu0 0.0
    %1120 = vmatprep.subr.mxu0 0.0
    %1121 = vmatpush1.msra.mxu0 0.0
    %1122 = vmatprep.subr.mxu0 0.0
    %1123 = vmatpush1.msra.mxu0 %v1088
    %1124 = vmatprep.subr.mxu0 0.0
    %1125 = vmatpush1.msra.mxu0 %v1087
    %1126 = vmatprep.subr.mxu0 0.0
    %1127 = vmatpush1.msra.mxu0 %v1086
    %1128 = vmatprep.subr.mxu0 0.0
    %1129 = vmatpush1.msra.mxu0 %v1085
    %1130 = vmatprep.subr.mxu0 0.0
    %1131 = vmatpush1.msra.mxu0 %v1084
    %1132 = vmatprep.subr.mxu0 0.0
    %1133 = vmatpush1.msra.mxu0 %v1083
    %1134 = vmatprep.subr.mxu0 0.0
    %1135 = vmatpush1.msra.mxu0 %v1082
    %1136 = vmatprep.subr.mxu0 0.0
    %1137 = vmatpush1.msra.mxu0 %v1081
    %1138 = vmatprep.subr.mxu0 0.0
    %1139 = vmatpush2.msra.mxu0 0.0
    %1140 = vmatprep.subr.mxu0 0.0
    %1141 = vmatpush2.msra.mxu0 0.0
    %1142 = vmatprep.subr.mxu0 0.0
    %1143 = vmatpush2.msra.mxu0 0.0
    %1144 = vmatprep.subr.mxu0 0.0
    %1145 = vmatpush2.msra.mxu0 0.0
    %1146 = vmatprep.subr.mxu0 0.0
    %1147 = vmatpush2.msra.mxu0 0.0
    %1148 = vmatprep.subr.mxu0 0.0
    %1149 = vmatpush2.msra.mxu0 0.0
    %1150 = vmatprep.subr.mxu0 0.0
    %1151 = vmatpush2.msra.mxu0 0.0
    %1152 = vmatprep.subr.mxu0 0.0
    %1153 = vmatpush2.msra.mxu0 0.0
    %1154 = vmatprep.subr.mxu0 0.0
    %1155 = vmatpush2.msra.mxu0 0.0
    %1156 = vmatprep.subr.mxu0 0.0
    %1157 = vmatpush2.msra.mxu0 0.0
    %1158 = vmatprep.subr.mxu0 0.0
    %1159 = vmatpush2.msra.mxu0 0.0
    %1160 = vmatprep.subr.mxu0 0.0
    %1161 = vmatpush2.msra.mxu0 0.0
    %1162 = vmatprep.subr.mxu0 0.0
    %1163 = vmatpush2.msra.mxu0 0.0
    %1164 = vmatprep.subr.mxu0 0.0
    %1165 = vmatpush2.msra.mxu0 0.0
    %1166 = vmatprep.subr.mxu0 0.0
    %1167 = vmatpush2.msra.mxu0 0.0
    %1168 = vmatprep.subr.mxu0 0.0
    %1169 = vmatpush2.msra.mxu0 0.0
    %1170 = vmatprep.mubr.f32.mxu0 0.0
    %1171 = vmatmul.mubr.f32.gmra.mxu0 %v1095
    %v1172 = vpop.f32.mrf.mxu0
    %v1173 = vadd.f32 %v1093, %v1172
    %v1174 = vpop.f32.mrf.mxu0
    %1175 = vmatprep.mubr.f32.mxu0 0.0
    %1176 = vmatmul.mubr.f32.gmra.mxu0 %v1098
    %v1177 = vpop.f32.mrf.mxu0
    %v1178 = vadd.f32 %v1093, %v1177
    %v1179 = vpop.f32.mrf.mxu0
    %1180 = vmatprep.mubr.f32.mxu0 0.0
    %1181 = vmatmul.mubr.f32.gmra.mxu0 %v1101
    %v1182 = vpop.f32.mrf.mxu0
    %v1183 = vadd.f32 %v1093, %v1182
    %v1184 = vpop.f32.mrf.mxu0
    %1185 = vmatprep.mubr.f32.mxu0 0.0
    %1186 = vmatmul.mubr.f32.gmra.mxu0 %v1104
    %v1187 = vpop.f32.mrf.mxu0
    %v1188 = vadd.f32 %v1093, %v1187
    %v1189 = vpop.f32.mrf.mxu0
    %1190 = vdwg.mxu0
    %v1191 = vadd.f32 %v967, %v1173
    %v1192 = vadd.f32 %v968, %v1178
    %v1193 = vadd.f32 %v969, %v1183
    %v1194 = vadd.f32 %v970, %v1188
    %v1195 = vld [vmem:[%s3 + $0x2a] sm:$0x1]
    %v1196 = vld [vmem:[%s3 + $0x2b] sm:$0x1]
    %v1197 = vsel %vm208, %v1191, 0.0
    %1198 = vadd.xlane.f32.xlu0 %v1197
    %v1199 = vpop.xlane.xlu0 %1198
    %v1200 = vsel %vm208, %v1192, 0.0
    %1201 = vadd.xlane.f32.xlu0 %v1200
    %v1202 = vpop.xlane.xlu0 %1201
    %v1203 = vsel %vm208, %v1193, 0.0
    %1204 = vadd.xlane.f32.xlu0 %v1203
    %v1205 = vpop.xlane.xlu0 %1204
    %v1206 = vsel %vm910, %v1194, 0.0
    %1207 = vadd.xlane.f32.xlu0 %v1206
    %v1208 = vpop.xlane.xlu0 %1207
    %v1209 = vmul.f32 %v1199, %v914
    %v1210 = vmul.f32 %v1202, %v914
    %v1211 = vmul.f32 %v1205, %v914
    %v1212 = vmul.f32 %v1208, %v914
    %v1213 = vsub.f32 %v1191, %v1209
    %v1214 = vsub.f32 %v1192, %v1210
    %v1215 = vsub.f32 %v1193, %v1211
    %v1216 = vsub.f32 %v1194, %v1212
    %v1217 = vmul.f32 %v1213, %v1213
    %v1218 = vmul.f32 %v1214, %v1214
    %v1219 = vmul.f32 %v1215, %v1215
    %v1220 = vmul.f32 %v1216, %v1216
    %v1221 = vsel %vm208, %v1217, 0.0
    %1222 = vadd.xlane.f32.xlu0 %v1221
    %v1223 = vpop.xlane.xlu0 %1222
    %v1224 = vsel %vm208, %v1218, 0.0
    %1225 = vadd.xlane.f32.xlu0 %v1224
    %v1226 = vpop.xlane.xlu0 %1225
    %v1227 = vsel %vm208, %v1219, 0.0
    %1228 = vadd.xlane.f32.xlu0 %v1227
    %v1229 = vpop.xlane.xlu0 %1228
    %v1230 = vsel %vm910, %v1220, 0.0
    %1231 = vadd.xlane.f32.xlu0 %v1230
    %v1232 = vpop.xlane.xlu0 %1231
    %v1233 = vmul.f32 %v1223, %v914
    %v1234 = vmul.f32 %v1226, %v914
    %v1235 = vmul.f32 %v1229, %v914
    %v1236 = vmul.f32 %v1232, %v914
    %v1237 = vadd.f32 %v1233, 1e-05
    %v1238 = vadd.f32 %v1234, 1e-05
    %v1239 = vadd.f32 %v1235, 1e-05
    %v1240 = vadd.f32 %v1236, 1e-05
    %v1241 = vrsqrt.pop %v1237
    %v1242 = vrsqrt.pop %v1238
    %v1243 = vrsqrt.pop %v1239
    %v1244 = vrsqrt.pop %v1240
    %v1245 = vmul.f32 %v1213, %v1241
    %v1246 = vmul.f32 %v1214, %v1242
    %v1247 = vmul.f32 %v1215, %v1243
    %v1248 = vmul.f32 %v1216, %v1244
    %v1249 = vlaneseq
    %v1250 = vshrl.u32 %v1249, 7
    %v1251 = vsub.s32 0, %v1250
    %v1252 = vrot.slane %v1195, %v1251
    %v1253 = vmul.f32 %v1245, %v1252
    %v1254 = vmul.f32 %v1246, %v1252
    %v1255 = vmul.f32 %v1247, %v1252
    %v1256 = vmul.f32 %v1248, %v1252
    %v1257 = vlaneseq
    %v1258 = vshrl.u32 %v1257, 7
    %v1259 = vsub.s32 0, %v1258
    %v1260 = vrot.slane %v1196, %v1259
    %v1261 = vadd.f32 %v1253, %v1260
    %v1262 = vadd.f32 %v1254, %v1260
    %v1263 = vadd.f32 %v1255, %v1260
    %v1264 = vadd.f32 %v1256, %v1260
    %v1265 = vld [vmem:[#allocation7 + $0x140] sm:$0xff]
    %v1266 = vld [vmem:[#allocation7 + $0x148] sm:$0xff]
    %v1267 = vld [vmem:[#allocation7 + $0x150] sm:$0xff]
    %v1268 = vld [vmem:[#allocation7 + $0x158] sm:$0xff]
    %v1269 = vld [vmem:[%s3 + $0x2c] sm:$0x1]
    %v1270 = vlaneseq
    %v1271 = vshrl.u32 %v1270, 7
    %v1272 = vsub.s32 0, %v1271
    %v1273 = vrot.slane %v1269, %v1272
    %v1275 = vsel %vm208, %v1261, 0
    %v1278 = vsel %vm208, %v1262, 0
    %v1281 = vsel %vm208, %v1263, 0
    %v1284 = vsel %vm208, %v1264, 0
    %1286 = vmatprep.subr.mxu0 0.0
    %1287 = vmatpush1.msra.mxu0 0.0
    %1288 = vmatprep.subr.mxu0 0.0
    %1289 = vmatpush1.msra.mxu0 0.0
    %1290 = vmatprep.subr.mxu0 0.0
    %1291 = vmatpush1.msra.mxu0 0.0
    %1292 = vmatprep.subr.mxu0 0.0
    %1293 = vmatpush1.msra.mxu0 0.0
    %1294 = vmatprep.subr.mxu0 0.0
    %1295 = vmatpush1.msra.mxu0 0.0
    %1296 = vmatprep.subr.mxu0 0.0
    %1297 = vmatpush1.msra.mxu0 0.0
    %1298 = vmatprep.subr.mxu0 0.0
    %1299 = vmatpush1.msra.mxu0 0.0
    %1300 = vmatprep.subr.mxu0 0.0
    %1301 = vmatpush1.msra.mxu0 0.0
    %1302 = vmatprep.subr.mxu0 0.0
    %1303 = vmatpush1.msra.mxu0 0.0
    %1304 = vmatprep.subr.mxu0 0.0
    %1305 = vmatpush1.msra.mxu0 0.0
    %1306 = vmatprep.subr.mxu0 0.0
    %1307 = vmatpush1.msra.mxu0 0.0
    %1308 = vmatprep.subr.mxu0 0.0
    %1309 = vmatpush1.msra.mxu0 0.0
    %1310 = vmatprep.subr.mxu0 0.0
    %1311 = vmatpush1.msra.mxu0 %v1268
    %1312 = vmatprep.subr.mxu0 0.0
    %1313 = vmatpush1.msra.mxu0 %v1267
    %1314 = vmatprep.subr.mxu0 0.0
    %1315 = vmatpush1.msra.mxu0 %v1266
    %1316 = vmatprep.subr.mxu0 0.0
    %1317 = vmatpush1.msra.mxu0 %v1265
    %1318 = vmatprep.subr.mxu0 0.0
    %1319 = vmatpush2.msra.mxu0 0.0
    %1320 = vmatprep.subr.mxu0 0.0
    %1321 = vmatpush2.msra.mxu0 0.0
    %1322 = vmatprep.subr.mxu0 0.0
    %1323 = vmatpush2.msra.mxu0 0.0
    %1324 = vmatprep.subr.mxu0 0.0
    %1325 = vmatpush2.msra.mxu0 0.0
    %1326 = vmatprep.subr.mxu0 0.0
    %1327 = vmatpush2.msra.mxu0 0.0
    %1328 = vmatprep.subr.mxu0 0.0
    %1329 = vmatpush2.msra.mxu0 0.0
    %1330 = vmatprep.subr.mxu0 0.0
    %1331 = vmatpush2.msra.mxu0 0.0
    %1332 = vmatprep.subr.mxu0 0.0
    %1333 = vmatpush2.msra.mxu0 0.0
    %1334 = vmatprep.subr.mxu0 0.0
    %1335 = vmatpush2.msra.mxu0 0.0
    %1336 = vmatprep.subr.mxu0 0.0
    %1337 = vmatpush2.msra.mxu0 0.0
    %1338 = vmatprep.subr.mxu0 0.0
    %1339 = vmatpush2.msra.mxu0 0.0
    %1340 = vmatprep.subr.mxu0 0.0
    %1341 = vmatpush2.msra.mxu0 0.0
    %1342 = vmatprep.subr.mxu0 0.0
    %1343 = vmatpush2.msra.mxu0 0.0
    %1344 = vmatprep.subr.mxu0 0.0
    %1345 = vmatpush2.msra.mxu0 0.0
    %1346 = vmatprep.subr.mxu0 0.0
    %1347 = vmatpush2.msra.mxu0 0.0
    %1348 = vmatprep.subr.mxu0 0.0
    %1349 = vmatpush2.msra.mxu0 0.0
    %1350 = vmatprep.mubr.f32.mxu0 0.0
    %1351 = vmatmul.mubr.f32.gmra.mxu0 %v1275
    %v1352 = vpop.f32.mrf.mxu0
    %v1353 = vadd.f32 %v1273, %v1352
    %v1354 = vpop.f32.mrf.mxu0
    %1355 = vmatprep.mubr.f32.mxu0 0.0
    %1356 = vmatmul.mubr.f32.gmra.mxu0 %v1278
    %v1357 = vpop.f32.mrf.mxu0
    %v1358 = vadd.f32 %v1273, %v1357
    %v1359 = vpop.f32.mrf.mxu0
    %1360 = vmatprep.mubr.f32.mxu0 0.0
    %1361 = vmatmul.mubr.f32.gmra.mxu0 %v1281
    %v1362 = vpop.f32.mrf.mxu0
    %v1363 = vadd.f32 %v1273, %v1362
    %v1364 = vpop.f32.mrf.mxu0
    %1365 = vmatprep.mubr.f32.mxu0 0.0
    %1366 = vmatmul.mubr.f32.gmra.mxu0 %v1284
    %v1367 = vpop.f32.mrf.mxu0
    %v1368 = vadd.f32 %v1273, %v1367
    %v1369 = vpop.f32.mrf.mxu0
    %1370 = vdwg.mxu0
    %v1373 = vrot.slane %v1353, 2
    %v1374 = vrot.slane %v1358, 2
    %v1375 = vsel %vm198, %v1373, %v1374
    %v1377 = vsel %vm198, %v1358, %v1373
    %1379 = vrot.lane.b32.xlu0 %v1353, 96
    %v1380 = vpop.permute.xlu0 %1379
    %1381 = vrot.lane.b32.xlu0 %v1377, 96
    %v1382 = vpop.permute.xlu0 %1381
    %1383 = vrot.lane.b32.xlu0 %v1375, 96
    %v1384 = vpop.permute.xlu0 %1383
    %1385 = vrot.lane.b32.xlu0 %v1374, 96
    %v1386 = vpop.permute.xlu0 %1385
    %v1391 = vmul.f32 %v1353, %v1380
    %v1392 = vmul.f32 %v1358, %v1382
    %v1393 = vmul.f32 %v1363, %v1384
    %v1394 = vmul.f32 %v1368, %v1386
    %v1396 = vsel %vm208, %v1391, 0
    %v1399 = vsel %vm208, %v1392, 0
    %v1402 = vsel %vm208, %v1393, 0
    %v1405 = vsel %vm208, %v1394, 0
    %1407 = vmatprep.subr.mxu0 0.0
    %1408 = vmatpush1.msra.mxu0 0.0
    %1409 = vmatprep.subr.mxu0 0.0
    %1410 = vmatpush1.msra.mxu0 0.0
    %1411 = vmatprep.subr.mxu0 0.0
    %1412 = vmatpush1.msra.mxu0 0.0
    %1413 = vmatprep.subr.mxu0 0.0
    %1414 = vmatpush1.msra.mxu0 0.0
    %1415 = vmatprep.subr.mxu0 0.0
    %1416 = vmatpush1.msra.mxu0 0.0
    %1417 = vmatprep.subr.mxu0 0.0
    %1418 = vmatpush1.msra.mxu0 0.0
    %1419 = vmatprep.subr.mxu0 0.0
    %1420 = vmatpush1.msra.mxu0 0.0
    %1421 = vmatprep.subr.mxu0 0.0
    %1422 = vmatpush1.msra.mxu0 0.0
    %1423 = vmatprep.subr.mxu0 0.0
    %1424 = vmatpush1.msra.mxu0 0.0
    %1425 = vmatprep.subr.mxu0 0.0
    %1426 = vmatpush1.msra.mxu0 0.0
    %1427 = vmatprep.subr.mxu0 0.0
    %1428 = vmatpush1.msra.mxu0 0.0
    %1429 = vmatprep.subr.mxu0 0.0
    %1430 = vmatpush1.msra.mxu0 0.0
    %1431 = vmatprep.subr.mxu0 0.0
    %1432 = vmatpush1.msra.mxu0 %v361
    %1433 = vmatprep.subr.mxu0 0.0
    %1434 = vmatpush1.msra.mxu0 %v360
    %1435 = vmatprep.subr.mxu0 0.0
    %1436 = vmatpush1.msra.mxu0 %v359
    %1437 = vmatprep.subr.mxu0 0.0
    %1438 = vmatpush1.msra.mxu0 %v358
    %1439 = vmatprep.subr.mxu0 0.0
    %1440 = vmatpush2.msra.mxu0 0.0
    %1441 = vmatprep.subr.mxu0 0.0
    %1442 = vmatpush2.msra.mxu0 0.0
    %1443 = vmatprep.subr.mxu0 0.0
    %1444 = vmatpush2.msra.mxu0 0.0
    %1445 = vmatprep.subr.mxu0 0.0
    %1446 = vmatpush2.msra.mxu0 0.0
    %1447 = vmatprep.subr.mxu0 0.0
    %1448 = vmatpush2.msra.mxu0 0.0
    %1449 = vmatprep.subr.mxu0 0.0
    %1450 = vmatpush2.msra.mxu0 0.0
    %1451 = vmatprep.subr.mxu0 0.0
    %1452 = vmatpush2.msra.mxu0 0.0
    %1453 = vmatprep.subr.mxu0 0.0
    %1454 = vmatpush2.msra.mxu0 0.0
    %1455 = vmatprep.subr.mxu0 0.0
    %1456 = vmatpush2.msra.mxu0 0.0
    %1457 = vmatprep.subr.mxu0 0.0
    %1458 = vmatpush2.msra.mxu0 0.0
    %1459 = vmatprep.subr.mxu0 0.0
    %1460 = vmatpush2.msra.mxu0 0.0
    %1461 = vmatprep.subr.mxu0 0.0
    %1462 = vmatpush2.msra.mxu0 0.0
    %1463 = vmatprep.subr.mxu0 0.0
    %1464 = vmatpush2.msra.mxu0 0.0
    %1465 = vmatprep.subr.mxu0 0.0
    %1466 = vmatpush2.msra.mxu0 0.0
    %1467 = vmatprep.subr.mxu0 0.0
    %1468 = vmatpush2.msra.mxu0 0.0
    %1469 = vmatprep.subr.mxu0 0.0
    %1470 = vmatpush2.msra.mxu0 0.0
    %1471 = vmatprep.mubr.f32.mxu0 0.0
    %1472 = vmatmul.mubr.f32.gmra.mxu0 %v1396
    %v1473 = vpop.f32.mrf.mxu0
    %v1474 = vadd.f32 0.0, %v1473
    %v1475 = vpop.f32.mrf.mxu0
    %1476 = vmatprep.mubr.f32.mxu0 0.0
    %1477 = vmatmul.mubr.f32.gmra.mxu0 %v1399
    %v1478 = vpop.f32.mrf.mxu0
    %v1479 = vadd.f32 0.0, %v1478
    %v1480 = vpop.f32.mrf.mxu0
    %1481 = vmatprep.mubr.f32.mxu0 0.0
    %1482 = vmatmul.mubr.f32.gmra.mxu0 %v1402
    %v1483 = vpop.f32.mrf.mxu0
    %v1484 = vadd.f32 0.0, %v1483
    %v1485 = vpop.f32.mrf.mxu0
    %1486 = vmatprep.mubr.f32.mxu0 0.0
    %1487 = vmatmul.mubr.f32.gmra.mxu0 %v1405
    %v1488 = vpop.f32.mrf.mxu0
    %v1489 = vadd.f32 0.0, %v1488
    %v1490 = vpop.f32.mrf.mxu0
    %1491 = vdwg.mxu0
    %v1494 = vrot.slane %v1358, 6
    %v1495 = vrot.slane %v1363, 6
    %v1496 = vsel %vm591, %v1494, %v1495
    %v1497 = vrot.slane %v1368, 6
    %v1498 = vsel %vm591, %v1495, %v1497
    %v1500 = vsel %vm198, %v1498, %v1358
    %1502 = vrot.lane.b32.xlu0 %v1496, 96
    %v1503 = vpop.permute.xlu0 %1502
    %1504 = vrot.lane.b32.xlu0 %v1500, 96
    %v1505 = vpop.permute.xlu0 %1504
    %1506 = vrot.lane.b32.xlu0 %v1363, 96
    %v1507 = vpop.permute.xlu0 %1506
    %1508 = vrot.lane.b32.xlu0 %v1368, 96
    %v1509 = vpop.permute.xlu0 %1508
    %v1514 = vmul.f32 %v1353, %v1503
    %v1515 = vmul.f32 %v1358, %v1505
    %v1516 = vmul.f32 %v1363, %v1507
    %v1517 = vmul.f32 %v1368, %v1509
    %v1519 = vsel %vm208, %v1514, 0
    %v1522 = vsel %vm208, %v1515, 0
    %v1525 = vsel %vm208, %v1516, 0
    %v1528 = vsel %vm208, %v1517, 0
    %1530 = vmatprep.subr.mxu0 0.0
    %1531 = vmatpush1.msra.mxu0 0.0
    %1532 = vmatprep.subr.mxu0 0.0
    %1533 = vmatpush1.msra.mxu0 0.0
    %1534 = vmatprep.subr.mxu0 0.0
    %1535 = vmatpush1.msra.mxu0 0.0
    %1536 = vmatprep.subr.mxu0 0.0
    %1537 = vmatpush1.msra.mxu0 0.0
    %1538 = vmatprep.subr.mxu0 0.0
    %1539 = vmatpush1.msra.mxu0 0.0
    %1540 = vmatprep.subr.mxu0 0.0
    %1541 = vmatpush1.msra.mxu0 0.0
    %1542 = vmatprep.subr.mxu0 0.0
    %1543 = vmatpush1.msra.mxu0 0.0
    %1544 = vmatprep.subr.mxu0 0.0
    %1545 = vmatpush1.msra.mxu0 0.0
    %1546 = vmatprep.subr.mxu0 0.0
    %1547 = vmatpush1.msra.mxu0 0.0
    %1548 = vmatprep.subr.mxu0 0.0
    %1549 = vmatpush1.msra.mxu0 0.0
    %1550 = vmatprep.subr.mxu0 0.0
    %1551 = vmatpush1.msra.mxu0 0.0
    %1552 = vmatprep.subr.mxu0 0.0
    %1553 = vmatpush1.msra.mxu0 0.0
    %1554 = vmatprep.subr.mxu0 0.0
    %1555 = vmatpush1.msra.mxu0 %v361
    %1556 = vmatprep.subr.mxu0 0.0
    %1557 = vmatpush1.msra.mxu0 %v360
    %1558 = vmatprep.subr.mxu0 0.0
    %1559 = vmatpush1.msra.mxu0 %v359
    %1560 = vmatprep.subr.mxu0 0.0
    %1561 = vmatpush1.msra.mxu0 %v358
    %1562 = vmatprep.subr.mxu0 0.0
    %1563 = vmatpush2.msra.mxu0 0.0
    %1564 = vmatprep.subr.mxu0 0.0
    %1565 = vmatpush2.msra.mxu0 0.0
    %1566 = vmatprep.subr.mxu0 0.0
    %1567 = vmatpush2.msra.mxu0 0.0
    %1568 = vmatprep.subr.mxu0 0.0
    %1569 = vmatpush2.msra.mxu0 0.0
    %1570 = vmatprep.subr.mxu0 0.0
    %1571 = vmatpush2.msra.mxu0 0.0
    %1572 = vmatprep.subr.mxu0 0.0
    %1573 = vmatpush2.msra.mxu0 0.0
    %1574 = vmatprep.subr.mxu0 0.0
    %1575 = vmatpush2.msra.mxu0 0.0
    %1576 = vmatprep.subr.mxu0 0.0
    %1577 = vmatpush2.msra.mxu0 0.0
    %1578 = vmatprep.subr.mxu0 0.0
    %1579 = vmatpush2.msra.mxu0 0.0
    %1580 = vmatprep.subr.mxu0 0.0
    %1581 = vmatpush2.msra.mxu0 0.0
    %1582 = vmatprep.subr.mxu0 0.0
    %1583 = vmatpush2.msra.mxu0 0.0
    %1584 = vmatprep.subr.mxu0 0.0
    %1585 = vmatpush2.msra.mxu0 0.0
    %1586 = vmatprep.subr.mxu0 0.0
    %1587 = vmatpush2.msra.mxu0 0.0
    %1588 = vmatprep.subr.mxu0 0.0
    %1589 = vmatpush2.msra.mxu0 0.0
    %1590 = vmatprep.subr.mxu0 0.0
    %1591 = vmatpush2.msra.mxu0 0.0
    %1592 = vmatprep.subr.mxu0 0.0
    %1593 = vmatpush2.msra.mxu0 0.0
    %1594 = vmatprep.mubr.f32.mxu0 0.0
    %1595 = vmatmul.mubr.f32.gmra.mxu0 %v1519
    %v1596 = vpop.f32.mrf.mxu0
    %v1597 = vadd.f32 0.0, %v1596
    %v1598 = vpop.f32.mrf.mxu0
    %1599 = vmatprep.mubr.f32.mxu0 0.0
    %1600 = vmatmul.mubr.f32.gmra.mxu0 %v1522
    %v1601 = vpop.f32.mrf.mxu0
    %v1602 = vadd.f32 0.0, %v1601
    %v1603 = vpop.f32.mrf.mxu0
    %1604 = vmatprep.mubr.f32.mxu0 0.0
    %1605 = vmatmul.mubr.f32.gmra.mxu0 %v1525
    %v1606 = vpop.f32.mrf.mxu0
    %v1607 = vadd.f32 0.0, %v1606
    %v1608 = vpop.f32.mrf.mxu0
    %1609 = vmatprep.mubr.f32.mxu0 0.0
    %1610 = vmatmul.mubr.f32.gmra.mxu0 %v1528
    %v1611 = vpop.f32.mrf.mxu0
    %v1612 = vadd.f32 0.0, %v1611
    %v1613 = vpop.f32.mrf.mxu0
    %1614 = vdwg.mxu0
    %v1615 = vmax.f32 %v1474, %v1597
    %v1616 = vmax.f32 %v1479, %v1602
    %v1617 = vmax.f32 %v1484, %v1607
    %v1618 = vmax.f32 %v1489, %v1612
    %v1619 = vsub.f32 %v1474, %v1615
    %v1620 = vsub.f32 %v1479, %v1616
    %v1621 = vsub.f32 %v1484, %v1617
    %v1622 = vsub.f32 %v1489, %v1618
    %v1623 = vmul.f32 %v1619, 1.442695
    %v1624 = vpow.pop %v1623
    %v1625 = vmul.f32 %v1620, 1.442695
    %v1626 = vpow.pop %v1625
    %v1627 = vmul.f32 %v1621, 1.442695
    %v1628 = vpow.pop %v1627
    %v1629 = vmul.f32 %v1622, 1.442695
    %v1630 = vpow.pop %v1629
    %v1631 = vsub.f32 %v1597, %v1615
    %v1632 = vsub.f32 %v1602, %v1616
    %v1633 = vsub.f32 %v1607, %v1617
    %v1634 = vsub.f32 %v1612, %v1618
    %v1635 = vmul.f32 %v1631, 1.442695
    %v1636 = vpow.pop %v1635
    %v1637 = vmul.f32 %v1632, 1.442695
    %v1638 = vpow.pop %v1637
    %v1639 = vmul.f32 %v1633, 1.442695
    %v1640 = vpow.pop %v1639
    %v1641 = vmul.f32 %v1634, 1.442695
    %v1642 = vpow.pop %v1641
    %1643 = vrot.lane.b32.xlu0 %v1353, 64
    %v1644 = vpop.permute.xlu0 %1643
    %1645 = vrot.lane.b32.xlu0 %v1377, 64
    %v1646 = vpop.permute.xlu0 %1645
    %1647 = vrot.lane.b32.xlu0 %v1375, 64
    %v1648 = vpop.permute.xlu0 %1647
    %1649 = vrot.lane.b32.xlu0 %v1374, 64
    %v1650 = vpop.permute.xlu0 %1649
    %v1655 = vmul.f32 %v1624, %v1644
    %v1656 = vmul.f32 %v1626, %v1646
    %v1657 = vmul.f32 %v1628, %v1648
    %v1658 = vmul.f32 %v1630, %v1650
    %v1659 = vadd.f32 %v1624, %v1636
    %v1660 = vadd.f32 %v1626, %v1638
    %v1661 = vadd.f32 %v1628, %v1640
    %v1662 = vadd.f32 %v1630, %v1642
    %1663 = vrot.lane.b32.xlu0 %v1496, 64
    %v1664 = vpop.permute.xlu0 %1663
    %1665 = vrot.lane.b32.xlu0 %v1500, 64
    %v1666 = vpop.permute.xlu0 %1665
    %1667 = vrot.lane.b32.xlu0 %v1363, 64
    %v1668 = vpop.permute.xlu0 %1667
    %1669 = vrot.lane.b32.xlu0 %v1368, 64
    %v1670 = vpop.permute.xlu0 %1669
    %v1675 = vmul.f32 %v1636, %v1664
    %v1676 = vmul.f32 %v1638, %v1666
    %v1677 = vmul.f32 %v1640, %v1668
    %v1678 = vmul.f32 %v1642, %v1670
    %v1679 = vadd.f32 %v1655, %v1675
    %v1680 = vadd.f32 %v1656, %v1676
    %v1681 = vadd.f32 %v1657, %v1677
    %v1682 = vadd.f32 %v1658, %v1678
    %v1683 = vrcp.pop %v1659
    %v1684 = vrcp.pop %v1660
    %v1685 = vrcp.pop %v1661
    %v1686 = vrcp.pop %v1662
    %v1687 = vmul.f32 %v1679, %v1683
    %v1688 = vmul.f32 %v1680, %v1684
    %v1689 = vmul.f32 %v1681, %v1685
    %v1690 = vmul.f32 %v1682, %v1686
    %v1691 = vld [vmem:[#allocation7 + $0x160] sm:$0xff]
    %v1692 = vld [vmem:[#allocation7 + $0x168] sm:$0xff]
    %v1693 = vld [vmem:[#allocation7 + $0x170] sm:$0xff]
    %v1694 = vld [vmem:[#allocation7 + $0x178] sm:$0xff]
    %v1695 = vld [vmem:[%s3 + $0x2d] sm:$0x1]
    %v1696 = vlaneseq
    %v1697 = vshrl.u32 %v1696, 7
    %v1698 = vsub.s32 0, %v1697
    %v1699 = vrot.slane %v1695, %v1698
    %v1701 = vsel %vm208, %v1687, 0
    %v1704 = vsel %vm208, %v1688, 0
    %v1707 = vsel %vm208, %v1689, 0
    %v1710 = vsel %vm208, %v1690, 0
    %1712 = vmatprep.subr.mxu0 0.0
    %1713 = vmatpush1.msra.mxu0 0.0
    %1714 = vmatprep.subr.mxu0 0.0
    %1715 = vmatpush1.msra.mxu0 0.0
    %1716 = vmatprep.subr.mxu0 0.0
    %1717 = vmatpush1.msra.mxu0 0.0
    %1718 = vmatprep.subr.mxu0 0.0
    %1719 = vmatpush1.msra.mxu0 0.0
    %1720 = vmatprep.subr.mxu0 0.0
    %1721 = vmatpush1.msra.mxu0 0.0
    %1722 = vmatprep.subr.mxu0 0.0
    %1723 = vmatpush1.msra.mxu0 0.0
    %1724 = vmatprep.subr.mxu0 0.0
    %1725 = vmatpush1.msra.mxu0 0.0
    %1726 = vmatprep.subr.mxu0 0.0
    %1727 = vmatpush1.msra.mxu0 0.0
    %1728 = vmatprep.subr.mxu0 0.0
    %1729 = vmatpush1.msra.mxu0 0.0
    %1730 = vmatprep.subr.mxu0 0.0
    %1731 = vmatpush1.msra.mxu0 0.0
    %1732 = vmatprep.subr.mxu0 0.0
    %1733 = vmatpush1.msra.mxu0 0.0
    %1734 = vmatprep.subr.mxu0 0.0
    %1735 = vmatpush1.msra.mxu0 0.0
    %1736 = vmatprep.subr.mxu0 0.0
    %1737 = vmatpush1.msra.mxu0 %v1694
    %1738 = vmatprep.subr.mxu0 0.0
    %1739 = vmatpush1.msra.mxu0 %v1693
    %1740 = vmatprep.subr.mxu0 0.0
    %1741 = vmatpush1.msra.mxu0 %v1692
    %1742 = vmatprep.subr.mxu0 0.0
    %1743 = vmatpush1.msra.mxu0 %v1691
    %1744 = vmatprep.subr.mxu0 0.0
    %1745 = vmatpush2.msra.mxu0 0.0
    %1746 = vmatprep.subr.mxu0 0.0
    %1747 = vmatpush2.msra.mxu0 0.0
    %1748 = vmatprep.subr.mxu0 0.0
    %1749 = vmatpush2.msra.mxu0 0.0
    %1750 = vmatprep.subr.mxu0 0.0
    %1751 = vmatpush2.msra.mxu0 0.0
    %1752 = vmatprep.subr.mxu0 0.0
    %1753 = vmatpush2.msra.mxu0 0.0
    %1754 = vmatprep.subr.mxu0 0.0
    %1755 = vmatpush2.msra.mxu0 0.0
    %1756 = vmatprep.subr.mxu0 0.0
    %1757 = vmatpush2.msra.mxu0 0.0
    %1758 = vmatprep.subr.mxu0 0.0
    %1759 = vmatpush2.msra.mxu0 0.0
    %1760 = vmatprep.subr.mxu0 0.0
    %1761 = vmatpush2.msra.mxu0 0.0
    %1762 = vmatprep.subr.mxu0 0.0
    %1763 = vmatpush2.msra.mxu0 0.0
    %1764 = vmatprep.subr.mxu0 0.0
    %1765 = vmatpush2.msra.mxu0 0.0
    %1766 = vmatprep.subr.mxu0 0.0
    %1767 = vmatpush2.msra.mxu0 0.0
    %1768 = vmatprep.subr.mxu0 0.0
    %1769 = vmatpush2.msra.mxu0 0.0
    %1770 = vmatprep.subr.mxu0 0.0
    %1771 = vmatpush2.msra.mxu0 0.0
    %1772 = vmatprep.subr.mxu0 0.0
    %1773 = vmatpush2.msra.mxu0 0.0
    %1774 = vmatprep.subr.mxu0 0.0
    %1775 = vmatpush2.msra.mxu0 0.0
    %1776 = vmatprep.mubr.f32.mxu0 0.0
    %1777 = vmatmul.mubr.f32.gmra.mxu0 %v1701
    %v1778 = vpop.f32.mrf.mxu0
    %v1779 = vadd.f32 %v1699, %v1778
    %v1780 = vpop.f32.mrf.mxu0
    %1781 = vmatprep.mubr.f32.mxu0 0.0
    %1782 = vmatmul.mubr.f32.gmra.mxu0 %v1704
    %v1783 = vpop.f32.mrf.mxu0
    %v1784 = vadd.f32 %v1699, %v1783
    %v1785 = vpop.f32.mrf.mxu0
    %1786 = vmatprep.mubr.f32.mxu0 0.0
    %1787 = vmatmul.mubr.f32.gmra.mxu0 %v1707
    %v1788 = vpop.f32.mrf.mxu0
    %v1789 = vadd.f32 %v1699, %v1788
    %v1790 = vpop.f32.mrf.mxu0
    %1791 = vmatprep.mubr.f32.mxu0 0.0
    %1792 = vmatmul.mubr.f32.gmra.mxu0 %v1710
    %v1793 = vpop.f32.mrf.mxu0
    %v1794 = vadd.f32 %v1699, %v1793
    %v1795 = vpop.f32.mrf.mxu0
    %1796 = vdwg.mxu0
    %v1797 = vadd.f32 %v1261, %v1779
    %v1798 = vadd.f32 %v1262, %v1784
    %v1799 = vadd.f32 %v1263, %v1789
    %v1800 = vadd.f32 %v1264, %v1794
    %v1801 = vld [vmem:[%s3 + $0x2e] sm:$0x1]
    %v1802 = vld [vmem:[%s3 + $0x2f] sm:$0x1]
    %v1803 = vsel %vm208, %v1797, 0.0
    %1804 = vadd.xlane.f32.xlu0 %v1803
    %v1805 = vpop.xlane.xlu0 %1804
    %v1806 = vsel %vm208, %v1798, 0.0
    %1807 = vadd.xlane.f32.xlu0 %v1806
    %v1808 = vpop.xlane.xlu0 %1807
    %v1809 = vsel %vm208, %v1799, 0.0
    %1810 = vadd.xlane.f32.xlu0 %v1809
    %v1811 = vpop.xlane.xlu0 %1810
    %v1812 = vsel %vm910, %v1800, 0.0
    %1813 = vadd.xlane.f32.xlu0 %v1812
    %v1814 = vpop.xlane.xlu0 %1813
    %v1815 = vmul.f32 %v1805, %v914
    %v1816 = vmul.f32 %v1808, %v914
    %v1817 = vmul.f32 %v1811, %v914
    %v1818 = vmul.f32 %v1814, %v914
    %v1819 = vsub.f32 %v1797, %v1815
    %v1820 = vsub.f32 %v1798, %v1816
    %v1821 = vsub.f32 %v1799, %v1817
    %v1822 = vsub.f32 %v1800, %v1818
    %v1823 = vmul.f32 %v1819, %v1819
    %v1824 = vmul.f32 %v1820, %v1820
    %v1825 = vmul.f32 %v1821, %v1821
    %v1826 = vmul.f32 %v1822, %v1822
    %v1827 = vsel %vm208, %v1823, 0.0
    %1828 = vadd.xlane.f32.xlu0 %v1827
    %v1829 = vpop.xlane.xlu0 %1828
    %v1830 = vsel %vm208, %v1824, 0.0
    %1831 = vadd.xlane.f32.xlu0 %v1830
    %v1832 = vpop.xlane.xlu0 %1831
    %v1833 = vsel %vm208, %v1825, 0.0
    %1834 = vadd.xlane.f32.xlu0 %v1833
    %v1835 = vpop.xlane.xlu0 %1834
    %v1836 = vsel %vm910, %v1826, 0.0
    %1837 = vadd.xlane.f32.xlu0 %v1836
    %v1838 = vpop.xlane.xlu0 %1837
    %v1839 = vmul.f32 %v1829, %v914
    %v1840 = vmul.f32 %v1832, %v914
    %v1841 = vmul.f32 %v1835, %v914
    %v1842 = vmul.f32 %v1838, %v914
    %v1843 = vadd.f32 %v1839, 1e-05
    %v1844 = vadd.f32 %v1840, 1e-05
    %v1845 = vadd.f32 %v1841, 1e-05
    %v1846 = vadd.f32 %v1842, 1e-05
    %v1847 = vrsqrt.pop %v1843
    %v1848 = vrsqrt.pop %v1844
    %v1849 = vrsqrt.pop %v1845
    %v1850 = vrsqrt.pop %v1846
    %v1851 = vmul.f32 %v1819, %v1847
    %v1852 = vmul.f32 %v1820, %v1848
    %v1853 = vmul.f32 %v1821, %v1849
    %v1854 = vmul.f32 %v1822, %v1850
    %v1855 = vlaneseq
    %v1856 = vshrl.u32 %v1855, 7
    %v1857 = vsub.s32 0, %v1856
    %v1858 = vrot.slane %v1801, %v1857
    %v1859 = vmul.f32 %v1851, %v1858
    %v1860 = vmul.f32 %v1852, %v1858
    %v1861 = vmul.f32 %v1853, %v1858
    %v1862 = vmul.f32 %v1854, %v1858
    %v1863 = vlaneseq
    %v1864 = vshrl.u32 %v1863, 7
    %v1865 = vsub.s32 0, %v1864
    %v1866 = vrot.slane %v1802, %v1865
    %v1867 = vadd.f32 %v1859, %v1866
    %v1868 = vadd.f32 %v1860, %v1866
    %v1869 = vadd.f32 %v1861, %v1866
    %v1870 = vadd.f32 %v1862, %v1866
    %v1871 = vld [vmem:[#allocation7 + $0x180] sm:$0xff]
    %v1872 = vld [vmem:[#allocation7 + $0x188] sm:$0xff]
    %v1873 = vld [vmem:[#allocation7 + $0x190] sm:$0xff]
    %v1874 = vld [vmem:[#allocation7 + $0x198] sm:$0xff]
    %v1875 = vld [vmem:[%s3 + $0x30] sm:$0x1]
    %v1876 = vlaneseq
    %v1877 = vshrl.u32 %v1876, 7
    %v1878 = vsub.s32 0, %v1877
    %v1879 = vrot.slane %v1875, %v1878
    %v1881 = vsel %vm208, %v1867, 0
    %v1884 = vsel %vm208, %v1868, 0
    %v1887 = vsel %vm208, %v1869, 0
    %v1890 = vsel %vm208, %v1870, 0
    %1892 = vmatprep.subr.mxu0 0.0
    %1893 = vmatpush1.msra.mxu0 0.0
    %1894 = vmatprep.subr.mxu0 0.0
    %1895 = vmatpush1.msra.mxu0 0.0
    %1896 = vmatprep.subr.mxu0 0.0
    %1897 = vmatpush1.msra.mxu0 0.0
    %1898 = vmatprep.subr.mxu0 0.0
    %1899 = vmatpush1.msra.mxu0 0.0
    %1900 = vmatprep.subr.mxu0 0.0
    %1901 = vmatpush1.msra.mxu0 0.0
    %1902 = vmatprep.subr.mxu0 0.0
    %1903 = vmatpush1.msra.mxu0 0.0
    %1904 = vmatprep.subr.mxu0 0.0
    %1905 = vmatpush1.msra.mxu0 0.0
    %1906 = vmatprep.subr.mxu0 0.0
    %1907 = vmatpush1.msra.mxu0 0.0
    %1908 = vmatprep.subr.mxu0 0.0
    %1909 = vmatpush1.msra.mxu0 0.0
    %1910 = vmatprep.subr.mxu0 0.0
    %1911 = vmatpush1.msra.mxu0 0.0
    %1912 = vmatprep.subr.mxu0 0.0
    %1913 = vmatpush1.msra.mxu0 0.0
    %1914 = vmatprep.subr.mxu0 0.0
    %1915 = vmatpush1.msra.mxu0 0.0
    %1916 = vmatprep.subr.mxu0 0.0
    %1917 = vmatpush1.msra.mxu0 %v1874
    %1918 = vmatprep.subr.mxu0 0.0
    %1919 = vmatpush1.msra.mxu0 %v1873
    %1920 = vmatprep.subr.mxu0 0.0
    %1921 = vmatpush1.msra.mxu0 %v1872
    %1922 = vmatprep.subr.mxu0 0.0
    %1923 = vmatpush1.msra.mxu0 %v1871
    %1924 = vmatprep.subr.mxu0 0.0
    %1925 = vmatpush2.msra.mxu0 0.0
    %1926 = vmatprep.subr.mxu0 0.0
    %1927 = vmatpush2.msra.mxu0 0.0
    %1928 = vmatprep.subr.mxu0 0.0
    %1929 = vmatpush2.msra.mxu0 0.0
    %1930 = vmatprep.subr.mxu0 0.0
    %1931 = vmatpush2.msra.mxu0 0.0
    %1932 = vmatprep.subr.mxu0 0.0
    %1933 = vmatpush2.msra.mxu0 0.0
    %1934 = vmatprep.subr.mxu0 0.0
    %1935 = vmatpush2.msra.mxu0 0.0
    %1936 = vmatprep.subr.mxu0 0.0
    %1937 = vmatpush2.msra.mxu0 0.0
    %1938 = vmatprep.subr.mxu0 0.0
    %1939 = vmatpush2.msra.mxu0 0.0
    %1940 = vmatprep.subr.mxu0 0.0
    %1941 = vmatpush2.msra.mxu0 0.0
    %1942 = vmatprep.subr.mxu0 0.0
    %1943 = vmatpush2.msra.mxu0 0.0
    %1944 = vmatprep.subr.mxu0 0.0
    %1945 = vmatpush2.msra.mxu0 0.0
    %1946 = vmatprep.subr.mxu0 0.0
    %1947 = vmatpush2.msra.mxu0 0.0
    %1948 = vmatprep.subr.mxu0 0.0
    %1949 = vmatpush2.msra.mxu0 0.0
    %1950 = vmatprep.subr.mxu0 0.0
    %1951 = vmatpush2.msra.mxu0 0.0
    %1952 = vmatprep.subr.mxu0 0.0
    %1953 = vmatpush2.msra.mxu0 0.0
    %1954 = vmatprep.subr.mxu0 0.0
    %1955 = vmatpush2.msra.mxu0 0.0
    %1956 = vmatprep.mubr.f32.mxu0 0.0
    %1957 = vmatmul.mubr.f32.gmra.mxu0 %v1881
    %v1958 = vpop.f32.mrf.mxu0
    %v1959 = vadd.f32 %v1879, %v1958
    %v1960 = vpop.f32.mrf.mxu0
    %1961 = vmatprep.mubr.f32.mxu0 0.0
    %1962 = vmatmul.mubr.f32.gmra.mxu0 %v1884
    %v1963 = vpop.f32.mrf.mxu0
    %v1964 = vadd.f32 %v1879, %v1963
    %v1965 = vpop.f32.mrf.mxu0
    %1966 = vmatprep.mubr.f32.mxu0 0.0
    %1967 = vmatmul.mubr.f32.gmra.mxu0 %v1887
    %v1968 = vpop.f32.mrf.mxu0
    %v1969 = vadd.f32 %v1879, %v1968
    %v1970 = vpop.f32.mrf.mxu0
    %1971 = vmatprep.mubr.f32.mxu0 0.0
    %1972 = vmatmul.mubr.f32.gmra.mxu0 %v1890
    %v1973 = vpop.f32.mrf.mxu0
    %v1974 = vadd.f32 %v1879, %v1973
    %v1975 = vpop.f32.mrf.mxu0
    %1976 = vdwg.mxu0
    %v1977 = vmax.f32 %v1959, 0.0
    %v1978 = vmax.f32 %v1964, 0.0
    %v1979 = vmax.f32 %v1969, 0.0
    %v1980 = vmax.f32 %v1974, 0.0
    %v1981 = vld [vmem:[#allocation7 + $0x1a0] sm:$0xff]
    %v1982 = vld [vmem:[#allocation7 + $0x1a8] sm:$0xff]
    %v1983 = vld [vmem:[#allocation7 + $0x1b0] sm:$0xff]
    %v1984 = vld [vmem:[#allocation7 + $0x1b8] sm:$0xff]
    %v1985 = vld [vmem:[#allocation7 + $0x1c0] sm:$0xff]
    %v1986 = vld [vmem:[#allocation7 + $0x1c8] sm:$0xff]
    %v1987 = vld [vmem:[#allocation7 + $0x1d0] sm:$0xff]
    %v1988 = vld [vmem:[#allocation7 + $0x1d8] sm:$0xff]
    %v1989 = vld [vmem:[%s3 + $0x31] sm:$0x1]
    %v1990 = vlaneseq
    %v1991 = vshrl.u32 %v1990, 7
    %v1992 = vsub.s32 0, %v1991
    %v1993 = vrot.slane %v1989, %v1992
    %v1995 = vsel %vm211, %v1977, 0
    %v1998 = vsel %vm211, %v1978, 0
    %v2001 = vsel %vm211, %v1979, 0
    %v2004 = vsel %vm211, %v1980, 0
    %2006 = vmatprep.subr.mxu0 0.0
    %2007 = vmatpush1.msra.mxu0 0.0
    %2008 = vmatprep.subr.mxu0 0.0
    %2009 = vmatpush1.msra.mxu0 0.0
    %2010 = vmatprep.subr.mxu0 0.0
    %2011 = vmatpush1.msra.mxu0 0.0
    %2012 = vmatprep.subr.mxu0 0.0
    %2013 = vmatpush1.msra.mxu0 0.0
    %2014 = vmatprep.subr.mxu0 0.0
    %2015 = vmatpush1.msra.mxu0 0.0
    %2016 = vmatprep.subr.mxu0 0.0
    %2017 = vmatpush1.msra.mxu0 0.0
    %2018 = vmatprep.subr.mxu0 0.0
    %2019 = vmatpush1.msra.mxu0 0.0
    %2020 = vmatprep.subr.mxu0 0.0
    %2021 = vmatpush1.msra.mxu0 0.0
    %2022 = vmatprep.subr.mxu0 0.0
    %2023 = vmatpush1.msra.mxu0 %v1988
    %2024 = vmatprep.subr.mxu0 0.0
    %2025 = vmatpush1.msra.mxu0 %v1987
    %2026 = vmatprep.subr.mxu0 0.0
    %2027 = vmatpush1.msra.mxu0 %v1986
    %2028 = vmatprep.subr.mxu0 0.0
    %2029 = vmatpush1.msra.mxu0 %v1985
    %2030 = vmatprep.subr.mxu0 0.0
    %2031 = vmatpush1.msra.mxu0 %v1984
    %2032 = vmatprep.subr.mxu0 0.0
    %2033 = vmatpush1.msra.mxu0 %v1983
    %2034 = vmatprep.subr.mxu0 0.0
    %2035 = vmatpush1.msra.mxu0 %v1982
    %2036 = vmatprep.subr.mxu0 0.0
    %2037 = vmatpush1.msra.mxu0 %v1981
    %2038 = vmatprep.subr.mxu0 0.0
    %2039 = vmatpush2.msra.mxu0 0.0
    %2040 = vmatprep.subr.mxu0 0.0
    %2041 = vmatpush2.msra.mxu0 0.0
    %2042 = vmatprep.subr.mxu0 0.0
    %2043 = vmatpush2.msra.mxu0 0.0
    %2044 = vmatprep.subr.mxu0 0.0
    %2045 = vmatpush2.msra.mxu0 0.0
    %2046 = vmatprep.subr.mxu0 0.0
    %2047 = vmatpush2.msra.mxu0 0.0
    %2048 = vmatprep.subr.mxu0 0.0
    %2049 = vmatpush2.msra.mxu0 0.0
    %2050 = vmatprep.subr.mxu0 0.0
    %2051 = vmatpush2.msra.mxu0 0.0
    %2052 = vmatprep.subr.mxu0 0.0
    %2053 = vmatpush2.msra.mxu0 0.0
    %2054 = vmatprep.subr.mxu0 0.0
    %2055 = vmatpush2.msra.mxu0 0.0
    %2056 = vmatprep.subr.mxu0 0.0
    %2057 = vmatpush2.msra.mxu0 0.0
    %2058 = vmatprep.subr.mxu0 0.0
    %2059 = vmatpush2.msra.mxu0 0.0
    %2060 = vmatprep.subr.mxu0 0.0
    %2061 = vmatpush2.msra.mxu0 0.0
    %2062 = vmatprep.subr.mxu0 0.0
    %2063 = vmatpush2.msra.mxu0 0.0
    %2064 = vmatprep.subr.mxu0 0.0
    %2065 = vmatpush2.msra.mxu0 0.0
    %2066 = vmatprep.subr.mxu0 0.0
    %2067 = vmatpush2.msra.mxu0 0.0
    %2068 = vmatprep.subr.mxu0 0.0
    %2069 = vmatpush2.msra.mxu0 0.0
    %2070 = vmatprep.mubr.f32.mxu0 0.0
    %2071 = vmatmul.mubr.f32.gmra.mxu0 %v1995
    %v2072 = vpop.f32.mrf.mxu0
    %v2073 = vadd.f32 %v1993, %v2072
    %v2074 = vpop.f32.mrf.mxu0
    %2075 = vmatprep.mubr.f32.mxu0 0.0
    %2076 = vmatmul.mubr.f32.gmra.mxu0 %v1998
    %v2077 = vpop.f32.mrf.mxu0
    %v2078 = vadd.f32 %v1993, %v2077
    %v2079 = vpop.f32.mrf.mxu0
    %2080 = vmatprep.mubr.f32.mxu0 0.0
    %2081 = vmatmul.mubr.f32.gmra.mxu0 %v2001
    %v2082 = vpop.f32.mrf.mxu0
    %v2083 = vadd.f32 %v1993, %v2082
    %v2084 = vpop.f32.mrf.mxu0
    %2085 = vmatprep.mubr.f32.mxu0 0.0
    %2086 = vmatmul.mubr.f32.gmra.mxu0 %v2004
    %v2087 = vpop.f32.mrf.mxu0
    %v2088 = vadd.f32 %v1993, %v2087
    %v2089 = vpop.f32.mrf.mxu0
    %2090 = vdwg.mxu0
    %v2091 = vadd.f32 %v1867, %v2073
    %v2092 = vadd.f32 %v1868, %v2078
    %v2093 = vadd.f32 %v1869, %v2083
    %v2094 = vadd.f32 %v1870, %v2088
    %v2095 = vld [vmem:[%s3 + $0x32] sm:$0x1]
    %v2096 = vld [vmem:[%s3 + $0x33] sm:$0x1]
    %v2097 = vsel %vm208, %v2091, 0.0
    %2098 = vadd.xlane.f32.xlu0 %v2097
    %v2099 = vpop.xlane.xlu0 %2098
    %v2100 = vsel %vm208, %v2092, 0.0
    %2101 = vadd.xlane.f32.xlu0 %v2100
    %v2102 = vpop.xlane.xlu0 %2101
    %v2103 = vsel %vm208, %v2093, 0.0
    %2104 = vadd.xlane.f32.xlu0 %v2103
    %v2105 = vpop.xlane.xlu0 %2104
    %v2106 = vsel %vm910, %v2094, 0.0
    %2107 = vadd.xlane.f32.xlu0 %v2106
    %v2108 = vpop.xlane.xlu0 %2107
    %v2109 = vmul.f32 %v2099, %v914
    %v2110 = vmul.f32 %v2102, %v914
    %v2111 = vmul.f32 %v2105, %v914
    %v2112 = vmul.f32 %v2108, %v914
    %v2113 = vsub.f32 %v2091, %v2109
    %v2114 = vsub.f32 %v2092, %v2110
    %v2115 = vsub.f32 %v2093, %v2111
    %v2116 = vsub.f32 %v2094, %v2112
    %v2117 = vmul.f32 %v2113, %v2113
    %v2118 = vmul.f32 %v2114, %v2114
    %v2119 = vmul.f32 %v2115, %v2115
    %v2120 = vmul.f32 %v2116, %v2116
    %v2121 = vsel %vm208, %v2117, 0.0
    %2122 = vadd.xlane.f32.xlu0 %v2121
    %v2123 = vpop.xlane.xlu0 %2122
    %v2124 = vsel %vm208, %v2118, 0.0
    %2125 = vadd.xlane.f32.xlu0 %v2124
    %v2126 = vpop.xlane.xlu0 %2125
    %v2127 = vsel %vm208, %v2119, 0.0
    %2128 = vadd.xlane.f32.xlu0 %v2127
    %v2129 = vpop.xlane.xlu0 %2128
    %v2130 = vsel %vm910, %v2120, 0.0
    %2131 = vadd.xlane.f32.xlu0 %v2130
    %v2132 = vpop.xlane.xlu0 %2131
    %v2133 = vmul.f32 %v2123, %v914
    %v2134 = vmul.f32 %v2126, %v914
    %v2135 = vmul.f32 %v2129, %v914
    %v2136 = vmul.f32 %v2132, %v914
    %v2137 = vadd.f32 %v2133, 1e-05
    %v2138 = vadd.f32 %v2134, 1e-05
    %v2139 = vadd.f32 %v2135, 1e-05
    %v2140 = vadd.f32 %v2136, 1e-05
    %v2141 = vrsqrt.pop %v2137
    %v2142 = vrsqrt.pop %v2138
    %v2143 = vrsqrt.pop %v2139
    %v2144 = vrsqrt.pop %v2140
    %v2145 = vmul.f32 %v2113, %v2141
    %v2146 = vmul.f32 %v2114, %v2142
    %v2147 = vmul.f32 %v2115, %v2143
    %v2148 = vmul.f32 %v2116, %v2144
    %v2149 = vlaneseq
    %v2150 = vshrl.u32 %v2149, 7
    %v2151 = vsub.s32 0, %v2150
    %v2152 = vrot.slane %v2095, %v2151
    %v2153 = vmul.f32 %v2145, %v2152
    %v2154 = vmul.f32 %v2146, %v2152
    %v2155 = vmul.f32 %v2147, %v2152
    %v2156 = vmul.f32 %v2148, %v2152
    %v2157 = vlaneseq
    %v2158 = vshrl.u32 %v2157, 7
    %v2159 = vsub.s32 0, %v2158
    %v2160 = vrot.slane %v2096, %v2159
    %v2161 = vadd.f32 %v2153, %v2160
    %v2162 = vadd.f32 %v2154, %v2160
    %v2163 = vadd.f32 %v2155, %v2160
    %v2164 = vadd.f32 %v2156, %v2160
    %v2165 = vld [vmem:[%s3 + $0x20] sm:$0x3]
    %vm2166 = vcmask 228352
    %v2168 = vsel %vm2166, %v2165, 0
    %vm2170 = vcmask 1043456
    %v2172 = vsel %vm2170, %v2164, 0
    %2174 = vmatprep.subr.mxu0 0.0
    %2175 = vmatpush1.msra.mxu0 0.0
    %2176 = vmatprep.subr.mxu0 0.0
    %2177 = vmatpush1.msra.mxu0 0.0
    %2178 = vmatprep.subr.mxu0 0.0
    %2179 = vmatpush1.msra.mxu0 0.0
    %2180 = vmatprep.subr.mxu0 0.0
    %2181 = vmatpush1.msra.mxu0 0.0
    %2182 = vmatprep.subr.mxu0 0.0
    %2183 = vmatpush1.msra.mxu0 0.0
    %2184 = vmatprep.subr.mxu0 0.0
    %2185 = vmatpush1.msra.mxu0 0.0
    %2186 = vmatprep.subr.mxu0 0.0
    %2187 = vmatpush1.msra.mxu0 0.0
    %2188 = vmatprep.subr.mxu0 0.0
    %2189 = vmatpush1.msra.mxu0 0.0
    %2190 = vmatprep.subr.mxu0 0.0
    %2191 = vmatpush1.msra.mxu0 0.0
    %2192 = vmatprep.subr.mxu0 0.0
    %2193 = vmatpush1.msra.mxu0 0.0
    %2194 = vmatprep.subr.mxu0 0.0
    %2195 = vmatpush1.msra.mxu0 0.0
    %2196 = vmatprep.subr.mxu0 0.0
    %2197 = vmatpush1.msra.mxu0 0.0
    %2198 = vmatprep.subr.mxu0 0.0
    %2199 = vmatpush1.msra.mxu0 %v2172
    %2200 = vmatprep.subr.mxu0 0.0
    %2201 = vmatpush1.msra.mxu0 %v2163
    %2202 = vmatprep.subr.mxu0 0.0
    %2203 = vmatpush1.msra.mxu0 %v2162
    %2204 = vmatprep.subr.mxu0 0.0
    %2205 = vmatpush1.msra.mxu0 %v2161
    %2206 = vmatprep.subr.mxu0 0.0
    %2207 = vmatpush2.msra.mxu0 0.0
    %2208 = vmatprep.subr.mxu0 0.0
    %2209 = vmatpush2.msra.mxu0 0.0
    %2210 = vmatprep.subr.mxu0 0.0
    %2211 = vmatpush2.msra.mxu0 0.0
    %2212 = vmatprep.subr.mxu0 0.0
    %2213 = vmatpush2.msra.mxu0 0.0
    %2214 = vmatprep.subr.mxu0 0.0
    %2215 = vmatpush2.msra.mxu0 0.0
    %2216 = vmatprep.subr.mxu0 0.0
    %2217 = vmatpush2.msra.mxu0 0.0
    %2218 = vmatprep.subr.mxu0 0.0
    %2219 = vmatpush2.msra.mxu0 0.0
    %2220 = vmatprep.subr.mxu0 0.0
    %2221 = vmatpush2.msra.mxu0 0.0
    %2222 = vmatprep.subr.mxu0 0.0
    %2223 = vmatpush2.msra.mxu0 0.0
    %2224 = vmatprep.subr.mxu0 0.0
    %2225 = vmatpush2.msra.mxu0 0.0
    %2226 = vmatprep.subr.mxu0 0.0
    %2227 = vmatpush2.msra.mxu0 0.0
    %2228 = vmatprep.subr.mxu0 0.0
    %2229 = vmatpush2.msra.mxu0 0.0
    %2230 = vmatprep.subr.mxu0 0.0
    %2231 = vmatpush2.msra.mxu0 0.0
    %2232 = vmatprep.subr.mxu0 0.0
    %2233 = vmatpush2.msra.mxu0 0.0
    %2234 = vmatprep.subr.mxu0 0.0
    %2235 = vmatpush2.msra.mxu0 0.0
    %2236 = vmatprep.subr.mxu0 0.0
    %2237 = vmatpush2.msra.mxu0 0.0
    %2238 = vmatprep.mubr.f32.mxu0 0.0
    %2239 = vmatmul.mubr.f32.gmra.mxu0 %v2168
    %v2240 = vpop.f32.mrf.mxu0
    %v2241 = vadd.f32 0.0, %v2240
    %v2242 = vpop.f32.mrf.mxu0
    %2243 = vdwg.mxu0
    %v2244 = vld [vmem:[#allocation7 + $0x80] sm:$0xff]
    %v2245 = vld [vmem:[#allocation7 + $0x88] sm:$0xff]
    %v2246 = vld [vmem:[#allocation7 + $0x90] sm:$0xff]
    %v2247 = vld [vmem:[#allocation7 + $0x98] sm:$0xff]
    %v2248 = vld [vmem:[%s3 + $0x23] sm:$0x1]
    %v2249 = vlaneseq
    %v2250 = vshrl.u32 %v2249, 7
    %v2251 = vsub.s32 0, %v2250
    %v2252 = vrot.slane %v2248, %v2251
    %v2254 = vsel %vm208, %v2241, 0
    %2256 = vmatprep.subr.mxu0 0.0
    %2257 = vmatpush1.msra.mxu0 0.0
    %2258 = vmatprep.subr.mxu0 0.0
    %2259 = vmatpush1.msra.mxu0 0.0
    %2260 = vmatprep.subr.mxu0 0.0
    %2261 = vmatpush1.msra.mxu0 0.0
    %2262 = vmatprep.subr.mxu0 0.0
    %2263 = vmatpush1.msra.mxu0 0.0
    %2264 = vmatprep.subr.mxu0 0.0
    %2265 = vmatpush1.msra.mxu0 0.0
    %2266 = vmatprep.subr.mxu0 0.0
    %2267 = vmatpush1.msra.mxu0 0.0
    %2268 = vmatprep.subr.mxu0 0.0
    %2269 = vmatpush1.msra.mxu0 0.0
    %2270 = vmatprep.subr.mxu0 0.0
    %2271 = vmatpush1.msra.mxu0 0.0
    %2272 = vmatprep.subr.mxu0 0.0
    %2273 = vmatpush1.msra.mxu0 0.0
    %2274 = vmatprep.subr.mxu0 0.0
    %2275 = vmatpush1.msra.mxu0 0.0
    %2276 = vmatprep.subr.mxu0 0.0
    %2277 = vmatpush1.msra.mxu0 0.0
    %2278 = vmatprep.subr.mxu0 0.0
    %2279 = vmatpush1.msra.mxu0 0.0
    %2280 = vmatprep.subr.mxu0 0.0
    %2281 = vmatpush1.msra.mxu0 %v2247
    %2282 = vmatprep.subr.mxu0 0.0
    %2283 = vmatpush1.msra.mxu0 %v2246
    %2284 = vmatprep.subr.mxu0 0.0
    %2285 = vmatpush1.msra.mxu0 %v2245
    %2286 = vmatprep.subr.mxu0 0.0
    %2287 = vmatpush1.msra.mxu0 %v2244
    %2288 = vmatprep.subr.mxu0 0.0
    %2289 = vmatpush2.msra.mxu0 0.0
    %2290 = vmatprep.subr.mxu0 0.0
    %2291 = vmatpush2.msra.mxu0 0.0
    %2292 = vmatprep.subr.mxu0 0.0
    %2293 = vmatpush2.msra.mxu0 0.0
    %2294 = vmatprep.subr.mxu0 0.0
    %2295 = vmatpush2.msra.mxu0 0.0
    %2296 = vmatprep.subr.mxu0 0.0
    %2297 = vmatpush2.msra.mxu0 0.0
    %2298 = vmatprep.subr.mxu0 0.0
    %2299 = vmatpush2.msra.mxu0 0.0
    %2300 = vmatprep.subr.mxu0 0.0
    %2301 = vmatpush2.msra.mxu0 0.0
    %2302 = vmatprep.subr.mxu0 0.0
    %2303 = vmatpush2.msra.mxu0 0.0
    %2304 = vmatprep.subr.mxu0 0.0
    %2305 = vmatpush2.msra.mxu0 0.0
    %2306 = vmatprep.subr.mxu0 0.0
    %2307 = vmatpush2.msra.mxu0 0.0
    %2308 = vmatprep.subr.mxu0 0.0
    %2309 = vmatpush2.msra.mxu0 0.0
    %2310 = vmatprep.subr.mxu0 0.0
    %2311 = vmatpush2.msra.mxu0 0.0
    %2312 = vmatprep.subr.mxu0 0.0
    %2313 = vmatpush2.msra.mxu0 0.0
    %2314 = vmatprep.subr.mxu0 0.0
    %2315 = vmatpush2.msra.mxu0 0.0
    %2316 = vmatprep.subr.mxu0 0.0
    %2317 = vmatpush2.msra.mxu0 0.0
    %2318 = vmatprep.subr.mxu0 0.0
    %2319 = vmatpush2.msra.mxu0 0.0
    %2320 = vmatprep.mubr.f32.mxu0 0.0
    %2321 = vmatmul.mubr.f32.gmra.mxu0 %v2254
    %v2322 = vpop.f32.mrf.mxu0
    %v2323 = vadd.f32 %v2252, %v2322
    %v2324 = vpop.f32.mrf.mxu0
    %2325 = vdwg.mxu0
    %vm2326 = vcmask 58368
    %2327 = vst.msk [vmem:[#allocation8] sm:$0x3] %vm2326, %v2323
    // Predicated region
    $region26: #{forward_pallas.1} parent=1 // pred_check
      _
    $region27: #{forward_pallas.1} parent=1 // pred_check_branch
      %2329 = sbr.rel (0) target = $region29
    $region28: #{forward_pallas.1} parent=1 // pred_region
      %s2331 = ssub.s32 32, 32
      %2332 = vsyncadd [#allocation5], %s2331
      %s2334 = sshll.u32 [#allocation8], 4
      %s2335 = int_to_ptr.vmem [resolvable:$true] %s2334
      %2337 = dma.vmem_to_hbm [thread:$0]  %s2335, 32, %s4, [#allocation5]
    $region29: #{forward_pallas.1} parent=1 // pred_fallthru
      _
    // Predicated region
    $region30: #{forward_pallas.1} parent=1 // pred_check
      _
    $region31: #{forward_pallas.1} parent=1 // pred_check_branch
      %2339 = sbr.rel (0) target = $region33
    $region32: #{forward_pallas.1} parent=1 // pred_region
      %2340 = dma.done [#allocation5], 32
    $region33: #{forward_pallas.1} parent=1 // pred_fallthru
      _
    %2341 = vsyncpa [#allocation4], 1
    %2342 = vsyncpa [#allocation5], 1
    %2343 = vsyncpa [#allocation6], 1

</llo_original>
